<compile_context>
chip_gen: v7x
topology: tpu7x:2x2x1
jax: 0.10.0
libtpu: 0.0.40
codegen_flags: <defaults>
</compile_context>

<pallas_src>
import functools

import jax
import jax.numpy as jnp
from jax.experimental import pallas as pl
from jax.experimental.pallas import tpu as pltpu


_VMEM_LIMIT = 48 * 1024 * 1024   # > 32 MiB scoped default, < v7x's 64 MiB physical


def _cparams(*dims):
    return pltpu.CompilerParams(dimension_semantics=tuple(dims),
                                vmem_limit_bytes=_VMEM_LIMIT)


# ----------------------------- in-kernel helpers ---------------------------------

def _gelu(x):
    # tanh-approximate GELU (== jax.nn.gelu(approximate=True)).  The transcendental
    # goes to the otherwise-idle EUP slot.  Deviates from torch's exact erf GELU by
    # <1e-3 relative (documented tradeoff from the perf review).
    c = 0.7978845608028654  # sqrt(2/pi)
    return 0.5 * x * (1.0 + jnp.tanh(c * (x + 0.044715 * (x * x * x))))


def _row_tile(m):
    # Largest row tile (multiple of 8, <= 1024) that divides m AND leaves >= 2 grid
    # steps (so the parallel axis can be split across TensorCores); else the full m.
    for cand in (1024, 512, 256, 128, 64, 32, 16, 8):
        if m % cand == 0 and m // cand >= 2:
            return cand
    return m


# ----------------------------- Pallas kernels ------------------------------------

def _dense_kernel(x_ref, w_ref, o_ref, *, act):
    y = jnp.dot(x_ref[...], w_ref[...], preferred_element_type=jnp.float32)
    if act == "gelu":
        y = _gelu(y)
    o_ref[...] = y.astype(o_ref.dtype)


def _dense_bias_kernel(x_ref, w_ref, b_ref, o_ref, *, act):
    y = jnp.dot(x_ref[...], w_ref[...], preferred_element_type=jnp.float32) + b_ref[...]
    if act == "gelu":
        y = _gelu(y)
    o_ref[...] = y.astype(o_ref.dtype)


def dense(x, w, b=None, act="none"):
    """1x1 conv / Linear:  x [M,K] @ w [K,N] (+ b [N]) (+ GELU), rows tiled."""
    m, k = x.shape
    k2, n = w.shape
    assert k == k2
    tm = _row_tile(m)
    assert m % tm == 0
    in_specs = [
        pl.BlockSpec((tm, k), lambda i: (i, 0)),
        pl.BlockSpec((k, n), lambda i: (0, 0)),
    ]
    args = [x, w]
    if b is None:
        kern = functools.partial(_dense_kernel, act=act)       # no bias: skip DMA + add
    else:
        kern = functools.partial(_dense_bias_kernel, act=act)
        in_specs.append(pl.BlockSpec((1, n), lambda i: (0, 0)))
        args.append(b.reshape(1, n).astype(x.dtype))
    return pl.pallas_call(
        kern,
        out_shape=jax.ShapeDtypeStruct((m, n), x.dtype),
        grid=(m // tm,),
        in_specs=in_specs,
        out_specs=pl.BlockSpec((tm, n), lambda i: (i, 0)),
        compiler_params=_cparams("parallel"),
    )(*args)


def _layernorm_kernel(x_ref, g_ref, b_ref, o_ref, *, eps):
    x = x_ref[...]
    mu = jnp.mean(x, axis=-1, keepdims=True)
    xc = x - mu
    var = jnp.mean(xc * xc, axis=-1, keepdims=True)
    y = xc * jax.lax.rsqrt(var + eps)
    o_ref[...] = (y * g_ref[...] + b_ref[...]).astype(o_ref.dtype)


def layernorm(x, gamma, beta, eps=1e-5):
    m, c = x.shape
    tm = _row_tile(m)
    assert m % tm == 0
    return pl.pallas_call(
        functools.partial(_layernorm_kernel, eps=eps),
        out_shape=jax.ShapeDtypeStruct((m, c), x.dtype),
        grid=(m // tm,),
        in_specs=[
            pl.BlockSpec((tm, c), lambda i: (i, 0)),
            pl.BlockSpec((1, c), lambda i: (0, 0)),
            pl.BlockSpec((1, c), lambda i: (0, 0)),
        ],
        out_specs=pl.BlockSpec((tm, c), lambda i: (i, 0)),
        compiler_params=_cparams("parallel"),
    )(x, gamma.reshape(1, c), beta.reshape(1, c))


def _dwconv3x3_kernel(xp_ref, w_ref, o_ref, *, act):
    xp = xp_ref[...][0]          # [H+2, W+2, C]  (already zero-padded)
    w = w_ref[...]               # [3, 3, C]
    hh, ww, _ = o_ref.shape[1:]
    acc = jnp.zeros(o_ref.shape[1:], jnp.float32)
    # TODO(synk): the dw (sublane) shifts below re-slice xp across (8,128) tile
    # boundaries; for large W this should switch to pltpu.roll + edge masks, and for
    # v7x the H axis should be row-tiled with a 1-row halo.  At these tiny shapes the
    # relayout cost is negligible.
    for dh in range(3):
        for dw in range(3):
            acc = acc + xp[dh:dh + hh, dw:dw + ww, :] * w[dh, dw, :]
    if act == "gelu":
        acc = _gelu(acc)
    o_ref[...] = acc[None].astype(o_ref.dtype)


def dwconv3x3(x, w, act="none"):
    """Depthwise 3x3 conv, stride 1, pad 1, no bias.  x: [B,H,W,C], w: [3,3,C]."""
    b, h, ww, c = x.shape
    xp = jnp.pad(x, ((0, 0), (1, 1), (1, 1), (0, 0)))
    return pl.pallas_call(
        functools.partial(_dwconv3x3_kernel, act=act),
        out_shape=jax.ShapeDtypeStruct((b, h, ww, c), x.dtype),
        grid=(b,),
        in_specs=[
            pl.BlockSpec((1, h + 2, ww + 2, c), lambda i: (i, 0, 0, 0)),
            pl.BlockSpec((3, 3, c), lambda i: (0, 0, 0)),
        ],
        out_specs=pl.BlockSpec((1, h, ww, c), lambda i: (i, 0, 0, 0)),
        compiler_params=_cparams("parallel"),
    )(xp, w)


def _msa_attn_kernel(qkv_ref, rescale_ref, o_ref, *, heads, dim_head):
    # qkv: [n, 3*heads*d] channels-last (tokens on sublanes, channels on lanes);
    # all heads processed in one body, no layout transposes.
    qkv = qkv_ref[...][0]
    hd = heads * dim_head
    q_all = qkv[:, 0 * hd:1 * hd]
    k_all = qkv[:, 1 * hd:2 * hd]
    v_all = qkv[:, 2 * hd:3 * hd]
    outs = []
    for h in range(heads):                     # static unroll (heads is small)
        sl = slice(h * dim_head, (h + 1) * dim_head)
        q = q_all[:, sl]                       # [n, d]
        k = k_all[:, sl]
        v = v_all[:, sl]
        # L2-normalize over tokens (== F.normalize(dim=-1) on torch's [d, n] layout).
        # rsqrt runs on the EUP; max(.., 1e-24) reproduces clamp_min(eps=1e-12).
        q = q * jax.lax.rsqrt(jnp.maximum(jnp.sum(q * q, axis=0, keepdims=True), 1e-24))
        k = k * jax.lax.rsqrt(jnp.maximum(jnp.sum(k * k, axis=0, keepdims=True), 1e-24))
        # Channel attention: contract over the token axis directly (attn = k^T @ q).
        attn = jax.lax.dot_general(k, q, (((0,), (0,)), ((), ())),
                                   preferred_element_type=jnp.float32)   # [d, d]
        attn = attn * rescale_ref[h]
        attn = attn - jnp.max(attn, axis=-1, keepdims=True)
        attn = jnp.exp(attn)
        attn = attn / jnp.sum(attn, axis=-1, keepdims=True)
        # out[t, i] = sum_j v[t, j] * attn[i, j]  ->  v @ attn^T, stays channels-last.
        outs.append(jax.lax.dot_general(v, attn, (((1,), (1,)), ((), ())),
                                        preferred_element_type=jnp.float32))  # [n, d]
    out = outs[0] if heads == 1 else jnp.concatenate(outs, axis=-1)
    o_ref[...] = out[None].astype(o_ref.dtype)


def msa_attention(qkv, rescale, heads, dim_head):
    """qkv: [B, N, 3*heads*d] (channels-last), rescale: [heads] -> [B, N, heads*d]."""
    b, n, c3 = qkv.shape
    hd = heads * dim_head
    assert c3 == 3 * hd
    return pl.pallas_call(
        functools.partial(_msa_attn_kernel, heads=heads, dim_head=dim_head),
        out_shape=jax.ShapeDtypeStruct((b, n, hd), qkv.dtype),
        grid=(b,),
        in_specs=[
            pl.BlockSpec((1, n, c3), lambda i: (i, 0, 0)),
            pl.BlockSpec((heads,), lambda i: (0,),
                         memory_space=pltpu.MemorySpace.SMEM),
        ],
        out_specs=pl.BlockSpec((1, n, hd), lambda i: (i, 0, 0)),
        compiler_params=_cparams("parallel"),
    )(qkv, rescale)


def _recombine_kernel(aa_ref, a_ref, pa_ref, p_ref, re_ref, im_ref):
    amp = aa_ref[...] + a_ref[...]          # fused residual: msab(amp) + amp
    pha = pa_ref[...] + p_ref[...]          # fused residual: msab(pha) + pha
    re_ref[...] = amp * jnp.cos(pha) + 1e-8
    im_ref[...] = amp * jnp.sin(pha) + 1e-8


def recombine(amp_att, amp, pha_att, pha):
    """All inputs [B,H,W,C]; returns (real, imag) with the outer residual adds fused."""
    shape = amp.shape
    m = shape[0] * shape[1]
    n = shape[2] * shape[3]
    tm = _row_tile(m)
    assert m % tm == 0
    spec = pl.BlockSpec((tm, n), lambda i: (i, 0))
    flat = lambda t: t.reshape(m, n)
    real, imag = pl.pallas_call(
        _recombine_kernel,
        out_shape=(jax.ShapeDtypeStruct((m, n), amp.dtype),
                   jax.ShapeDtypeStruct((m, n), amp.dtype)),
        grid=(m // tm,),
        in_specs=[spec, spec, spec, spec],
        out_specs=(spec, spec),
        compiler_params=_cparams("parallel"),
    )(flat(amp_att), flat(amp), flat(pha_att), flat(pha))
    return real.reshape(shape), imag.reshape(shape)


# ----------------------------- module forward (glue) -----------------------------

def ms_msa(x, p, heads, dim_head):
    """MS_MSA.  x: [B, H, W, C] -> [B, H, W, C]."""
    b, h, w, c = x.shape
    n = h * w
    hd = heads * dim_head
    xt = x.reshape(b * n, c)
    qkv = dense(xt, p["w_qkv"])                                   # fused Q|K|V, no bias
    att = msa_attention(qkv.reshape(b, n, 3 * hd), p["rescale"], heads, dim_head)
    out_c = dense(att.reshape(b * n, hd), p["wproj"], p["bproj"]).reshape(b, h, w, c)

    v_img = qkv[:, 2 * hd:].reshape(b, h, w, hd)                  # v_inp as an image
    pe = dwconv3x3(v_img, p["pos_w1"], act="gelu")
    pe = dwconv3x3(pe, p["pos_w2"], act="none")
    return out_c + pe


def feedforward_prenorm(x, p):
    """PreNorm(LayerNorm) + FeedForward.  x: [B, H, W, C] -> [B, H, W, C]."""
    b, h, w, c = x.shape
    xt = x.reshape(b * h * w, c)
    xn = layernorm(xt, p["ln_g"], p["ln_b"])
    h1 = dense(xn, p["ff_w1"], act="gelu").reshape(b, h, w, -1)
    h2 = dwconv3x3(h1, p["ff_dw"], act="gelu").reshape(b * h * w, -1)
    out = dense(h2, p["ff_w2"])
    return out.reshape(b, h, w, c)


def msab(x, blocks, heads, dim_head):
    """MSAB on a channels-last [B, H, W, C] tensor (no layout transposes)."""
    for p in blocks:
        x = ms_msa(x, p["msa"], heads, dim_head) + x
        x = feedforward_prenorm(x, p["ffn"]) + x
    return x


def conv1x1(x, w, b):
    """1x1 conv with bias on an NHWC tensor."""
    bs, hh, ww, c = x.shape
    y = dense(x.reshape(bs * hh * ww, c), w, b)
    return y.reshape(bs, hh, ww, -1)


def freblock_forward(x_nchw, params, heads, dim_head):
    """FreBlock.forward.  x: [B, C, H, W] float32 (NCHW interface, NHWC inside)."""
    _, _, hh, ww = x_nchw.shape
    x = jnp.transpose(x_nchw, (0, 2, 3, 1))                       # only entry transpose
    pre = conv1x1(x, params["fpre_w"], params["fpre_b"]) + 1e-8
    # TODO(synk): rfft2 / irfft2 / angle have no Pallas TPU primitive; plain XLA here.
    msf = jnp.fft.rfft2(pre, axes=(1, 2), norm="backward")        # [B, H, W//2+1, C]
    msf_amp = jnp.abs(msf)
    msf_pha = jnp.angle(msf)

    amp_att = msab(msf_amp, params["amp_att"], heads, dim_head)
    pha_att = msab(msf_pha, params["pha_att"], heads, dim_head)

    real, imag = recombine(amp_att, msf_amp, pha_att, msf_pha)    # residual adds fused
    out = jax.lax.complex(real, imag) + 1e-8
    out = jnp.abs(jnp.fft.irfft2(out, s=(hh, ww), axes=(1, 2), norm="backward"))
    out = conv1x1(out, params["post_w"], params["post_b"])
    out = out + x
    out = jnp.nan_to_num(out, nan=1e-5, posinf=1e-5, neginf=1e-5)
    return jnp.transpose(out, (0, 3, 1, 2))                       # only exit transpose


# ----------------------------- parameter init ------------------------------------

def init_params(key, dim, dim_head, heads, num_blocks):
    assert dim == dim_head * heads, "pos_emb conv requires dim == dim_head * heads"
    keys = [key]

    def nxt():
        keys[0], sub = jax.random.split(keys[0])
        return sub

    def w(shape, scale=0.1):
        return scale * jax.random.normal(nxt(), shape, jnp.float32)

    def msab_params():
        blocks = []
        for _ in range(num_blocks):
            blocks.append({
                "msa": {
                    "w_qkv": w((dim, 3 * dim_head * heads)),   # fused Q|K|V weight
                    "rescale": jnp.ones((heads,), jnp.float32),
                    "wproj": w((dim_head * heads, dim)),
                    "bproj": w((dim,), 0.02),
                    "pos_w1": w((3, 3, dim)),
                    "pos_w2": w((3, 3, dim)),
                },
                "ffn": {
                    "ln_g": jnp.ones((dim,), jnp.float32),
                    "ln_b": jnp.zeros((dim,), jnp.float32),
                    "ff_w1": w((dim, dim * 4)),
                    "ff_dw": w((3, 3, dim * 4)),
                    "ff_w2": w((dim * 4, dim)),
                },
            })
        return blocks

    return {
        "fpre_w": w((dim, dim)),
        "fpre_b": w((dim,), 0.02),
        "post_w": w((dim, dim)),
        "post_b": w((dim,), 0.02),
        "amp_att": msab_params(),
        "pha_att": msab_params(),
    }


# ----------------------------- main -----------------------------------------------

if __name__ == "__main__":
    B, DIM, H, W = 2, 8, 8, 8
    DIM_HEAD, HEADS, NUM_BLOCKS = 4, 2, 1

    key = jax.random.PRNGKey(0)
    kx, kp = jax.random.split(key)
    x = jax.random.normal(kx, (B, DIM, H, W), jnp.float32)
    params = init_params(kp, DIM, DIM_HEAD, HEADS, NUM_BLOCKS)

    @jax.jit
    def fwd(xx, pp):
        return freblock_forward(xx, pp, HEADS, DIM_HEAD)

    out = fwd(x, params)
    jax.block_until_ready(out)
    assert out.shape == x.shape and out.dtype == jnp.float32
    print("KERNEL_OK")
</pallas_src>

<mosaic_0001>
module attributes {stable_mosaic.version = 11 : i64} {
  func.func @_dense_bias_kernel(%arg0: i32, %arg1: memref<64x8xf32, #tpu.memory_space<vmem>>, %arg2: memref<8x8xf32, #tpu.memory_space<vmem>>, %arg3: memref<1x8xf32, #tpu.memory_space<vmem>>, %arg4: memref<64x8xf32, #tpu.memory_space<vmem>>) attributes {dimension_semantics = [#tpu.dimension_semantics<parallel>], iteration_bounds = array<i64: 2>, scalar_prefetch = 0 : i64, scratch_operands = 0 : i64, tpu.core_type = #tpu.core_type<tc>, window_params = [{transform_indices = @transform_0, window_bounds = array<i64: 64, 8>}, {pipeline_mode = #tpu.pipeline_mode<synchronous>, transform_indices = @transform_1, window_bounds = array<i64: 8, 8>}, {pipeline_mode = #tpu.pipeline_mode<synchronous>, transform_indices = @transform_2, window_bounds = array<i64: 1, 8>}, {transform_indices = @transform_3, window_bounds = array<i64: 64, 8>}]} {
    %c0 = arith.constant 0 : index
    %c0_0 = arith.constant 0 : index
    %0 = vector.load %arg1[%c0, %c0_0] : memref<64x8xf32, #tpu.memory_space<vmem>>, vector<64x8xf32>
    %c0_1 = arith.constant 0 : index
    %c0_2 = arith.constant 0 : index
    %1 = vector.load %arg2[%c0_1, %c0_2] : memref<8x8xf32, #tpu.memory_space<vmem>>, vector<8x8xf32>
    %cst = arith.constant dense<0.000000e+00> : vector<64x8xf32>
    %2 = tpu.matmul %0, %1, %cst {dimension_numbers = #tpu.dot_dimension_numbers<[1], [0], [0], [1], [0, 0, 1, 1], [], []>} : vector<64x8xf32>, vector<8x8xf32>, vector<64x8xf32> -> vector<64x8xf32>
    %c0_3 = arith.constant 0 : index
    %c0_4 = arith.constant 0 : index
    %3 = vector.load %arg3[%c0_3, %c0_4] : memref<1x8xf32, #tpu.memory_space<vmem>>, vector<1x8xf32>
    %4 = vector.broadcast %3 : vector<1x8xf32> to vector<64x8xf32>
    %5 = arith.addf %2, %4 : vector<64x8xf32>
    %c0_5 = arith.constant 0 : index
    %c0_6 = arith.constant 0 : index
    %6 = vector.load %arg4[%c0_5, %c0_6] : memref<64x8xf32, #tpu.memory_space<vmem>>, vector<64x8xf32>
    tpu.vector_store %arg4[%c0_5, %c0_6], %5 {strides = array<i32>} : memref<64x8xf32, #tpu.memory_space<vmem>>, vector<64x8xf32>,
    return
  }
  func.func @transform_0(%arg0: i32) -> (i32, i32) {
    %c0_i32 = arith.constant 0 : i32
    %c0_i32_0 = arith.constant 0 : i32
    return %arg0, %c0_i32 : i32, i32
  }
  func.func @transform_1(%arg0: i32) -> (i32, i32) {
    %c0_i32 = arith.constant 0 : i32
    %c0_i32_0 = arith.constant 0 : i32
    %c0_i32_1 = arith.constant 0 : i32
    return %c0_i32, %c0_i32_0 : i32, i32
  }
  func.func @transform_2(%arg0: i32) -> (i32, i32) {
    %c0_i32 = arith.constant 0 : i32
    %c0_i32_0 = arith.constant 0 : i32
    %c0_i32_1 = arith.constant 0 : i32
    return %c0_i32, %c0_i32_0 : i32, i32
  }
  func.func @transform_3(%arg0: i32) -> (i32, i32) {
    %c0_i32 = arith.constant 0 : i32
    %c0_i32_0 = arith.constant 0 : i32
    return %arg0, %c0_i32 : i32, i32
  }
}

module attributes {stable_mosaic.version = 11 : i64} {
  func.func @_dense_kernel(%arg0: i32, %arg1: memref<16x8xf32, #tpu.memory_space<vmem>>, %arg2: memref<8x24xf32, #tpu.memory_space<vmem>>, %arg3: memref<16x24xf32, #tpu.memory_space<vmem>>) attributes {dimension_semantics = [#tpu.dimension_semantics<parallel>], iteration_bounds = array<i64: 5>, scalar_prefetch = 0 : i64, scratch_operands = 0 : i64, tpu.core_type = #tpu.core_type<tc>, window_params = [{transform_indices = @transform_0, window_bounds = array<i64: 16, 8>}, {pipeline_mode = #tpu.pipeline_mode<synchronous>, transform_indices = @transform_1, window_bounds = array<i64: 8, 24>}, {transform_indices = @transform_2, window_bounds = array<i64: 16, 24>}]} {
    %c0 = arith.constant 0 : index
    %c0_0 = arith.constant 0 : index
    %0 = vector.load %arg1[%c0, %c0_0] : memref<16x8xf32, #tpu.memory_space<vmem>>, vector<16x8xf32>
    %c0_1 = arith.constant 0 : index
    %c0_2 = arith.constant 0 : index
    %1 = vector.load %arg2[%c0_1, %c0_2] : memref<8x24xf32, #tpu.memory_space<vmem>>, vector<8x24xf32>
    %cst = arith.constant dense<0.000000e+00> : vector<16x24xf32>
    %2 = tpu.matmul %0, %1, %cst {dimension_numbers = #tpu.dot_dimension_numbers<[1], [0], [0], [1], [0, 0, 1, 1], [], []>} : vector<16x8xf32>, vector<8x24xf32>, vector<16x24xf32> -> vector<16x24xf32>
    %c0_3 = arith.constant 0 : index
    %c0_4 = arith.constant 0 : index
    %3 = vector.load %arg3[%c0_3, %c0_4] : memref<16x24xf32, #tpu.memory_space<vmem>>, vector<16x24xf32>
    tpu.vector_store %arg3[%c0_3, %c0_4], %2 {strides = array<i32>} : memref<16x24xf32, #tpu.memory_space<vmem>>, vector<16x24xf32>,
    return
  }
  func.func @transform_0(%arg0: i32) -> (i32, i32) {
    %c0_i32 = arith.constant 0 : i32
    %c0_i32_0 = arith.constant 0 : i32
    return %arg0, %c0_i32 : i32, i32
  }
  func.func @transform_1(%arg0: i32) -> (i32, i32) {
    %c0_i32 = arith.constant 0 : i32
    %c0_i32_0 = arith.constant 0 : i32
    %c0_i32_1 = arith.constant 0 : i32
    return %c0_i32, %c0_i32_0 : i32, i32
  }
  func.func @transform_2(%arg0: i32) -> (i32, i32) {
    %c0_i32 = arith.constant 0 : i32
    %c0_i32_0 = arith.constant 0 : i32
    return %arg0, %c0_i32 : i32, i32
  }
}

module attributes {stable_mosaic.version = 11 : i64} {
  func.func @_dwconv3x3_kernel(%arg0: i32, %arg1: memref<1x10x7x8xf32, #tpu.memory_space<vmem>>, %arg2: memref<3x3x8xf32, #tpu.memory_space<vmem>>, %arg3: memref<1x8x5x8xf32, #tpu.memory_space<vmem>>) attributes {dimension_semantics = [#tpu.dimension_semantics<parallel>], iteration_bounds = array<i64: 2>, scalar_prefetch = 0 : i64, scratch_operands = 0 : i64, tpu.core_type = #tpu.core_type<tc>, window_params = [{transform_indices = @transform_0, window_bounds = array<i64: 1, 10, 7, 8>}, {pipeline_mode = #tpu.pipeline_mode<synchronous>, transform_indices = @transform_1, window_bounds = array<i64: 3, 3, 8>}, {transform_indices = @transform_2, window_bounds = array<i64: 1, 8, 5, 8>}]} {
    %c0 = arith.constant 0 : index
    %c0_0 = arith.constant 0 : index
    %c0_1 = arith.constant 0 : index
    %c0_2 = arith.constant 0 : index
    %0 = vector.load %arg1[%c0, %c0_0, %c0_1, %c0_2] : memref<1x10x7x8xf32, #tpu.memory_space<vmem>>, vector<1x10x7x8xf32>
    %1 = vector.shape_cast %0 : vector<1x10x7x8xf32> to vector<10x7x8xf32>
    %c0_3 = arith.constant 0 : index
    %c0_4 = arith.constant 0 : index
    %c0_5 = arith.constant 0 : index
    %2 = vector.load %arg2[%c0_3, %c0_4, %c0_5] : memref<3x3x8xf32, #tpu.memory_space<vmem>>, vector<3x3x8xf32>
    %cst = arith.constant 0.000000e+00 : f32
    %3 = vector.broadcast %cst : f32 to vector<8x5x8xf32>
    %4 = vector.extract_strided_slice %1 {offsets = [0, 0, 0], sizes = [8, 5, 8], strides = [1, 1, 1]} : vector<10x7x8xf32> to vector<8x5x8xf32>
    %5 = vector.extract_strided_slice %2 {offsets = [0, 0, 0], sizes = [1, 1, 8], strides = [1, 1, 1]} : vector<3x3x8xf32> to vector<1x1x8xf32>
    %6 = vector.shape_cast %5 : vector<1x1x8xf32> to vector<8xf32>
    %7 = vector.shape_cast %6 : vector<8xf32> to vector<1x1x8xf32>
    %8 = vector.broadcast %7 : vector<1x1x8xf32> to vector<8x5x8xf32>
    %9 = arith.mulf %4, %8 : vector<8x5x8xf32>
    %10 = arith.addf %3, %9 : vector<8x5x8xf32>
    %11 = vector.extract_strided_slice %1 {offsets = [0, 1, 0], sizes = [8, 5, 8], strides = [1, 1, 1]} : vector<10x7x8xf32> to vector<8x5x8xf32>
    %12 = vector.extract_strided_slice %2 {offsets = [0, 1, 0], sizes = [1, 1, 8], strides = [1, 1, 1]} : vector<3x3x8xf32> to vector<1x1x8xf32>
    %13 = vector.shape_cast %12 : vector<1x1x8xf32> to vector<8xf32>
    %14 = vector.shape_cast %13 : vector<8xf32> to vector<1x1x8xf32>
    %15 = vector.broadcast %14 : vector<1x1x8xf32> to vector<8x5x8xf32>
    %16 = arith.mulf %11, %15 : vector<8x5x8xf32>
    %17 = arith.addf %10, %16 : vector<8x5x8xf32>
    %18 = vector.extract_strided_slice %1 {offsets = [0, 2, 0], sizes = [8, 5, 8], strides = [1, 1, 1]} : vector<10x7x8xf32> to vector<8x5x8xf32>
    %19 = vector.extract_strided_slice %2 {offsets = [0, 2, 0], sizes = [1, 1, 8], strides = [1, 1, 1]} : vector<3x3x8xf32> to vector<1x1x8xf32>
    %20 = vector.shape_cast %19 : vector<1x1x8xf32> to vector<8xf32>
    %21 = vector.shape_cast %20 : vector<8xf32> to vector<1x1x8xf32>
    %22 = vector.broadcast %21 : vector<1x1x8xf32> to vector<8x5x8xf32>
    %23 = arith.mulf %18, %22 : vector<8x5x8xf32>
    %24 = arith.addf %17, %23 : vector<8x5x8xf32>
    %25 = vector.extract_strided_slice %1 {offsets = [1, 0, 0], sizes = [8, 5, 8], strides = [1, 1, 1]} : vector<10x7x8xf32> to vector<8x5x8xf32>
    %26 = vector.extract_strided_slice %2 {offsets = [1, 0, 0], sizes = [1, 1, 8], strides = [1, 1, 1]} : vector<3x3x8xf32> to vector<1x1x8xf32>
    %27 = vector.shape_cast %26 : vector<1x1x8xf32> to vector<8xf32>
    %28 = vector.shape_cast %27 : vector<8xf32> to vector<1x1x8xf32>
    %29 = vector.broadcast %28 : vector<1x1x8xf32> to vector<8x5x8xf32>
    %30 = arith.mulf %25, %29 : vector<8x5x8xf32>
    %31 = arith.addf %24, %30 : vector<8x5x8xf32>
    %32 = vector.extract_strided_slice %1 {offsets = [1, 1, 0], sizes = [8, 5, 8], strides = [1, 1, 1]} : vector<10x7x8xf32> to vector<8x5x8xf32>
    %33 = vector.extract_strided_slice %2 {offsets = [1, 1, 0], sizes = [1, 1, 8], strides = [1, 1, 1]} : vector<3x3x8xf32> to vector<1x1x8xf32>
    %34 = vector.shape_cast %33 : vector<1x1x8xf32> to vector<8xf32>
    %35 = vector.shape_cast %34 : vector<8xf32> to vector<1x1x8xf32>
    %36 = vector.broadcast %35 : vector<1x1x8xf32> to vector<8x5x8xf32>
    %37 = arith.mulf %32, %36 : vector<8x5x8xf32>
    %38 = arith.addf %31, %37 : vector<8x5x8xf32>
    %39 = vector.extract_strided_slice %1 {offsets = [1, 2, 0], sizes = [8, 5, 8], strides = [1, 1, 1]} : vector<10x7x8xf32> to vector<8x5x8xf32>
    %40 = vector.extract_strided_slice %2 {offsets = [1, 2, 0], sizes = [1, 1, 8], strides = [1, 1, 1]} : vector<3x3x8xf32> to vector<1x1x8xf32>
    %41 = vector.shape_cast %40 : vector<1x1x8xf32> to vector<8xf32>
    %42 = vector.shape_cast %41 : vector<8xf32> to vector<1x1x8xf32>
    %43 = vector.broadcast %42 : vector<1x1x8xf32> to vector<8x5x8xf32>
    %44 = arith.mulf %39, %43 : vector<8x5x8xf32>
    %45 = arith.addf %38, %44 : vector<8x5x8xf32>
    %46 = vector.extract_strided_slice %1 {offsets = [2, 0, 0], sizes = [8, 5, 8], strides = [1, 1, 1]} : vector<10x7x8xf32> to vector<8x5x8xf32>
    %47 = vector.extract_strided_slice %2 {offsets = [2, 0, 0], sizes = [1, 1, 8], strides = [1, 1, 1]} : vector<3x3x8xf32> to vector<1x1x8xf32>
    %48 = vector.shape_cast %47 : vector<1x1x8xf32> to vector<8xf32>
    %49 = vector.shape_cast %48 : vector<8xf32> to vector<1x1x8xf32>
    %50 = vector.broadcast %49 : vector<1x1x8xf32> to vector<8x5x8xf32>
    %51 = arith.mulf %46, %50 : vector<8x5x8xf32>
    %52 = arith.addf %45, %51 : vector<8x5x8xf32>
    %53 = vector.extract_strided_slice %1 {offsets = [2, 1, 0], sizes = [8, 5, 8], strides = [1, 1, 1]} : vector<10x7x8xf32> to vector<8x5x8xf32>
    %54 = vector.extract_strided_slice %2 {offsets = [2, 1, 0], sizes = [1, 1, 8], strides = [1, 1, 1]} : vector<3x3x8xf32> to vector<1x1x8xf32>
    %55 = vector.shape_cast %54 : vector<1x1x8xf32> to vector<8xf32>
    %56 = vector.shape_cast %55 : vector<8xf32> to vector<1x1x8xf32>
    %57 = vector.broadcast %56 : vector<1x1x8xf32> to vector<8x5x8xf32>
    %58 = arith.mulf %53, %57 : vector<8x5x8xf32>
    %59 = arith.addf %52, %58 : vector<8x5x8xf32>
    %60 = vector.extract_strided_slice %1 {offsets = [2, 2, 0], sizes = [8, 5, 8], strides = [1, 1, 1]} : vector<10x7x8xf32> to vector<8x5x8xf32>
    %61 = vector.extract_strided_slice %2 {offsets = [2, 2, 0], sizes = [1, 1, 8], strides = [1, 1, 1]} : vector<3x3x8xf32> to vector<1x1x8xf32>
    %62 = vector.shape_cast %61 : vector<1x1x8xf32> to vector<8xf32>
    %63 = vector.shape_cast %62 : vector<8xf32> to vector<1x1x8xf32>
    %64 = vector.broadcast %63 : vector<1x1x8xf32> to vector<8x5x8xf32>
    %65 = arith.mulf %60, %64 : vector<8x5x8xf32>
    %66 = arith.addf %59, %65 : vector<8x5x8xf32>
    %cst_6 = arith.constant 5.000000e-01 : f32
    %67 = vector.broadcast %cst_6 : f32 to vector<8x5x8xf32>
    %68 = arith.mulf %67, %66 : vector<8x5x8xf32>
    %69 = arith.mulf %66, %66 : vector<8x5x8xf32>
    %70 = arith.mulf %69, %66 : vector<8x5x8xf32>
    %cst_7 = arith.constant 4.471500e-02 : f32
    %71 = vector.broadcast %cst_7 : f32 to vector<8x5x8xf32>
    %72 = arith.mulf %71, %70 : vector<8x5x8xf32>
    %73 = arith.addf %66, %72 : vector<8x5x8xf32>
    %cst_8 = arith.constant 0.797884583 : f32
    %74 = vector.broadcast %cst_8 : f32 to vector<8x5x8xf32>
    %75 = arith.mulf %74, %73 : vector<8x5x8xf32>
    %76 = math.tanh %75 : vector<8x5x8xf32>
    %cst_9 = arith.constant 1.000000e+00 : f32
    %77 = vector.broadcast %cst_9 : f32 to vector<8x5x8xf32>
    %78 = arith.addf %77, %76 : vector<8x5x8xf32>
    %79 = arith.mulf %68, %78 : vector<8x5x8xf32>
    %80 = vector.shape_cast %79 : vector<8x5x8xf32> to vector<1x8x5x8xf32>
    %c0_10 = arith.constant 0 : index
    %c0_11 = arith.constant 0 : index
    %c0_12 = arith.constant 0 : index
    %c0_13 = arith.constant 0 : index
    %81 = vector.load %arg3[%c0_10, %c0_11, %c0_12, %c0_13] : memref<1x8x5x8xf32, #tpu.memory_space<vmem>>, vector<1x8x5x8xf32>
    tpu.vector_store %arg3[%c0_10, %c0_11, %c0_12, %c0_13], %80 {strides = array<i32>} : memref<1x8x5x8xf32, #tpu.memory_space<vmem>>, vector<1x8x5x8xf32>,
    return
  }
  func.func @transform_0(%arg0: i32) -> (i32, i32, i32, i32) {
    %c0_i32 = arith.constant 0 : i32
    %c0_i32_0 = arith.constant 0 : i32
    %c0_i32_1 = arith.constant 0 : i32
    %c0_i32_2 = arith.constant 0 : i32
    return %arg0, %c0_i32, %c0_i32_0, %c0_i32_1 : i32, i32, i32, i32
  }
  func.func @transform_1(%arg0: i32) -> (i32, i32, i32) {
    %c0_i32 = arith.constant 0 : i32
    %c0_i32_0 = arith.constant 0 : i32
    %c0_i32_1 = arith.constant 0 : i32
    %c0_i32_2 = arith.constant 0 : i32
    return %c0_i32, %c0_i32_0, %c0_i32_1 : i32, i32, i32
  }
  func.func @transform_2(%arg0: i32) -> (i32, i32, i32, i32) {
    %c0_i32 = arith.constant 0 : i32
    %c0_i32_0 = arith.constant 0 : i32
    %c0_i32_1 = arith.constant 0 : i32
    %c0_i32_2 = arith.constant 0 : i32
    return %arg0, %c0_i32, %c0_i32_0, %c0_i32_1 : i32, i32, i32, i32
  }
}

module attributes {stable_mosaic.version = 11 : i64} {
  func.func @_dwconv3x3_kernel(%arg0: i32, %arg1: memref<1x10x7x8xf32, #tpu.memory_space<vmem>>, %arg2: memref<3x3x8xf32, #tpu.memory_space<vmem>>, %arg3: memref<1x8x5x8xf32, #tpu.memory_space<vmem>>) attributes {dimension_semantics = [#tpu.dimension_semantics<parallel>], iteration_bounds = array<i64: 2>, scalar_prefetch = 0 : i64, scratch_operands = 0 : i64, tpu.core_type = #tpu.core_type<tc>, window_params = [{transform_indices = @transform_0, window_bounds = array<i64: 1, 10, 7, 8>}, {pipeline_mode = #tpu.pipeline_mode<synchronous>, transform_indices = @transform_1, window_bounds = array<i64: 3, 3, 8>}, {transform_indices = @transform_2, window_bounds = array<i64: 1, 8, 5, 8>}]} {
    %c0 = arith.constant 0 : index
    %c0_0 = arith.constant 0 : index
    %c0_1 = arith.constant 0 : index
    %c0_2 = arith.constant 0 : index
    %0 = vector.load %arg1[%c0, %c0_0, %c0_1, %c0_2] : memref<1x10x7x8xf32, #tpu.memory_space<vmem>>, vector<1x10x7x8xf32>
    %1 = vector.shape_cast %0 : vector<1x10x7x8xf32> to vector<10x7x8xf32>
    %c0_3 = arith.constant 0 : index
    %c0_4 = arith.constant 0 : index
    %c0_5 = arith.constant 0 : index
    %2 = vector.load %arg2[%c0_3, %c0_4, %c0_5] : memref<3x3x8xf32, #tpu.memory_space<vmem>>, vector<3x3x8xf32>
    %cst = arith.constant 0.000000e+00 : f32
    %3 = vector.broadcast %cst : f32 to vector<8x5x8xf32>
    %4 = vector.extract_strided_slice %1 {offsets = [0, 0, 0], sizes = [8, 5, 8], strides = [1, 1, 1]} : vector<10x7x8xf32> to vector<8x5x8xf32>
    %5 = vector.extract_strided_slice %2 {offsets = [0, 0, 0], sizes = [1, 1, 8], strides = [1, 1, 1]} : vector<3x3x8xf32> to vector<1x1x8xf32>
    %6 = vector.shape_cast %5 : vector<1x1x8xf32> to vector<8xf32>
    %7 = vector.shape_cast %6 : vector<8xf32> to vector<1x1x8xf32>
    %8 = vector.broadcast %7 : vector<1x1x8xf32> to vector<8x5x8xf32>
    %9 = arith.mulf %4, %8 : vector<8x5x8xf32>
    %10 = arith.addf %3, %9 : vector<8x5x8xf32>
    %11 = vector.extract_strided_slice %1 {offsets = [0, 1, 0], sizes = [8, 5, 8], strides = [1, 1, 1]} : vector<10x7x8xf32> to vector<8x5x8xf32>
    %12 = vector.extract_strided_slice %2 {offsets = [0, 1, 0], sizes = [1, 1, 8], strides = [1, 1, 1]} : vector<3x3x8xf32> to vector<1x1x8xf32>
    %13 = vector.shape_cast %12 : vector<1x1x8xf32> to vector<8xf32>
    %14 = vector.shape_cast %13 : vector<8xf32> to vector<1x1x8xf32>
    %15 = vector.broadcast %14 : vector<1x1x8xf32> to vector<8x5x8xf32>
    %16 = arith.mulf %11, %15 : vector<8x5x8xf32>
    %17 = arith.addf %10, %16 : vector<8x5x8xf32>
    %18 = vector.extract_strided_slice %1 {offsets = [0, 2, 0], sizes = [8, 5, 8], strides = [1, 1, 1]} : vector<10x7x8xf32> to vector<8x5x8xf32>
    %19 = vector.extract_strided_slice %2 {offsets = [0, 2, 0], sizes = [1, 1, 8], strides = [1, 1, 1]} : vector<3x3x8xf32> to vector<1x1x8xf32>
    %20 = vector.shape_cast %19 : vector<1x1x8xf32> to vector<8xf32>
    %21 = vector.shape_cast %20 : vector<8xf32> to vector<1x1x8xf32>
    %22 = vector.broadcast %21 : vector<1x1x8xf32> to vector<8x5x8xf32>
    %23 = arith.mulf %18, %22 : vector<8x5x8xf32>
    %24 = arith.addf %17, %23 : vector<8x5x8xf32>
    %25 = vector.extract_strided_slice %1 {offsets = [1, 0, 0], sizes = [8, 5, 8], strides = [1, 1, 1]} : vector<10x7x8xf32> to vector<8x5x8xf32>
    %26 = vector.extract_strided_slice %2 {offsets = [1, 0, 0], sizes = [1, 1, 8], strides = [1, 1, 1]} : vector<3x3x8xf32> to vector<1x1x8xf32>
    %27 = vector.shape_cast %26 : vector<1x1x8xf32> to vector<8xf32>
    %28 = vector.shape_cast %27 : vector<8xf32> to vector<1x1x8xf32>
    %29 = vector.broadcast %28 : vector<1x1x8xf32> to vector<8x5x8xf32>
    %30 = arith.mulf %25, %29 : vector<8x5x8xf32>
    %31 = arith.addf %24, %30 : vector<8x5x8xf32>
    %32 = vector.extract_strided_slice %1 {offsets = [1, 1, 0], sizes = [8, 5, 8], strides = [1, 1, 1]} : vector<10x7x8xf32> to vector<8x5x8xf32>
    %33 = vector.extract_strided_slice %2 {offsets = [1, 1, 0], sizes = [1, 1, 8], strides = [1, 1, 1]} : vector<3x3x8xf32> to vector<1x1x8xf32>
    %34 = vector.shape_cast %33 : vector<1x1x8xf32> to vector<8xf32>
    %35 = vector.shape_cast %34 : vector<8xf32> to vector<1x1x8xf32>
    %36 = vector.broadcast %35 : vector<1x1x8xf32> to vector<8x5x8xf32>
    %37 = arith.mulf %32, %36 : vector<8x5x8xf32>
    %38 = arith.addf %31, %37 : vector<8x5x8xf32>
    %39 = vector.extract_strided_slice %1 {offsets = [1, 2, 0], sizes = [8, 5, 8], strides = [1, 1, 1]} : vector<10x7x8xf32> to vector<8x5x8xf32>
    %40 = vector.extract_strided_slice %2 {offsets = [1, 2, 0], sizes = [1, 1, 8], strides = [1, 1, 1]} : vector<3x3x8xf32> to vector<1x1x8xf32>
    %41 = vector.shape_cast %40 : vector<1x1x8xf32> to vector<8xf32>
    %42 = vector.shape_cast %41 : vector<8xf32> to vector<1x1x8xf32>
    %43 = vector.broadcast %42 : vector<1x1x8xf32> to vector<8x5x8xf32>
    %44 = arith.mulf %39, %43 : vector<8x5x8xf32>
    %45 = arith.addf %38, %44 : vector<8x5x8xf32>
    %46 = vector.extract_strided_slice %1 {offsets = [2, 0, 0], sizes = [8, 5, 8], strides = [1, 1, 1]} : vector<10x7x8xf32> to vector<8x5x8xf32>
    %47 = vector.extract_strided_slice %2 {offsets = [2, 0, 0], sizes = [1, 1, 8], strides = [1, 1, 1]} : vector<3x3x8xf32> to vector<1x1x8xf32>
    %48 = vector.shape_cast %47 : vector<1x1x8xf32> to vector<8xf32>
    %49 = vector.shape_cast %48 : vector<8xf32> to vector<1x1x8xf32>
    %50 = vector.broadcast %49 : vector<1x1x8xf32> to vector<8x5x8xf32>
    %51 = arith.mulf %46, %50 : vector<8x5x8xf32>
    %52 = arith.addf %45, %51 : vector<8x5x8xf32>
    %53 = vector.extract_strided_slice %1 {offsets = [2, 1, 0], sizes = [8, 5, 8], strides = [1, 1, 1]} : vector<10x7x8xf32> to vector<8x5x8xf32>
    %54 = vector.extract_strided_slice %2 {offsets = [2, 1, 0], sizes = [1, 1, 8], strides = [1, 1, 1]} : vector<3x3x8xf32> to vector<1x1x8xf32>
    %55 = vector.shape_cast %54 : vector<1x1x8xf32> to vector<8xf32>
    %56 = vector.shape_cast %55 : vector<8xf32> to vector<1x1x8xf32>
    %57 = vector.broadcast %56 : vector<1x1x8xf32> to vector<8x5x8xf32>
    %58 = arith.mulf %53, %57 : vector<8x5x8xf32>
    %59 = arith.addf %52, %58 : vector<8x5x8xf32>
    %60 = vector.extract_strided_slice %1 {offsets = [2, 2, 0], sizes = [8, 5, 8], strides = [1, 1, 1]} : vector<10x7x8xf32> to vector<8x5x8xf32>
    %61 = vector.extract_strided_slice %2 {offsets = [2, 2, 0], sizes = [1, 1, 8], strides = [1, 1, 1]} : vector<3x3x8xf32> to vector<1x1x8xf32>
    %62 = vector.shape_cast %61 : vector<1x1x8xf32> to vector<8xf32>
    %63 = vector.shape_cast %62 : vector<8xf32> to vector<1x1x8xf32>
    %64 = vector.broadcast %63 : vector<1x1x8xf32> to vector<8x5x8xf32>
    %65 = arith.mulf %60, %64 : vector<8x5x8xf32>
    %66 = arith.addf %59, %65 : vector<8x5x8xf32>
    %67 = vector.shape_cast %66 : vector<8x5x8xf32> to vector<1x8x5x8xf32>
    %c0_6 = arith.constant 0 : index
    %c0_7 = arith.constant 0 : index
    %c0_8 = arith.constant 0 : index
    %c0_9 = arith.constant 0 : index
    %68 = vector.load %arg3[%c0_6, %c0_7, %c0_8, %c0_9] : memref<1x8x5x8xf32, #tpu.memory_space<vmem>>, vector<1x8x5x8xf32>
    tpu.vector_store %arg3[%c0_6, %c0_7, %c0_8, %c0_9], %67 {strides = array<i32>} : memref<1x8x5x8xf32, #tpu.memory_space<vmem>>, vector<1x8x5x8xf32>,
    return
  }
  func.func @transform_0(%arg0: i32) -> (i32, i32, i32, i32) {
    %c0_i32 = arith.constant 0 : i32
    %c0_i32_0 = arith.constant 0 : i32
    %c0_i32_1 = arith.constant 0 : i32
    %c0_i32_2 = arith.constant 0 : i32
    return %arg0, %c0_i32, %c0_i32_0, %c0_i32_1 : i32, i32, i32, i32
  }
  func.func @transform_1(%arg0: i32) -> (i32, i32, i32) {
    %c0_i32 = arith.constant 0 : i32
    %c0_i32_0 = arith.constant 0 : i32
    %c0_i32_1 = arith.constant 0 : i32
    %c0_i32_2 = arith.constant 0 : i32
    return %c0_i32, %c0_i32_0, %c0_i32_1 : i32, i32, i32
  }
  func.func @transform_2(%arg0: i32) -> (i32, i32, i32, i32) {
    %c0_i32 = arith.constant 0 : i32
    %c0_i32_0 = arith.constant 0 : i32
    %c0_i32_1 = arith.constant 0 : i32
    %c0_i32_2 = arith.constant 0 : i32
    return %arg0, %c0_i32, %c0_i32_0, %c0_i32_1 : i32, i32, i32, i32
  }
}

module attributes {stable_mosaic.version = 11 : i64} {
  func.func @_msa_attn_kernel(%arg0: i32, %arg1: memref<1x40x24xf32, #tpu.memory_space<vmem>>, %arg2: memref<2xf32, #tpu.memory_space<smem>>, %arg3: memref<1x40x8xf32, #tpu.memory_space<vmem>>) attributes {dimension_semantics = [#tpu.dimension_semantics<parallel>], iteration_bounds = array<i64: 2>, scalar_prefetch = 0 : i64, scratch_operands = 0 : i64, tpu.core_type = #tpu.core_type<tc>, window_params = [{transform_indices = @transform_0, window_bounds = array<i64: 1, 40, 24>}, {transform_indices = @transform_1, window_bounds = array<i64: 2>}, {transform_indices = @transform_2, window_bounds = array<i64: 1, 40, 8>}]} {
    %c0 = arith.constant 0 : index
    %c0_0 = arith.constant 0 : index
    %c0_1 = arith.constant 0 : index
    %0 = vector.load %arg1[%c0, %c0_0, %c0_1] : memref<1x40x24xf32, #tpu.memory_space<vmem>>, vector<1x40x24xf32>
    %1 = vector.shape_cast %0 : vector<1x40x24xf32> to vector<40x24xf32>
    %2 = vector.extract_strided_slice %1 {offsets = [0, 0], sizes = [40, 8], strides = [1, 1]} : vector<40x24xf32> to vector<40x8xf32>
    %3 = vector.extract_strided_slice %1 {offsets = [0, 8], sizes = [40, 8], strides = [1, 1]} : vector<40x24xf32> to vector<40x8xf32>
    %4 = vector.extract_strided_slice %1 {offsets = [0, 16], sizes = [40, 8], strides = [1, 1]} : vector<40x24xf32> to vector<40x8xf32>
    %5 = vector.extract_strided_slice %2 {offsets = [0, 0], sizes = [40, 4], strides = [1, 1]} : vector<40x8xf32> to vector<40x4xf32>
    %6 = vector.extract_strided_slice %3 {offsets = [0, 0], sizes = [40, 4], strides = [1, 1]} : vector<40x8xf32> to vector<40x4xf32>
    %7 = vector.extract_strided_slice %4 {offsets = [0, 0], sizes = [40, 4], strides = [1, 1]} : vector<40x8xf32> to vector<40x4xf32>
    %8 = arith.mulf %5, %5 : vector<40x4xf32>
    %cst = arith.constant dense<0.000000e+00> : vector<4xf32>
    %9 = vector.multi_reduction <add>, %8, %cst [0] : vector<40x4xf32> to vector<4xf32>
    %10 = vector.shape_cast %9 : vector<4xf32> to vector<1x4xf32>
    %cst_2 = arith.constant 1.000000e-24 : f32
    %11 = vector.broadcast %cst_2 : f32 to vector<1x4xf32>
    %12 = arith.maximumf %10, %11 : vector<1x4xf32>
    %13 = math.rsqrt %12 : vector<1x4xf32>
    %14 = vector.broadcast %13 : vector<1x4xf32> to vector<40x4xf32>
    %15 = arith.mulf %5, %14 : vector<40x4xf32>
    %16 = arith.mulf %6, %6 : vector<40x4xf32>
    %cst_3 = arith.constant dense<0.000000e+00> : vector<4xf32>
    %17 = vector.multi_reduction <add>, %16, %cst_3 [0] : vector<40x4xf32> to vector<4xf32>
    %18 = vector.shape_cast %17 : vector<4xf32> to vector<1x4xf32>
    %cst_4 = arith.constant 1.000000e-24 : f32
    %19 = vector.broadcast %cst_4 : f32 to vector<1x4xf32>
    %20 = arith.maximumf %18, %19 : vector<1x4xf32>
    %21 = math.rsqrt %20 : vector<1x4xf32>
    %22 = vector.broadcast %21 : vector<1x4xf32> to vector<40x4xf32>
    %23 = arith.mulf %6, %22 : vector<40x4xf32>
    %cst_5 = arith.constant dense<0.000000e+00> : vector<4x4xf32>
    %24 = tpu.matmul %23, %15, %cst_5 {dimension_numbers = #tpu.dot_dimension_numbers<[0], [0], [1], [1], [0, 1, 1, 1], [], []>} : vector<40x4xf32>, vector<40x4xf32>, vector<4x4xf32> -> vector<4x4xf32>
    %c0_6 = arith.constant 0 : index
    %25 = memref.load %arg2[%c0_6] : memref<2xf32, #tpu.memory_space<smem>>
    %26 = vector.broadcast %25 : f32 to vector<4x4xf32>
    %27 = arith.mulf %24, %26 : vector<4x4xf32>
    %cst_7 = arith.constant dense<0xFF800000> : vector<4xf32>
    %28 = vector.multi_reduction <maximumf>, %27, %cst_7 [1] : vector<4x4xf32> to vector<4xf32>
    %29 = vector.shape_cast %28 : vector<4xf32> to vector<4x1xf32>
    %30 = vector.broadcast %29 : vector<4x1xf32> to vector<4x4xf32>
    %31 = arith.subf %27, %30 : vector<4x4xf32>
    %32 = math.exp %31 : vector<4x4xf32>
    %cst_8 = arith.constant dense<0.000000e+00> : vector<4xf32>
    %33 = vector.multi_reduction <add>, %32, %cst_8 [1] : vector<4x4xf32> to vector<4xf32>
    %34 = vector.shape_cast %33 : vector<4xf32> to vector<4x1xf32>
    %35 = vector.broadcast %34 : vector<4x1xf32> to vector<4x4xf32>
    %36 = arith.divf %32, %35 : vector<4x4xf32>
    %cst_9 = arith.constant dense<0.000000e+00> : vector<40x4xf32>
    %37 = tpu.matmul %7, %36, %cst_9 {dimension_numbers = #tpu.dot_dimension_numbers<[1], [1], [0], [0], [0, 0, 1, 0], [], []>} : vector<40x4xf32>, vector<4x4xf32>, vector<40x4xf32> -> vector<40x4xf32>
    %38 = vector.extract_strided_slice %2 {offsets = [0, 4], sizes = [40, 4], strides = [1, 1]} : vector<40x8xf32> to vector<40x4xf32>
    %39 = vector.extract_strided_slice %3 {offsets = [0, 4], sizes = [40, 4], strides = [1, 1]} : vector<40x8xf32> to vector<40x4xf32>
    %40 = vector.extract_strided_slice %4 {offsets = [0, 4], sizes = [40, 4], strides = [1, 1]} : vector<40x8xf32> to vector<40x4xf32>
    %41 = arith.mulf %38, %38 : vector<40x4xf32>
    %cst_10 = arith.constant dense<0.000000e+00> : vector<4xf32>
    %42 = vector.multi_reduction <add>, %41, %cst_10 [0] : vector<40x4xf32> to vector<4xf32>
    %43 = vector.shape_cast %42 : vector<4xf32> to vector<1x4xf32>
    %cst_11 = arith.constant 1.000000e-24 : f32
    %44 = vector.broadcast %cst_11 : f32 to vector<1x4xf32>
    %45 = arith.maximumf %43, %44 : vector<1x4xf32>
    %46 = math.rsqrt %45 : vector<1x4xf32>
    %47 = vector.broadcast %46 : vector<1x4xf32> to vector<40x4xf32>
    %48 = arith.mulf %38, %47 : vector<40x4xf32>
    %49 = arith.mulf %39, %39 : vector<40x4xf32>
    %cst_12 = arith.constant dense<0.000000e+00> : vector<4xf32>
    %50 = vector.multi_reduction <add>, %49, %cst_12 [0] : vector<40x4xf32> to vector<4xf32>
    %51 = vector.shape_cast %50 : vector<4xf32> to vector<1x4xf32>
    %cst_13 = arith.constant 1.000000e-24 : f32
    %52 = vector.broadcast %cst_13 : f32 to vector<1x4xf32>
    %53 = arith.maximumf %51, %52 : vector<1x4xf32>
    %54 = math.rsqrt %53 : vector<1x4xf32>
    %55 = vector.broadcast %54 : vector<1x4xf32> to vector<40x4xf32>
    %56 = arith.mulf %39, %55 : vector<40x4xf32>
    %cst_14 = arith.constant dense<0.000000e+00> : vector<4x4xf32>
    %57 = tpu.matmul %56, %48, %cst_14 {dimension_numbers = #tpu.dot_dimension_numbers<[0], [0], [1], [1], [0, 1, 1, 1], [], []>} : vector<40x4xf32>, vector<40x4xf32>, vector<4x4xf32> -> vector<4x4xf32>
    %c1 = arith.constant 1 : index
    %58 = memref.load %arg2[%c1] : memref<2xf32, #tpu.memory_space<smem>>
    %59 = vector.broadcast %58 : f32 to vector<4x4xf32>
    %60 = arith.mulf %57, %59 : vector<4x4xf32>
    %cst_15 = arith.constant dense<0xFF800000> : vector<4xf32>
    %61 = vector.multi_reduction <maximumf>, %60, %cst_15 [1] : vector<4x4xf32> to vector<4xf32>
    %62 = vector.shape_cast %61 : vector<4xf32> to vector<4x1xf32>
    %63 = vector.broadcast %62 : vector<4x1xf32> to vector<4x4xf32>
    %64 = arith.subf %60, %63 : vector<4x4xf32>
    %65 = math.exp %64 : vector<4x4xf32>
    %cst_16 = arith.constant dense<0.000000e+00> : vector<4xf32>
    %66 = vector.multi_reduction <add>, %65, %cst_16 [1] : vector<4x4xf32> to vector<4xf32>
    %67 = vector.shape_cast %66 : vector<4xf32> to vector<4x1xf32>
    %68 = vector.broadcast %67 : vector<4x1xf32> to vector<4x4xf32>
    %69 = arith.divf %65, %68 : vector<4x4xf32>
    %cst_17 = arith.constant dense<0.000000e+00> : vector<40x4xf32>
    %70 = tpu.matmul %40, %69, %cst_17 {dimension_numbers = #tpu.dot_dimension_numbers<[1], [1], [0], [0], [0, 0, 1, 0], [], []>} : vector<40x4xf32>, vector<4x4xf32>, vector<40x4xf32> -> vector<40x4xf32>
    %71 = tpu.concatenate %37, %70 in 1 : vector<40x4xf32>, vector<40x4xf32> -> vector<40x8xf32>
    %72 = vector.shape_cast %71 : vector<40x8xf32> to vector<1x40x8xf32>
    %c0_18 = arith.constant 0 : index
    %c0_19 = arith.constant 0 : index
    %c0_20 = arith.constant 0 : index
    %73 = vector.load %arg3[%c0_18, %c0_19, %c0_20] : memref<1x40x8xf32, #tpu.memory_space<vmem>>, vector<1x40x8xf32>
    tpu.vector_store %arg3[%c0_18, %c0_19, %c0_20], %72 {strides = array<i32>} : memref<1x40x8xf32, #tpu.memory_space<vmem>>, vector<1x40x8xf32>,
    return
  }
  func.func @transform_0(%arg0: i32) -> (i32, i32, i32) {
    %c0_i32 = arith.constant 0 : i32
    %c0_i32_0 = arith.constant 0 : i32
    %c0_i32_1 = arith.constant 0 : i32
    return %arg0, %c0_i32, %c0_i32_0 : i32, i32, i32
  }
  func.func @transform_1(%arg0: i32) -> i32 {
    %c0_i32 = arith.constant 0 : i32
    %c0_i32_0 = arith.constant 0 : i32
    return %c0_i32 : i32
  }
  func.func @transform_2(%arg0: i32) -> (i32, i32, i32) {
    %c0_i32 = arith.constant 0 : i32
    %c0_i32_0 = arith.constant 0 : i32
    %c0_i32_1 = arith.constant 0 : i32
    return %arg0, %c0_i32, %c0_i32_0 : i32, i32, i32
  }
}

module attributes {stable_mosaic.version = 11 : i64} {
  func.func @_dense_bias_kernel(%arg0: i32, %arg1: memref<16x8xf32, #tpu.memory_space<vmem>>, %arg2: memref<8x8xf32, #tpu.memory_space<vmem>>, %arg3: memref<1x8xf32, #tpu.memory_space<vmem>>, %arg4: memref<16x8xf32, #tpu.memory_space<vmem>>) attributes {dimension_semantics = [#tpu.dimension_semantics<parallel>], iteration_bounds = array<i64: 5>, scalar_prefetch = 0 : i64, scratch_operands = 0 : i64, tpu.core_type = #tpu.core_type<tc>, window_params = [{transform_indices = @transform_0, window_bounds = array<i64: 16, 8>}, {pipeline_mode = #tpu.pipeline_mode<synchronous>, transform_indices = @transform_1, window_bounds = array<i64: 8, 8>}, {pipeline_mode = #tpu.pipeline_mode<synchronous>, transform_indices = @transform_2, window_bounds = array<i64: 1, 8>}, {transform_indices = @transform_3, window_bounds = array<i64: 16, 8>}]} {
    %c0 = arith.constant 0 : index
    %c0_0 = arith.constant 0 : index
    %0 = vector.load %arg1[%c0, %c0_0] : memref<16x8xf32, #tpu.memory_space<vmem>>, vector<16x8xf32>
    %c0_1 = arith.constant 0 : index
    %c0_2 = arith.constant 0 : index
    %1 = vector.load %arg2[%c0_1, %c0_2] : memref<8x8xf32, #tpu.memory_space<vmem>>, vector<8x8xf32>
    %cst = arith.constant dense<0.000000e+00> : vector<16x8xf32>
    %2 = tpu.matmul %0, %1, %cst {dimension_numbers = #tpu.dot_dimension_numbers<[1], [0], [0], [1], [0, 0, 1, 1], [], []>} : vector<16x8xf32>, vector<8x8xf32>, vector<16x8xf32> -> vector<16x8xf32>
    %c0_3 = arith.constant 0 : index
    %c0_4 = arith.constant 0 : index
    %3 = vector.load %arg3[%c0_3, %c0_4] : memref<1x8xf32, #tpu.memory_space<vmem>>, vector<1x8xf32>
    %4 = vector.broadcast %3 : vector<1x8xf32> to vector<16x8xf32>
    %5 = arith.addf %2, %4 : vector<16x8xf32>
    %c0_5 = arith.constant 0 : index
    %c0_6 = arith.constant 0 : index
    %6 = vector.load %arg4[%c0_5, %c0_6] : memref<16x8xf32, #tpu.memory_space<vmem>>, vector<16x8xf32>
    tpu.vector_store %arg4[%c0_5, %c0_6], %5 {strides = array<i32>} : memref<16x8xf32, #tpu.memory_space<vmem>>, vector<16x8xf32>,
    return
  }
  func.func @transform_0(%arg0: i32) -> (i32, i32) {
    %c0_i32 = arith.constant 0 : i32
    %c0_i32_0 = arith.constant 0 : i32
    return %arg0, %c0_i32 : i32, i32
  }
  func.func @transform_1(%arg0: i32) -> (i32, i32) {
    %c0_i32 = arith.constant 0 : i32
    %c0_i32_0 = arith.constant 0 : i32
    %c0_i32_1 = arith.constant 0 : i32
    return %c0_i32, %c0_i32_0 : i32, i32
  }
  func.func @transform_2(%arg0: i32) -> (i32, i32) {
    %c0_i32 = arith.constant 0 : i32
    %c0_i32_0 = arith.constant 0 : i32
    %c0_i32_1 = arith.constant 0 : i32
    return %c0_i32, %c0_i32_0 : i32, i32
  }
  func.func @transform_3(%arg0: i32) -> (i32, i32) {
    %c0_i32 = arith.constant 0 : i32
    %c0_i32_0 = arith.constant 0 : i32
    return %arg0, %c0_i32 : i32, i32
  }
}

module attributes {stable_mosaic.version = 11 : i64} {
  func.func @_layernorm_kernel(%arg0: i32, %arg1: memref<16x8xf32, #tpu.memory_space<vmem>>, %arg2: memref<1x8xf32, #tpu.memory_space<vmem>>, %arg3: memref<1x8xf32, #tpu.memory_space<vmem>>, %arg4: memref<16x8xf32, #tpu.memory_space<vmem>>) attributes {dimension_semantics = [#tpu.dimension_semantics<parallel>], iteration_bounds = array<i64: 5>, scalar_prefetch = 0 : i64, scratch_operands = 0 : i64, tpu.core_type = #tpu.core_type<tc>, window_params = [{transform_indices = @transform_0, window_bounds = array<i64: 16, 8>}, {pipeline_mode = #tpu.pipeline_mode<synchronous>, transform_indices = @transform_1, window_bounds = array<i64: 1, 8>}, {pipeline_mode = #tpu.pipeline_mode<synchronous>, transform_indices = @transform_2, window_bounds = array<i64: 1, 8>}, {transform_indices = @transform_3, window_bounds = array<i64: 16, 8>}]} {
    %c0 = arith.constant 0 : index
    %c0_0 = arith.constant 0 : index
    %0 = vector.load %arg1[%c0, %c0_0] : memref<16x8xf32, #tpu.memory_space<vmem>>, vector<16x8xf32>
    %cst = arith.constant dense<0.000000e+00> : vector<16xf32>
    %1 = vector.multi_reduction <add>, %0, %cst [1] : vector<16x8xf32> to vector<16xf32>
    %2 = vector.shape_cast %1 : vector<16xf32> to vector<16x1xf32>
    %cst_1 = arith.constant 8.000000e+00 : f32
    %3 = vector.broadcast %cst_1 : f32 to vector<16x1xf32>
    %4 = arith.divf %2, %3 : vector<16x1xf32>
    %5 = vector.broadcast %4 : vector<16x1xf32> to vector<16x8xf32>
    %6 = arith.subf %0, %5 : vector<16x8xf32>
    %7 = arith.mulf %6, %6 : vector<16x8xf32>
    %cst_2 = arith.constant dense<0.000000e+00> : vector<16xf32>
    %8 = vector.multi_reduction <add>, %7, %cst_2 [1] : vector<16x8xf32> to vector<16xf32>
    %9 = vector.shape_cast %8 : vector<16xf32> to vector<16x1xf32>
    %cst_3 = arith.constant 8.000000e+00 : f32
    %10 = vector.broadcast %cst_3 : f32 to vector<16x1xf32>
    %11 = arith.divf %9, %10 : vector<16x1xf32>
    %cst_4 = arith.constant 9.99999974E-6 : f32
    %12 = vector.broadcast %cst_4 : f32 to vector<16x1xf32>
    %13 = arith.addf %11, %12 : vector<16x1xf32>
    %14 = math.rsqrt %13 : vector<16x1xf32>
    %15 = vector.broadcast %14 : vector<16x1xf32> to vector<16x8xf32>
    %16 = arith.mulf %6, %15 : vector<16x8xf32>
    %c0_5 = arith.constant 0 : index
    %c0_6 = arith.constant 0 : index
    %17 = vector.load %arg2[%c0_5, %c0_6] : memref<1x8xf32, #tpu.memory_space<vmem>>, vector<1x8xf32>
    %18 = vector.broadcast %17 : vector<1x8xf32> to vector<16x8xf32>
    %19 = arith.mulf %16, %18 : vector<16x8xf32>
    %c0_7 = arith.constant 0 : index
    %c0_8 = arith.constant 0 : index
    %20 = vector.load %arg3[%c0_7, %c0_8] : memref<1x8xf32, #tpu.memory_space<vmem>>, vector<1x8xf32>
    %21 = vector.broadcast %20 : vector<1x8xf32> to vector<16x8xf32>
    %22 = arith.addf %19, %21 : vector<16x8xf32>
    %c0_9 = arith.constant 0 : index
    %c0_10 = arith.constant 0 : index
    %23 = vector.load %arg4[%c0_9, %c0_10] : memref<16x8xf32, #tpu.memory_space<vmem>>, vector<16x8xf32>
    tpu.vector_store %arg4[%c0_9, %c0_10], %22 {strides = array<i32>} : memref<16x8xf32, #tpu.memory_space<vmem>>, vector<16x8xf32>,
    return
  }
  func.func @transform_0(%arg0: i32) -> (i32, i32) {
    %c0_i32 = arith.constant 0 : i32
    %c0_i32_0 = arith.constant 0 : i32
    return %arg0, %c0_i32 : i32, i32
  }
  func.func @transform_1(%arg0: i32) -> (i32, i32) {
    %c0_i32 = arith.constant 0 : i32
    %c0_i32_0 = arith.constant 0 : i32
    %c0_i32_1 = arith.constant 0 : i32
    return %c0_i32, %c0_i32_0 : i32, i32
  }
  func.func @transform_2(%arg0: i32) -> (i32, i32) {
    %c0_i32 = arith.constant 0 : i32
    %c0_i32_0 = arith.constant 0 : i32
    %c0_i32_1 = arith.constant 0 : i32
    return %c0_i32, %c0_i32_0 : i32, i32
  }
  func.func @transform_3(%arg0: i32) -> (i32, i32) {
    %c0_i32 = arith.constant 0 : i32
    %c0_i32_0 = arith.constant 0 : i32
    return %arg0, %c0_i32 : i32, i32
  }
}

module attributes {stable_mosaic.version = 11 : i64} {
  func.func @_dense_kernel(%arg0: i32, %arg1: memref<16x8xf32, #tpu.memory_space<vmem>>, %arg2: memref<8x32xf32, #tpu.memory_space<vmem>>, %arg3: memref<16x32xf32, #tpu.memory_space<vmem>>) attributes {dimension_semantics = [#tpu.dimension_semantics<parallel>], iteration_bounds = array<i64: 5>, scalar_prefetch = 0 : i64, scratch_operands = 0 : i64, tpu.core_type = #tpu.core_type<tc>, window_params = [{transform_indices = @transform_0, window_bounds = array<i64: 16, 8>}, {pipeline_mode = #tpu.pipeline_mode<synchronous>, transform_indices = @transform_1, window_bounds = array<i64: 8, 32>}, {transform_indices = @transform_2, window_bounds = array<i64: 16, 32>}]} {
    %c0 = arith.constant 0 : index
    %c0_0 = arith.constant 0 : index
    %0 = vector.load %arg1[%c0, %c0_0] : memref<16x8xf32, #tpu.memory_space<vmem>>, vector<16x8xf32>
    %c0_1 = arith.constant 0 : index
    %c0_2 = arith.constant 0 : index
    %1 = vector.load %arg2[%c0_1, %c0_2] : memref<8x32xf32, #tpu.memory_space<vmem>>, vector<8x32xf32>
    %cst = arith.constant dense<0.000000e+00> : vector<16x32xf32>
    %2 = tpu.matmul %0, %1, %cst {dimension_numbers = #tpu.dot_dimension_numbers<[1], [0], [0], [1], [0, 0, 1, 1], [], []>} : vector<16x8xf32>, vector<8x32xf32>, vector<16x32xf32> -> vector<16x32xf32>
    %cst_3 = arith.constant 5.000000e-01 : f32
    %3 = vector.broadcast %cst_3 : f32 to vector<16x32xf32>
    %4 = arith.mulf %3, %2 : vector<16x32xf32>
    %5 = arith.mulf %2, %2 : vector<16x32xf32>
    %6 = arith.mulf %5, %2 : vector<16x32xf32>
    %cst_4 = arith.constant 4.471500e-02 : f32
    %7 = vector.broadcast %cst_4 : f32 to vector<16x32xf32>
    %8 = arith.mulf %7, %6 : vector<16x32xf32>
    %9 = arith.addf %2, %8 : vector<16x32xf32>
    %cst_5 = arith.constant 0.797884583 : f32
    %10 = vector.broadcast %cst_5 : f32 to vector<16x32xf32>
    %11 = arith.mulf %10, %9 : vector<16x32xf32>
    %12 = math.tanh %11 : vector<16x32xf32>
    %cst_6 = arith.constant 1.000000e+00 : f32
    %13 = vector.broadcast %cst_6 : f32 to vector<16x32xf32>
    %14 = arith.addf %13, %12 : vector<16x32xf32>
    %15 = arith.mulf %4, %14 : vector<16x32xf32>
    %c0_7 = arith.constant 0 : index
    %c0_8 = arith.constant 0 : index
    %16 = vector.load %arg3[%c0_7, %c0_8] : memref<16x32xf32, #tpu.memory_space<vmem>>, vector<16x32xf32>
    tpu.vector_store %arg3[%c0_7, %c0_8], %15 {strides = array<i32>} : memref<16x32xf32, #tpu.memory_space<vmem>>, vector<16x32xf32>,
    return
  }
  func.func @transform_0(%arg0: i32) -> (i32, i32) {
    %c0_i32 = arith.constant 0 : i32
    %c0_i32_0 = arith.constant 0 : i32
    return %arg0, %c0_i32 : i32, i32
  }
  func.func @transform_1(%arg0: i32) -> (i32, i32) {
    %c0_i32 = arith.constant 0 : i32
    %c0_i32_0 = arith.constant 0 : i32
    %c0_i32_1 = arith.constant 0 : i32
    return %c0_i32, %c0_i32_0 : i32, i32
  }
  func.func @transform_2(%arg0: i32) -> (i32, i32) {
    %c0_i32 = arith.constant 0 : i32
    %c0_i32_0 = arith.constant 0 : i32
    return %arg0, %c0_i32 : i32, i32
  }
}

module attributes {stable_mosaic.version = 11 : i64} {
  func.func @_dwconv3x3_kernel(%arg0: i32, %arg1: memref<1x10x7x32xf32, #tpu.memory_space<vmem>>, %arg2: memref<3x3x32xf32, #tpu.memory_space<vmem>>, %arg3: memref<1x8x5x32xf32, #tpu.memory_space<vmem>>) attributes {dimension_semantics = [#tpu.dimension_semantics<parallel>], iteration_bounds = array<i64: 2>, scalar_prefetch = 0 : i64, scratch_operands = 0 : i64, tpu.core_type = #tpu.core_type<tc>, window_params = [{transform_indices = @transform_0, window_bounds = array<i64: 1, 10, 7, 32>}, {pipeline_mode = #tpu.pipeline_mode<synchronous>, transform_indices = @transform_1, window_bounds = array<i64: 3, 3, 32>}, {transform_indices = @transform_2, window_bounds = array<i64: 1, 8, 5, 32>}]} {
    %c0 = arith.constant 0 : index
    %c0_0 = arith.constant 0 : index
    %c0_1 = arith.constant 0 : index
    %c0_2 = arith.constant 0 : index
    %0 = vector.load %arg1[%c0, %c0_0, %c0_1, %c0_2] : memref<1x10x7x32xf32, #tpu.memory_space<vmem>>, vector<1x10x7x32xf32>
    %1 = vector.shape_cast %0 : vector<1x10x7x32xf32> to vector<10x7x32xf32>
    %c0_3 = arith.constant 0 : index
    %c0_4 = arith.constant 0 : index
    %c0_5 = arith.constant 0 : index
    %2 = vector.load %arg2[%c0_3, %c0_4, %c0_5] : memref<3x3x32xf32, #tpu.memory_space<vmem>>, vector<3x3x32xf32>
    %cst = arith.constant 0.000000e+00 : f32
    %3 = vector.broadcast %cst : f32 to vector<8x5x32xf32>
    %4 = vector.extract_strided_slice %1 {offsets = [0, 0, 0], sizes = [8, 5, 32], strides = [1, 1, 1]} : vector<10x7x32xf32> to vector<8x5x32xf32>
    %5 = vector.extract_strided_slice %2 {offsets = [0, 0, 0], sizes = [1, 1, 32], strides = [1, 1, 1]} : vector<3x3x32xf32> to vector<1x1x32xf32>
    %6 = vector.shape_cast %5 : vector<1x1x32xf32> to vector<32xf32>
    %7 = vector.shape_cast %6 : vector<32xf32> to vector<1x1x32xf32>
    %8 = vector.broadcast %7 : vector<1x1x32xf32> to vector<8x5x32xf32>
    %9 = arith.mulf %4, %8 : vector<8x5x32xf32>
    %10 = arith.addf %3, %9 : vector<8x5x32xf32>
    %11 = vector.extract_strided_slice %1 {offsets = [0, 1, 0], sizes = [8, 5, 32], strides = [1, 1, 1]} : vector<10x7x32xf32> to vector<8x5x32xf32>
    %12 = vector.extract_strided_slice %2 {offsets = [0, 1, 0], sizes = [1, 1, 32], strides = [1, 1, 1]} : vector<3x3x32xf32> to vector<1x1x32xf32>
    %13 = vector.shape_cast %12 : vector<1x1x32xf32> to vector<32xf32>
    %14 = vector.shape_cast %13 : vector<32xf32> to vector<1x1x32xf32>
    %15 = vector.broadcast %14 : vector<1x1x32xf32> to vector<8x5x32xf32>
    %16 = arith.mulf %11, %15 : vector<8x5x32xf32>
    %17 = arith.addf %10, %16 : vector<8x5x32xf32>
    %18 = vector.extract_strided_slice %1 {offsets = [0, 2, 0], sizes = [8, 5, 32], strides = [1, 1, 1]} : vector<10x7x32xf32> to vector<8x5x32xf32>
    %19 = vector.extract_strided_slice %2 {offsets = [0, 2, 0], sizes = [1, 1, 32], strides = [1, 1, 1]} : vector<3x3x32xf32> to vector<1x1x32xf32>
    %20 = vector.shape_cast %19 : vector<1x1x32xf32> to vector<32xf32>
    %21 = vector.shape_cast %20 : vector<32xf32> to vector<1x1x32xf32>
    %22 = vector.broadcast %21 : vector<1x1x32xf32> to vector<8x5x32xf32>
    %23 = arith.mulf %18, %22 : vector<8x5x32xf32>
    %24 = arith.addf %17, %23 : vector<8x5x32xf32>
    %25 = vector.extract_strided_slice %1 {offsets = [1, 0, 0], sizes = [8, 5, 32], strides = [1, 1, 1]} : vector<10x7x32xf32> to vector<8x5x32xf32>
    %26 = vector.extract_strided_slice %2 {offsets = [1, 0, 0], sizes = [1, 1, 32], strides = [1, 1, 1]} : vector<3x3x32xf32> to vector<1x1x32xf32>
    %27 = vector.shape_cast %26 : vector<1x1x32xf32> to vector<32xf32>
    %28 = vector.shape_cast %27 : vector<32xf32> to vector<1x1x32xf32>
    %29 = vector.broadcast %28 : vector<1x1x32xf32> to vector<8x5x32xf32>
    %30 = arith.mulf %25, %29 : vector<8x5x32xf32>
    %31 = arith.addf %24, %30 : vector<8x5x32xf32>
    %32 = vector.extract_strided_slice %1 {offsets = [1, 1, 0], sizes = [8, 5, 32], strides = [1, 1, 1]} : vector<10x7x32xf32> to vector<8x5x32xf32>
    %33 = vector.extract_strided_slice %2 {offsets = [1, 1, 0], sizes = [1, 1, 32], strides = [1, 1, 1]} : vector<3x3x32xf32> to vector<1x1x32xf32>
    %34 = vector.shape_cast %33 : vector<1x1x32xf32> to vector<32xf32>
    %35 = vector.shape_cast %34 : vector<32xf32> to vector<1x1x32xf32>
    %36 = vector.broadcast %35 : vector<1x1x32xf32> to vector<8x5x32xf32>
    %37 = arith.mulf %32, %36 : vector<8x5x32xf32>
    %38 = arith.addf %31, %37 : vector<8x5x32xf32>
    %39 = vector.extract_strided_slice %1 {offsets = [1, 2, 0], sizes = [8, 5, 32], strides = [1, 1, 1]} : vector<10x7x32xf32> to vector<8x5x32xf32>
    %40 = vector.extract_strided_slice %2 {offsets = [1, 2, 0], sizes = [1, 1, 32], strides = [1, 1, 1]} : vector<3x3x32xf32> to vector<1x1x32xf32>
    %41 = vector.shape_cast %40 : vector<1x1x32xf32> to vector<32xf32>
    %42 = vector.shape_cast %41 : vector<32xf32> to vector<1x1x32xf32>
    %43 = vector.broadcast %42 : vector<1x1x32xf32> to vector<8x5x32xf32>
    %44 = arith.mulf %39, %43 : vector<8x5x32xf32>
    %45 = arith.addf %38, %44 : vector<8x5x32xf32>
    %46 = vector.extract_strided_slice %1 {offsets = [2, 0, 0], sizes = [8, 5, 32], strides = [1, 1, 1]} : vector<10x7x32xf32> to vector<8x5x32xf32>
    %47 = vector.extract_strided_slice %2 {offsets = [2, 0, 0], sizes = [1, 1, 32], strides = [1, 1, 1]} : vector<3x3x32xf32> to vector<1x1x32xf32>
    %48 = vector.shape_cast %47 : vector<1x1x32xf32> to vector<32xf32>
    %49 = vector.shape_cast %48 : vector<32xf32> to vector<1x1x32xf32>
    %50 = vector.broadcast %49 : vector<1x1x32xf32> to vector<8x5x32xf32>
    %51 = arith.mulf %46, %50 : vector<8x5x32xf32>
    %52 = arith.addf %45, %51 : vector<8x5x32xf32>
    %53 = vector.extract_strided_slice %1 {offsets = [2, 1, 0], sizes = [8, 5, 32], strides = [1, 1, 1]} : vector<10x7x32xf32> to vector<8x5x32xf32>
    %54 = vector.extract_strided_slice %2 {offsets = [2, 1, 0], sizes = [1, 1, 32], strides = [1, 1, 1]} : vector<3x3x32xf32> to vector<1x1x32xf32>
    %55 = vector.shape_cast %54 : vector<1x1x32xf32> to vector<32xf32>
    %56 = vector.shape_cast %55 : vector<32xf32> to vector<1x1x32xf32>
    %57 = vector.broadcast %56 : vector<1x1x32xf32> to vector<8x5x32xf32>
    %58 = arith.mulf %53, %57 : vector<8x5x32xf32>
    %59 = arith.addf %52, %58 : vector<8x5x32xf32>
    %60 = vector.extract_strided_slice %1 {offsets = [2, 2, 0], sizes = [8, 5, 32], strides = [1, 1, 1]} : vector<10x7x32xf32> to vector<8x5x32xf32>
    %61 = vector.extract_strided_slice %2 {offsets = [2, 2, 0], sizes = [1, 1, 32], strides = [1, 1, 1]} : vector<3x3x32xf32> to vector<1x1x32xf32>
    %62 = vector.shape_cast %61 : vector<1x1x32xf32> to vector<32xf32>
    %63 = vector.shape_cast %62 : vector<32xf32> to vector<1x1x32xf32>
    %64 = vector.broadcast %63 : vector<1x1x32xf32> to vector<8x5x32xf32>
    %65 = arith.mulf %60, %64 : vector<8x5x32xf32>
    %66 = arith.addf %59, %65 : vector<8x5x32xf32>
    %cst_6 = arith.constant 5.000000e-01 : f32
    %67 = vector.broadcast %cst_6 : f32 to vector<8x5x32xf32>
    %68 = arith.mulf %67, %66 : vector<8x5x32xf32>
    %69 = arith.mulf %66, %66 : vector<8x5x32xf32>
    %70 = arith.mulf %69, %66 : vector<8x5x32xf32>
    %cst_7 = arith.constant 4.471500e-02 : f32
    %71 = vector.broadcast %cst_7 : f32 to vector<8x5x32xf32>
    %72 = arith.mulf %71, %70 : vector<8x5x32xf32>
    %73 = arith.addf %66, %72 : vector<8x5x32xf32>
    %cst_8 = arith.constant 0.797884583 : f32
    %74 = vector.broadcast %cst_8 : f32 to vector<8x5x32xf32>
    %75 = arith.mulf %74, %73 : vector<8x5x32xf32>
    %76 = math.tanh %75 : vector<8x5x32xf32>
    %cst_9 = arith.constant 1.000000e+00 : f32
    %77 = vector.broadcast %cst_9 : f32 to vector<8x5x32xf32>
    %78 = arith.addf %77, %76 : vector<8x5x32xf32>
    %79 = arith.mulf %68, %78 : vector<8x5x32xf32>
    %80 = vector.shape_cast %79 : vector<8x5x32xf32> to vector<1x8x5x32xf32>
    %c0_10 = arith.constant 0 : index
    %c0_11 = arith.constant 0 : index
    %c0_12 = arith.constant 0 : index
    %c0_13 = arith.constant 0 : index
    %81 = vector.load %arg3[%c0_10, %c0_11, %c0_12, %c0_13] : memref<1x8x5x32xf32, #tpu.memory_space<vmem>>, vector<1x8x5x32xf32>
    tpu.vector_store %arg3[%c0_10, %c0_11, %c0_12, %c0_13], %80 {strides = array<i32>} : memref<1x8x5x32xf32, #tpu.memory_space<vmem>>, vector<1x8x5x32xf32>,
    return
  }
  func.func @transform_0(%arg0: i32) -> (i32, i32, i32, i32) {
    %c0_i32 = arith.constant 0 : i32
    %c0_i32_0 = arith.constant 0 : i32
    %c0_i32_1 = arith.constant 0 : i32
    %c0_i32_2 = arith.constant 0 : i32
    return %arg0, %c0_i32, %c0_i32_0, %c0_i32_1 : i32, i32, i32, i32
  }
  func.func @transform_1(%arg0: i32) -> (i32, i32, i32) {
    %c0_i32 = arith.constant 0 : i32
    %c0_i32_0 = arith.constant 0 : i32
    %c0_i32_1 = arith.constant 0 : i32
    %c0_i32_2 = arith.constant 0 : i32
    return %c0_i32, %c0_i32_0, %c0_i32_1 : i32, i32, i32
  }
  func.func @transform_2(%arg0: i32) -> (i32, i32, i32, i32) {
    %c0_i32 = arith.constant 0 : i32
    %c0_i32_0 = arith.constant 0 : i32
    %c0_i32_1 = arith.constant 0 : i32
    %c0_i32_2 = arith.constant 0 : i32
    return %arg0, %c0_i32, %c0_i32_0, %c0_i32_1 : i32, i32, i32, i32
  }
}

module attributes {stable_mosaic.version = 11 : i64} {
  func.func @_dense_kernel(%arg0: i32, %arg1: memref<16x32xf32, #tpu.memory_space<vmem>>, %arg2: memref<32x8xf32, #tpu.memory_space<vmem>>, %arg3: memref<16x8xf32, #tpu.memory_space<vmem>>) attributes {dimension_semantics = [#tpu.dimension_semantics<parallel>], iteration_bounds = array<i64: 5>, scalar_prefetch = 0 : i64, scratch_operands = 0 : i64, tpu.core_type = #tpu.core_type<tc>, window_params = [{transform_indices = @transform_0, window_bounds = array<i64: 16, 32>}, {pipeline_mode = #tpu.pipeline_mode<synchronous>, transform_indices = @transform_1, window_bounds = array<i64: 32, 8>}, {transform_indices = @transform_2, window_bounds = array<i64: 16, 8>}]} {
    %c0 = arith.constant 0 : index
    %c0_0 = arith.constant 0 : index
    %0 = vector.load %arg1[%c0, %c0_0] : memref<16x32xf32, #tpu.memory_space<vmem>>, vector<16x32xf32>
    %c0_1 = arith.constant 0 : index
    %c0_2 = arith.constant 0 : index
    %1 = vector.load %arg2[%c0_1, %c0_2] : memref<32x8xf32, #tpu.memory_space<vmem>>, vector<32x8xf32>
    %cst = arith.constant dense<0.000000e+00> : vector<16x8xf32>
    %2 = tpu.matmul %0, %1, %cst {dimension_numbers = #tpu.dot_dimension_numbers<[1], [0], [0], [1], [0, 0, 1, 1], [], []>} : vector<16x32xf32>, vector<32x8xf32>, vector<16x8xf32> -> vector<16x8xf32>
    %c0_3 = arith.constant 0 : index
    %c0_4 = arith.constant 0 : index
    %3 = vector.load %arg3[%c0_3, %c0_4] : memref<16x8xf32, #tpu.memory_space<vmem>>, vector<16x8xf32>
    tpu.vector_store %arg3[%c0_3, %c0_4], %2 {strides = array<i32>} : memref<16x8xf32, #tpu.memory_space<vmem>>, vector<16x8xf32>,
    return
  }
  func.func @transform_0(%arg0: i32) -> (i32, i32) {
    %c0_i32 = arith.constant 0 : i32
    %c0_i32_0 = arith.constant 0 : i32
    return %arg0, %c0_i32 : i32, i32
  }
  func.func @transform_1(%arg0: i32) -> (i32, i32) {
    %c0_i32 = arith.constant 0 : i32
    %c0_i32_0 = arith.constant 0 : i32
    %c0_i32_1 = arith.constant 0 : i32
    return %c0_i32, %c0_i32_0 : i32, i32
  }
  func.func @transform_2(%arg0: i32) -> (i32, i32) {
    %c0_i32 = arith.constant 0 : i32
    %c0_i32_0 = arith.constant 0 : i32
    return %arg0, %c0_i32 : i32, i32
  }
}

module attributes {stable_mosaic.version = 11 : i64} {
  func.func @_recombine_kernel(%arg0: i32, %arg1: memref<8x40xf32, #tpu.memory_space<vmem>>, %arg2: memref<8x40xf32, #tpu.memory_space<vmem>>, %arg3: memref<8x40xf32, #tpu.memory_space<vmem>>, %arg4: memref<8x40xf32, #tpu.memory_space<vmem>>, %arg5: memref<8x40xf32, #tpu.memory_space<vmem>>, %arg6: memref<8x40xf32, #tpu.memory_space<vmem>>) attributes {dimension_semantics = [#tpu.dimension_semantics<parallel>], iteration_bounds = array<i64: 2>, scalar_prefetch = 0 : i64, scratch_operands = 0 : i64, tpu.core_type = #tpu.core_type<tc>, window_params = [{transform_indices = @transform_0, window_bounds = array<i64: 8, 40>}, {transform_indices = @transform_1, window_bounds = array<i64: 8, 40>}, {transform_indices = @transform_2, window_bounds = array<i64: 8, 40>}, {transform_indices = @transform_3, window_bounds = array<i64: 8, 40>}, {transform_indices = @transform_4, window_bounds = array<i64: 8, 40>}, {transform_indices = @transform_5, window_bounds = array<i64: 8, 40>}]} {
    %c0 = arith.constant 0 : index
    %c0_0 = arith.constant 0 : index
    %0 = vector.load %arg1[%c0, %c0_0] : memref<8x40xf32, #tpu.memory_space<vmem>>, vector<8x40xf32>
    %c0_1 = arith.constant 0 : index
    %c0_2 = arith.constant 0 : index
    %1 = vector.load %arg2[%c0_1, %c0_2] : memref<8x40xf32, #tpu.memory_space<vmem>>, vector<8x40xf32>
    %2 = arith.addf %0, %1 : vector<8x40xf32>
    %c0_3 = arith.constant 0 : index
    %c0_4 = arith.constant 0 : index
    %3 = vector.load %arg3[%c0_3, %c0_4] : memref<8x40xf32, #tpu.memory_space<vmem>>, vector<8x40xf32>
    %c0_5 = arith.constant 0 : index
    %c0_6 = arith.constant 0 : index
    %4 = vector.load %arg4[%c0_5, %c0_6] : memref<8x40xf32, #tpu.memory_space<vmem>>, vector<8x40xf32>
    %5 = arith.addf %3, %4 : vector<8x40xf32>
    %6 = math.cos %5 : vector<8x40xf32>
    %7 = arith.mulf %2, %6 : vector<8x40xf32>
    %cst = arith.constant 9.99999993E-9 : f32
    %8 = vector.broadcast %cst : f32 to vector<8x40xf32>
    %9 = arith.addf %7, %8 : vector<8x40xf32>
    %c0_7 = arith.constant 0 : index
    %c0_8 = arith.constant 0 : index
    %10 = vector.load %arg5[%c0_7, %c0_8] : memref<8x40xf32, #tpu.memory_space<vmem>>, vector<8x40xf32>
    tpu.vector_store %arg5[%c0_7, %c0_8], %9 {strides = array<i32>} : memref<8x40xf32, #tpu.memory_space<vmem>>, vector<8x40xf32>,
    %11 = math.sin %5 : vector<8x40xf32>
    %12 = arith.mulf %2, %11 : vector<8x40xf32>
    %cst_9 = arith.constant 9.99999993E-9 : f32
    %13 = vector.broadcast %cst_9 : f32 to vector<8x40xf32>
    %14 = arith.addf %12, %13 : vector<8x40xf32>
    %c0_10 = arith.constant 0 : index
    %c0_11 = arith.constant 0 : index
    %15 = vector.load %arg6[%c0_10, %c0_11] : memref<8x40xf32, #tpu.memory_space<vmem>>, vector<8x40xf32>
    tpu.vector_store %arg6[%c0_10, %c0_11], %14 {strides = array<i32>} : memref<8x40xf32, #tpu.memory_space<vmem>>, vector<8x40xf32>,
    return
  }
  func.func @transform_0(%arg0: i32) -> (i32, i32) {
    %c0_i32 = arith.constant 0 : i32
    %c0_i32_0 = arith.constant 0 : i32
    return %arg0, %c0_i32 : i32, i32
  }
  func.func @transform_1(%arg0: i32) -> (i32, i32) {
    %c0_i32 = arith.constant 0 : i32
    %c0_i32_0 = arith.constant 0 : i32
    return %arg0, %c0_i32 : i32, i32
  }
  func.func @transform_2(%arg0: i32) -> (i32, i32) {
    %c0_i32 = arith.constant 0 : i32
    %c0_i32_0 = arith.constant 0 : i32
    return %arg0, %c0_i32 : i32, i32
  }
  func.func @transform_3(%arg0: i32) -> (i32, i32) {
    %c0_i32 = arith.constant 0 : i32
    %c0_i32_0 = arith.constant 0 : i32
    return %arg0, %c0_i32 : i32, i32
  }
  func.func @transform_4(%arg0: i32) -> (i32, i32) {
    %c0_i32 = arith.constant 0 : i32
    %c0_i32_0 = arith.constant 0 : i32
    return %arg0, %c0_i32 : i32, i32
  }
  func.func @transform_5(%arg0: i32) -> (i32, i32) {
    %c0_i32 = arith.constant 0 : i32
    %c0_i32_0 = arith.constant 0 : i32
    return %arg0, %c0_i32 : i32, i32
  }
}

</mosaic_0001>

<llo_original>
// kernel: fwd.21
$region0: #{fwd.21}
  #allocation0 [shape = 'u32[]', space=smem, size = 0x4, offset = 0x4, fixed_abs, tag = 'smem constant byte address 0x4 - core index']
  #allocation1 [shape = 'u32[144,128]{1,0:T(1,128)}', space=vmem, size = 0x12000, scoped, tag = 'internal scratch']
  %s0 = inlined_call_operand.vmem [shape: f32[128,8], index: 0, kind: input, shape index: {}]
  %s1 = inlined_call_operand.vmem [shape: f32[8,8], index: 1, kind: input, shape index: {}]
  %s2 = inlined_call_operand.vmem [shape: f32[1,8], index: 2, kind: input, shape index: {}]
  %s3 = inlined_call_operand.vmem [shape: f32[128,8], index: 3, kind: output, shape index: {}]
  %s4 = sld [smem:[#allocation0]]
  $region45: #{fwd.21} parent=0
    _
  %s6 = ssub.s32 1, %s4
  %s7 = scalar_select 0, %s6, %s4
  loop: start=0, step=1, limit=4
  $region2: #{fwd.21} parent=0 // loop_pre_header
    _
  $region3: #{fwd.21} parent=0 // loop_header
    %s9 = sphi 0, %s13
    %p10 = scmp.ge.s32.totalorder %s9, 4
    %s19 = sphi 0, %s21
    %s22 = sphi 0, %s19
    %s23 = sphi 0, %s22
    %s39 = sphi 0, %s23
    %s43 = sphi 0, %s43
    %s45 = sphi 0, %s43
    %s46 = sphi 0, %s45
    %s60 = sphi 0, %s46
    %s64 = sphi 0, %s64
    %s66 = sphi 0, %s64
    %s67 = sphi 0, %s66
    %s81 = sphi 0, %s67
    %s87 = sphi 0, %s89
    %s90 = sphi 0, %s87
    %s91 = sphi 0, %s90
    %s107 = sphi 0, %s91
  $region4: #{fwd.21} parent=0 // loop_header_branch
    %12 = sbr.rel (%p10) target = $region8
  $region5: #{fwd.21} parent=0 // loop_body
    %s14 = ssub.s32 %s9, 1
    %s15 = ssub.s32 %s9, 2
    %s16 = sadd.s32 %s9, 1
    %s17 = ssub.s32 %s9, %s16
    %p18 = scmp.eq.s32.totalorder %s17, 0
    %s20 = sadd.s32 %s19, 1
    %s21 = scalar_select %p18, %s19, %s20
    %p24 = pneg %p18
    %p25 = scmp.eq.s32.totalorder %s9, 1
    %p26 = por %p24, %p25
    %p27 = scmp.ne.s32.totalorder %s19, %s22
    %p28 = scmp.eq.s32.totalorder %s9, 0
    %p29 = por %p27, %p28
    %p30 = scmp.ne.s32.totalorder %s19, %s22
    %p31 = scmp.eq.s32.totalorder %s14, 1
    %p32 = por %p30, %p31
    %p33 = scmp.ne.s32.totalorder %s22, %s23
    %p34 = scmp.eq.s32.totalorder %s14, 0
    %p35 = por %p33, %p34
    %p36 = scmp.ne.s32.totalorder %s22, %s23
    %p37 = scmp.eq.s32.totalorder %s15, 1
    %p38 = por %p36, %p37
    %p40 = scmp.ne.s32.totalorder %s23, %s39
    %p41 = scmp.eq.s32.totalorder %s15, 0
    %p42 = por %p40, %p41
    %s44 = sadd.s32 %s43, 1
    %p47 = scmp.eq.s32.totalorder %s9, 1
    %p48 = scmp.ne.s32.totalorder %s43, %s45
    %p49 = scmp.eq.s32.totalorder %s9, 0
    %p50 = por %p48, %p49
    %p51 = scmp.ne.s32.totalorder %s43, %s45
    %p52 = scmp.eq.s32.totalorder %s14, 1
    %p53 = por %p51, %p52
    %p54 = scmp.ne.s32.totalorder %s45, %s46
    %p55 = scmp.eq.s32.totalorder %s14, 0
    %p56 = por %p54, %p55
    %p57 = scmp.ne.s32.totalorder %s45, %s46
    %p58 = scmp.eq.s32.totalorder %s15, 1
    %p59 = por %p57, %p58
    %p61 = scmp.ne.s32.totalorder %s46, %s60
    %p62 = scmp.eq.s32.totalorder %s15, 0
    %p63 = por %p61, %p62
    %s65 = sadd.s32 %s64, 1
    %p68 = scmp.eq.s32.totalorder %s9, 1
    %p69 = scmp.ne.s32.totalorder %s64, %s66
    %p70 = scmp.eq.s32.totalorder %s9, 0
    %p71 = por %p69, %p70
    %p72 = scmp.ne.s32.totalorder %s64, %s66
    %p73 = scmp.eq.s32.totalorder %s14, 1
    %p74 = por %p72, %p73
    %p75 = scmp.ne.s32.totalorder %s66, %s67
    %p76 = scmp.eq.s32.totalorder %s14, 0
    %p77 = por %p75, %p76
    %p78 = scmp.ne.s32.totalorder %s66, %s67
    %p79 = scmp.eq.s32.totalorder %s15, 1
    %p80 = por %p78, %p79
    %p82 = scmp.ne.s32.totalorder %s67, %s81
    %p83 = scmp.eq.s32.totalorder %s15, 0
    %p84 = por %p82, %p83
    %s85 = ssub.s32 %s9, %s16
    %p86 = scmp.eq.s32.totalorder %s85, 0
    %s88 = sadd.s32 %s87, 1
    %s89 = scalar_select %p86, %s87, %s88
    %p92 = pneg %p86
    %p93 = scmp.eq.s32.totalorder %s9, 1
    %p94 = por %p92, %p93
    %p95 = scmp.ne.s32.totalorder %s87, %s90
    %p96 = scmp.eq.s32.totalorder %s9, 0
    %p97 = por %p95, %p96
    %p98 = scmp.ne.s32.totalorder %s87, %s90
    %p99 = scmp.eq.s32.totalorder %s14, 1
    %p100 = por %p98, %p99
    %p101 = scmp.ne.s32.totalorder %s90, %s91
    %p102 = scmp.eq.s32.totalorder %s14, 0
    %p103 = por %p101, %p102
    %p104 = scmp.ne.s32.totalorder %s90, %s91
    %p105 = scmp.eq.s32.totalorder %s15, 1
    %p106 = por %p104, %p105
    %p108 = scmp.ne.s32.totalorder %s91, %s107
    %p109 = scmp.eq.s32.totalorder %s15, 0
    %p110 = por %p108, %p109
    %p111 = scmp.le.s32.totalorder 1, %s9
    %p112 = scmp.lt.s32.totalorder %s9, 3
    %p113 = pnand %p111, %p112
    %p114 = pneg %p113
    // Predicated region
    $region9: #{fwd.21} parent=5 // pred_check
      _
    $region10: #{fwd.21} parent=5 // pred_check_branch
      %116 = sbr.rel (%p113) target = $region12
    $region11: #{fwd.21} parent=5 // pred_region
      %s117 = ssub.s32 %s9, 1
      // Predicated region
      $region13: #{fwd.21} parent=11 // pred_check
        %p118 = pneg %p56
      $region14: #{fwd.21} parent=11 // pred_check_branch
        %120 = sbr.rel (%p118) target = $region16
      $region15: #{fwd.21} parent=11 // pred_region
        _
      $region16: #{fwd.21} parent=11 // pred_fallthru
        _
      // Predicated region
      $region17: #{fwd.21} parent=11 // pred_check
        %p121 = pneg %p77
      $region18: #{fwd.21} parent=11 // pred_check_branch
        %123 = sbr.rel (%p121) target = $region20
      $region19: #{fwd.21} parent=11 // pred_region
        _
      $region20: #{fwd.21} parent=11 // pred_fallthru
        _
    $region12: #{fwd.21} parent=5 // pred_fallthru
      _
    %p124 = scmp.lt.s32.totalorder %s9, 2
    // Predicated region
    $region21: #{fwd.21} parent=5 // pred_check
      %p125 = pneg %p124
    $region22: #{fwd.21} parent=5 // pred_check_branch
      %127 = sbr.rel (%p125) target = $region24
    $region23: #{fwd.21} parent=5 // pred_region
      // Predicated region
      $region25: #{fwd.21} parent=23 // pred_check
        %p128 = pneg %p29
      $region26: #{fwd.21} parent=23 // pred_check_branch
        %130 = sbr.rel (%p128) target = $region28
      $region27: #{fwd.21} parent=23 // pred_region
        %s131 = smul.u32 8, %s9
        %p132 = scmp.lt.s32.totalorder %s131, 15
        %s133 = scalar_select %p132, %s131, 15
        %s134 = smul.addr %s133, 8
        %s135 = scalar_lea.vmem %s0, %s134
        %s136 = smul.u32 8, %s9
      $region28: #{fwd.21} parent=23 // pred_fallthru
        _
    $region24: #{fwd.21} parent=5 // pred_fallthru
      _
    %p137 = scmp.le.s32.totalorder 1, %s9
    %p138 = scmp.lt.s32.totalorder %s9, 3
    %p139 = pnand %p137, %p138
    %p140 = pneg %p139
    // Predicated region
    $region29: #{fwd.21} parent=5 // pred_check
      _
    $region30: #{fwd.21} parent=5 // pred_check_branch
      %142 = sbr.rel (%p139) target = $region32
    $region31: #{fwd.21} parent=5 // pred_region
      %s143 = ssub.s32 %s9, 1
      %s144 = smul.u32 8, %s14
      %p145 = scmp.lt.s32.totalorder %s144, 15
      %s146 = scalar_select %p145, %s144, 15
      %s147 = smul.addr %s146, 8
      %s148 = scalar_lea.vmem %s0, %s147
      %p149 = pneg %p35
      %p150 = pneg %p32
      %p151 = pneg %p56
      %p152 = pneg %p53
      %p153 = pneg %p77
      %p154 = pneg %p74
      %p155 = pneg %p103
      %p156 = pneg %p100
      %s157 = smul.u32 8, %s14
      %p158 = scmp.lt.s32.totalorder %s157, 15
      %s159 = scalar_select %p158, %s157, 15
      %s160 = smul.addr %s159, 8
      %s161 = scalar_lea.vmem %s3, %s160
      %s162 = smul.u32 8, %s14
      %p163 = scmp.lt.s32.totalorder %s162, 15
      %s164 = scalar_select %p163, %s162, 15
      %s165 = smul.addr %s164, 8
      %s166 = scalar_lea.vmem %s0, %s165
      %s167 = smul.u32 8, %s14
      %s168 = smul.u32 8, %s14
      %p169 = scmp.lt.s32.totalorder %s168, 15
      %s170 = scalar_select %p169, %s168, 15
      %s171 = smul.addr %s170, 8
      %s172 = scalar_lea.vmem %s3, %s171
      %s173 = smul.u32 8, %s14
      %v174 = vld [vmem:[%s166] sm:$0xff]
      %v175 = vld [vmem:[%s166 + $0x8] sm:$0xff]
      %v176 = vld [vmem:[%s166 + $0x10] sm:$0xff]
      %v177 = vld [vmem:[%s166 + $0x18] sm:$0xff]
      %v178 = vld [vmem:[%s166 + $0x20] sm:$0xff]
      %v179 = vld [vmem:[%s166 + $0x28] sm:$0xff]
      %v180 = vld [vmem:[%s166 + $0x30] sm:$0xff]
      %v181 = vld [vmem:[%s166 + $0x38] sm:$0xff]
      %v182 = vld [vmem:[%s1] sm:$0xff]
      %v183 = vld [vmem:[%s2] sm:$0x1]
      %v185 = vlaneseq
      %v186 = vshrl.u32 %v185, 7
      %v187 = vsub.s32 0, %v186
      %v188 = vrot.slane %v183, %v187
      %vm190 = vcmask 64512
      %v192 = vsel %vm190, %v174, 0
      %v195 = vsel %vm190, %v175, 0
      %v198 = vsel %vm190, %v176, 0
      %v201 = vsel %vm190, %v177, 0
      %v204 = vsel %vm190, %v178, 0
      %v207 = vsel %vm190, %v179, 0
      %v210 = vsel %vm190, %v180, 0
      %v213 = vsel %vm190, %v181, 0
      %215 = vmatprep.subr.mxu0 0.0
      %216 = vmatpush1.msra.mxu0 %v182
      %217 = vmatprep.subr.mxu0 0.0
      %218 = vmatpush1.msra.mxu0 0.0
      %219 = vmatprep.subr.mxu0 0.0
      %220 = vmatpush1.msra.mxu0 0.0
      %221 = vmatprep.subr.mxu0 0.0
      %222 = vmatpush1.msra.mxu0 0.0
      %223 = vmatprep.subr.mxu0 0.0
      %224 = vmatpush1.msra.mxu0 0.0
      %225 = vmatprep.subr.mxu0 0.0
      %226 = vmatpush1.msra.mxu0 0.0
      %227 = vmatprep.subr.mxu0 0.0
      %228 = vmatpush1.msra.mxu0 0.0
      %229 = vmatprep.subr.mxu0 0.0
      %230 = vmatpush1.msra.mxu0 0.0
      %231 = vmatprep.subr.mxu0 0.0
      %232 = vmatpush1.msra.mxu0 0.0
      %233 = vmatprep.subr.mxu0 0.0
      %234 = vmatpush1.msra.mxu0 0.0
      %235 = vmatprep.subr.mxu0 0.0
      %236 = vmatpush1.msra.mxu0 0.0
      %237 = vmatprep.subr.mxu0 0.0
      %238 = vmatpush1.msra.mxu0 0.0
      %239 = vmatprep.subr.mxu0 0.0
      %240 = vmatpush1.msra.mxu0 0.0
      %241 = vmatprep.subr.mxu0 0.0
      %242 = vmatpush1.msra.mxu0 0.0
      %243 = vmatprep.subr.mxu0 0.0
      %244 = vmatpush1.msra.mxu0 0.0
      %245 = vmatprep.subr.mxu0 0.0
      %246 = vmatpush1.msra.mxu0 0.0
      %247 = vmatprep.subr.mxu0 0.0
      %248 = vmatpush1.msra.mxu0 0.0
      %249 = vmatprep.subr.mxu0 0.0
      %250 = vmatpush1.msra.mxu0 0.0
      %251 = vmatprep.subr.mxu0 0.0
      %252 = vmatpush1.msra.mxu0 0.0
      %253 = vmatprep.subr.mxu0 0.0
      %254 = vmatpush1.msra.mxu0 0.0
      %255 = vmatprep.subr.mxu0 0.0
      %256 = vmatpush1.msra.mxu0 0.0
      %257 = vmatprep.subr.mxu0 0.0
      %258 = vmatpush1.msra.mxu0 0.0
      %259 = vmatprep.subr.mxu0 0.0
      %260 = vmatpush1.msra.mxu0 0.0
      %261 = vmatprep.subr.mxu0 0.0
      %262 = vmatpush1.msra.mxu0 0.0
      %263 = vmatprep.subr.mxu0 0.0
      %264 = vmatpush1.msra.mxu0 0.0
      %265 = vmatprep.subr.mxu0 0.0
      %266 = vmatpush1.msra.mxu0 0.0
      %267 = vmatprep.subr.mxu0 0.0
      %268 = vmatpush1.msra.mxu0 0.0
      %269 = vmatprep.subr.mxu0 0.0
      %270 = vmatpush1.msra.mxu0 0.0
      %271 = vmatprep.subr.mxu0 0.0
      %272 = vmatpush1.msra.mxu0 0.0
      %273 = vmatprep.subr.mxu0 0.0
      %274 = vmatpush1.msra.mxu0 0.0
      %275 = vmatprep.subr.mxu0 0.0
      %276 = vmatpush1.msra.mxu0 0.0
      %277 = vmatprep.subr.mxu0 0.0
      %278 = vmatpush1.msra.mxu0 0.0
      %279 = vmatprep.mubr.f32.mxu0 0.0
      %280 = vmatmul.mubr.f32.gmra.mrb[0].mxu0 %v192
      %v281 = vpop.f32.mrb[0].mxu0
      %v282 = vadd.f32 %v188, %v281
      %v283 = vpop.f32.mrb[0].mxu0
      %284 = vmatprep.mubr.f32.mxu0 0.0
      %285 = vmatmul.mubr.f32.gmra.mrb[0].mxu0 %v195
      %v286 = vpop.f32.mrb[0].mxu0
      %v287 = vadd.f32 %v188, %v286
      %v288 = vpop.f32.mrb[0].mxu0
      %289 = vmatprep.mubr.f32.mxu0 0.0
      %290 = vmatmul.mubr.f32.gmra.mrb[0].mxu0 %v198
      %v291 = vpop.f32.mrb[0].mxu0
      %v292 = vadd.f32 %v188, %v291
      %v293 = vpop.f32.mrb[0].mxu0
      %294 = vmatprep.mubr.f32.mxu0 0.0
      %295 = vmatmul.mubr.f32.gmra.mrb[0].mxu0 %v201
      %v296 = vpop.f32.mrb[0].mxu0
      %v297 = vadd.f32 %v188, %v296
      %v298 = vpop.f32.mrb[0].mxu0
      %299 = vmatprep.mubr.f32.mxu0 0.0
      %300 = vmatmul.mubr.f32.gmra.mrb[0].mxu0 %v204
      %v301 = vpop.f32.mrb[0].mxu0
      %v302 = vadd.f32 %v188, %v301
      %v303 = vpop.f32.mrb[0].mxu0
      %304 = vmatprep.mubr.f32.mxu0 0.0
      %305 = vmatmul.mubr.f32.gmra.mrb[0].mxu0 %v207
      %v306 = vpop.f32.mrb[0].mxu0
      %v307 = vadd.f32 %v188, %v306
      %v308 = vpop.f32.mrb[0].mxu0
      %309 = vmatprep.mubr.f32.mxu0 0.0
      %310 = vmatmul.mubr.f32.gmra.mrb[0].mxu0 %v210
      %v311 = vpop.f32.mrb[0].mxu0
      %v312 = vadd.f32 %v188, %v311
      %v313 = vpop.f32.mrb[0].mxu0
      %314 = vmatprep.mubr.f32.mxu0 0.0
      %315 = vmatmul.mubr.f32.gmra.mrb[0].mxu0 %v213
      %v316 = vpop.f32.mrb[0].mxu0
      %v317 = vadd.f32 %v188, %v316
      %v318 = vpop.f32.mrb[0].mxu0
      %319 = vdwg.mxu0
      %320 = vst.msk [vmem:[%s172] sm:$0xff] %vm190, %v282
      %321 = vst.msk [vmem:[%s172 + $0x8] sm:$0xff] %vm190, %v287
      %322 = vst.msk [vmem:[%s172 + $0x10] sm:$0xff] %vm190, %v292
      %323 = vst.msk [vmem:[%s172 + $0x18] sm:$0xff] %vm190, %v297
      %324 = vst.msk [vmem:[%s172 + $0x20] sm:$0xff] %vm190, %v302
      %325 = vst.msk [vmem:[%s172 + $0x28] sm:$0xff] %vm190, %v307
      %326 = vst.msk [vmem:[%s172 + $0x30] sm:$0xff] %vm190, %v312
      %327 = vst.msk [vmem:[%s172 + $0x38] sm:$0xff] %vm190, %v317
      %s328 = smul.u32 8, %s14
      %p329 = scmp.lt.s32.totalorder %s328, 15
      %s330 = scalar_select %p329, %s328, 15
      %s331 = smul.addr %s330, 8
      %s332 = scalar_lea.vmem %s3, %s331
      // Predicated region
      $region33: #{fwd.21} parent=31 // pred_check
        %p333 = pneg %p100
      $region34: #{fwd.21} parent=31 // pred_check_branch
        %335 = sbr.rel (%p333) target = $region36
      $region35: #{fwd.21} parent=31 // pred_region
        %s336 = smul.u32 8, %s14
      $region36: #{fwd.21} parent=31 // pred_fallthru
        _
    $region32: #{fwd.21} parent=5 // pred_fallthru
      _
    %p337 = scmp.le.s32.totalorder 2, %s9
    // Predicated region
    $region37: #{fwd.21} parent=5 // pred_check
      %p338 = pneg %p337
    $region38: #{fwd.21} parent=5 // pred_check_branch
      %340 = sbr.rel (%p338) target = $region40
    $region39: #{fwd.21} parent=5 // pred_region
      %s341 = ssub.s32 %s9, 2
      // Predicated region
      $region41: #{fwd.21} parent=39 // pred_check
        %p342 = pneg %p106
      $region42: #{fwd.21} parent=39 // pred_check_branch
        %344 = sbr.rel (%p342) target = $region44
      $region43: #{fwd.21} parent=39 // pred_region
        %s345 = smul.u32 8, %s15
        %p346 = scmp.lt.s32.totalorder %s345, 15
        %s347 = scalar_select %p346, %s345, 15
        %s348 = smul.addr %s347, 8
        %s349 = scalar_lea.vmem %s3, %s348
      $region44: #{fwd.21} parent=39 // pred_fallthru
        _
    $region40: #{fwd.21} parent=5 // pred_fallthru
      _
  $region6: #{fwd.21} parent=0 // loop_footer
    %s13 = sadd.s32 1, %s9
  $region7: #{fwd.21} parent=0 // loop_footer_branch
    %8 = sbr.rel target = $region3
  $region8: #{fwd.21} parent=0 // loop_exit
    _

// kernel: fwd.31
$region0: #{fwd.31}
  #allocation0 [shape = 'u32[]', space=smem, size = 0x4, offset = 0x4, fixed_abs, tag = 'smem constant byte address 0x4 - core index']
  #allocation1 [shape = 'u32[144,128]{1,0:T(1,128)}', space=vmem, size = 0x12000, scoped, tag = 'internal scratch']
  %s0 = inlined_call_operand.vmem [shape: f32[80,8], index: 0, kind: input, shape index: {}]
  %s1 = inlined_call_operand.vmem [shape: f32[8,24], index: 1, kind: input, shape index: {}]
  %s2 = inlined_call_operand.vmem [shape: f32[80,24], index: 2, kind: output, shape index: {}]
  %s3 = sld [smem:[#allocation0]]
  $region41: #{fwd.31} parent=0
    _
  %s5 = ssub.s32 1, %s3
  %s6 = scalar_select 0, %s5, %s3
  loop: start=0, step=1, limit=7
  $region2: #{fwd.31} parent=0 // loop_pre_header
    _
  $region3: #{fwd.31} parent=0 // loop_header
    %s8 = sphi 0, %s12
    %p9 = scmp.ge.s32.totalorder %s8, 7
    %s18 = sphi 0, %s20
    %s21 = sphi 0, %s18
    %s22 = sphi 0, %s21
    %s38 = sphi 0, %s22
    %s42 = sphi 0, %s42
    %s44 = sphi 0, %s42
    %s45 = sphi 0, %s44
    %s59 = sphi 0, %s45
    %s65 = sphi 0, %s67
    %s68 = sphi 0, %s65
    %s69 = sphi 0, %s68
    %s85 = sphi 0, %s69
  $region4: #{fwd.31} parent=0 // loop_header_branch
    %11 = sbr.rel (%p9) target = $region8
  $region5: #{fwd.31} parent=0 // loop_body
    %s13 = ssub.s32 %s8, 1
    %s14 = ssub.s32 %s8, 2
    %s15 = sadd.s32 %s8, 1
    %s16 = ssub.s32 %s8, %s15
    %p17 = scmp.eq.s32.totalorder %s16, 0
    %s19 = sadd.s32 %s18, 1
    %s20 = scalar_select %p17, %s18, %s19
    %p23 = pneg %p17
    %p24 = scmp.eq.s32.totalorder %s8, 4
    %p25 = por %p23, %p24
    %p26 = scmp.ne.s32.totalorder %s18, %s21
    %p27 = scmp.eq.s32.totalorder %s8, 0
    %p28 = por %p26, %p27
    %p29 = scmp.ne.s32.totalorder %s18, %s21
    %p30 = scmp.eq.s32.totalorder %s13, 4
    %p31 = por %p29, %p30
    %p32 = scmp.ne.s32.totalorder %s21, %s22
    %p33 = scmp.eq.s32.totalorder %s13, 0
    %p34 = por %p32, %p33
    %p35 = scmp.ne.s32.totalorder %s21, %s22
    %p36 = scmp.eq.s32.totalorder %s14, 4
    %p37 = por %p35, %p36
    %p39 = scmp.ne.s32.totalorder %s22, %s38
    %p40 = scmp.eq.s32.totalorder %s14, 0
    %p41 = por %p39, %p40
    %s43 = sadd.s32 %s42, 1
    %p46 = scmp.eq.s32.totalorder %s8, 4
    %p47 = scmp.ne.s32.totalorder %s42, %s44
    %p48 = scmp.eq.s32.totalorder %s8, 0
    %p49 = por %p47, %p48
    %p50 = scmp.ne.s32.totalorder %s42, %s44
    %p51 = scmp.eq.s32.totalorder %s13, 4
    %p52 = por %p50, %p51
    %p53 = scmp.ne.s32.totalorder %s44, %s45
    %p54 = scmp.eq.s32.totalorder %s13, 0
    %p55 = por %p53, %p54
    %p56 = scmp.ne.s32.totalorder %s44, %s45
    %p57 = scmp.eq.s32.totalorder %s14, 4
    %p58 = por %p56, %p57
    %p60 = scmp.ne.s32.totalorder %s45, %s59
    %p61 = scmp.eq.s32.totalorder %s14, 0
    %p62 = por %p60, %p61
    %s63 = ssub.s32 %s8, %s15
    %p64 = scmp.eq.s32.totalorder %s63, 0
    %s66 = sadd.s32 %s65, 1
    %s67 = scalar_select %p64, %s65, %s66
    %p70 = pneg %p64
    %p71 = scmp.eq.s32.totalorder %s8, 4
    %p72 = por %p70, %p71
    %p73 = scmp.ne.s32.totalorder %s65, %s68
    %p74 = scmp.eq.s32.totalorder %s8, 0
    %p75 = por %p73, %p74
    %p76 = scmp.ne.s32.totalorder %s65, %s68
    %p77 = scmp.eq.s32.totalorder %s13, 4
    %p78 = por %p76, %p77
    %p79 = scmp.ne.s32.totalorder %s68, %s69
    %p80 = scmp.eq.s32.totalorder %s13, 0
    %p81 = por %p79, %p80
    %p82 = scmp.ne.s32.totalorder %s68, %s69
    %p83 = scmp.eq.s32.totalorder %s14, 4
    %p84 = por %p82, %p83
    %p86 = scmp.ne.s32.totalorder %s69, %s85
    %p87 = scmp.eq.s32.totalorder %s14, 0
    %p88 = por %p86, %p87
    %p89 = scmp.le.s32.totalorder 1, %s8
    %p90 = scmp.lt.s32.totalorder %s8, 6
    %p91 = pnand %p89, %p90
    %p92 = pneg %p91
    // Predicated region
    $region9: #{fwd.31} parent=5 // pred_check
      _
    $region10: #{fwd.31} parent=5 // pred_check_branch
      %94 = sbr.rel (%p91) target = $region12
    $region11: #{fwd.31} parent=5 // pred_region
      %s95 = ssub.s32 %s8, 1
      // Predicated region
      $region13: #{fwd.31} parent=11 // pred_check
        %p96 = pneg %p55
      $region14: #{fwd.31} parent=11 // pred_check_branch
        %98 = sbr.rel (%p96) target = $region16
      $region15: #{fwd.31} parent=11 // pred_region
        _
      $region16: #{fwd.31} parent=11 // pred_fallthru
        _
    $region12: #{fwd.31} parent=5 // pred_fallthru
      _
    %p99 = scmp.lt.s32.totalorder %s8, 5
    // Predicated region
    $region17: #{fwd.31} parent=5 // pred_check
      %p100 = pneg %p99
    $region18: #{fwd.31} parent=5 // pred_check_branch
      %102 = sbr.rel (%p100) target = $region20
    $region19: #{fwd.31} parent=5 // pred_region
      // Predicated region
      $region21: #{fwd.31} parent=19 // pred_check
        %p103 = pneg %p28
      $region22: #{fwd.31} parent=19 // pred_check_branch
        %105 = sbr.rel (%p103) target = $region24
      $region23: #{fwd.31} parent=19 // pred_region
        %s106 = smul.u32 2, %s8
        %p107 = scmp.lt.s32.totalorder %s106, 9
        %s108 = scalar_select %p107, %s106, 9
        %s109 = smul.addr %s108, 8
        %s110 = scalar_lea.vmem %s0, %s109
        %s111 = smul.u32 2, %s8
      $region24: #{fwd.31} parent=19 // pred_fallthru
        _
    $region20: #{fwd.31} parent=5 // pred_fallthru
      _
    %p112 = scmp.le.s32.totalorder 1, %s8
    %p113 = scmp.lt.s32.totalorder %s8, 6
    %p114 = pnand %p112, %p113
    %p115 = pneg %p114
    // Predicated region
    $region25: #{fwd.31} parent=5 // pred_check
      _
    $region26: #{fwd.31} parent=5 // pred_check_branch
      %117 = sbr.rel (%p114) target = $region28
    $region27: #{fwd.31} parent=5 // pred_region
      %s118 = ssub.s32 %s8, 1
      %s119 = smul.u32 2, %s13
      %p120 = scmp.lt.s32.totalorder %s119, 9
      %s121 = scalar_select %p120, %s119, 9
      %s122 = smul.addr %s121, 8
      %s123 = scalar_lea.vmem %s0, %s122
      %p124 = pneg %p34
      %p125 = pneg %p31
      %p126 = pneg %p55
      %p127 = pneg %p52
      %p128 = pneg %p81
      %p129 = pneg %p78
      %s130 = smul.u32 2, %s13
      %p131 = scmp.lt.s32.totalorder %s130, 9
      %s132 = scalar_select %p131, %s130, 9
      %s133 = smul.addr %s132, 8
      %s134 = scalar_lea.vmem %s2, %s133
      %s135 = smul.u32 2, %s13
      %p136 = scmp.lt.s32.totalorder %s135, 9
      %s137 = scalar_select %p136, %s135, 9
      %s138 = smul.addr %s137, 8
      %s139 = scalar_lea.vmem %s0, %s138
      %s140 = smul.u32 2, %s13
      %s141 = smul.u32 2, %s13
      %p142 = scmp.lt.s32.totalorder %s141, 9
      %s143 = scalar_select %p142, %s141, 9
      %s144 = smul.addr %s143, 8
      %s145 = scalar_lea.vmem %s2, %s144
      %s146 = smul.u32 2, %s13
      %v147 = vld [vmem:[%s139] sm:$0xff]
      %v148 = vld [vmem:[%s139 + $0x8] sm:$0xff]
      %v149 = vld [vmem:[%s1] sm:$0xff]
      %vm150 = vcmask 64512
      %v152 = vsel %vm150, %v147, 0
      %v155 = vsel %vm150, %v148, 0
      %157 = vmatprep.subr.mxu0 0.0
      %158 = vmatpush1.msra.mxu0 %v149
      %159 = vmatprep.subr.mxu0 0.0
      %160 = vmatpush1.msra.mxu0 0.0
      %161 = vmatprep.subr.mxu0 0.0
      %162 = vmatpush1.msra.mxu0 0.0
      %163 = vmatprep.subr.mxu0 0.0
      %164 = vmatpush1.msra.mxu0 0.0
      %165 = vmatprep.subr.mxu0 0.0
      %166 = vmatpush1.msra.mxu0 0.0
      %167 = vmatprep.subr.mxu0 0.0
      %168 = vmatpush1.msra.mxu0 0.0
      %169 = vmatprep.subr.mxu0 0.0
      %170 = vmatpush1.msra.mxu0 0.0
      %171 = vmatprep.subr.mxu0 0.0
      %172 = vmatpush1.msra.mxu0 0.0
      %173 = vmatprep.subr.mxu0 0.0
      %174 = vmatpush1.msra.mxu0 0.0
      %175 = vmatprep.subr.mxu0 0.0
      %176 = vmatpush1.msra.mxu0 0.0
      %177 = vmatprep.subr.mxu0 0.0
      %178 = vmatpush1.msra.mxu0 0.0
      %179 = vmatprep.subr.mxu0 0.0
      %180 = vmatpush1.msra.mxu0 0.0
      %181 = vmatprep.subr.mxu0 0.0
      %182 = vmatpush1.msra.mxu0 0.0
      %183 = vmatprep.subr.mxu0 0.0
      %184 = vmatpush1.msra.mxu0 0.0
      %185 = vmatprep.subr.mxu0 0.0
      %186 = vmatpush1.msra.mxu0 0.0
      %187 = vmatprep.subr.mxu0 0.0
      %188 = vmatpush1.msra.mxu0 0.0
      %189 = vmatprep.subr.mxu0 0.0
      %190 = vmatpush1.msra.mxu0 0.0
      %191 = vmatprep.subr.mxu0 0.0
      %192 = vmatpush1.msra.mxu0 0.0
      %193 = vmatprep.subr.mxu0 0.0
      %194 = vmatpush1.msra.mxu0 0.0
      %195 = vmatprep.subr.mxu0 0.0
      %196 = vmatpush1.msra.mxu0 0.0
      %197 = vmatprep.subr.mxu0 0.0
      %198 = vmatpush1.msra.mxu0 0.0
      %199 = vmatprep.subr.mxu0 0.0
      %200 = vmatpush1.msra.mxu0 0.0
      %201 = vmatprep.subr.mxu0 0.0
      %202 = vmatpush1.msra.mxu0 0.0
      %203 = vmatprep.subr.mxu0 0.0
      %204 = vmatpush1.msra.mxu0 0.0
      %205 = vmatprep.subr.mxu0 0.0
      %206 = vmatpush1.msra.mxu0 0.0
      %207 = vmatprep.subr.mxu0 0.0
      %208 = vmatpush1.msra.mxu0 0.0
      %209 = vmatprep.subr.mxu0 0.0
      %210 = vmatpush1.msra.mxu0 0.0
      %211 = vmatprep.subr.mxu0 0.0
      %212 = vmatpush1.msra.mxu0 0.0
      %213 = vmatprep.subr.mxu0 0.0
      %214 = vmatpush1.msra.mxu0 0.0
      %215 = vmatprep.subr.mxu0 0.0
      %216 = vmatpush1.msra.mxu0 0.0
      %217 = vmatprep.subr.mxu0 0.0
      %218 = vmatpush1.msra.mxu0 0.0
      %219 = vmatprep.subr.mxu0 0.0
      %220 = vmatpush1.msra.mxu0 0.0
      %221 = vmatprep.mubr.f32.mxu0 0.0
      %222 = vmatmul.mubr.f32.gmra.mrb[0].mxu0 %v152
      %v223 = vpop.f32.mrb[0].mxu0
      %v224 = vadd.f32 0.0, %v223
      %v225 = vpop.f32.mrb[0].mxu0
      %226 = vmatprep.mubr.f32.mxu0 0.0
      %227 = vmatmul.mubr.f32.gmra.mrb[0].mxu0 %v155
      %v228 = vpop.f32.mrb[0].mxu0
      %v229 = vadd.f32 0.0, %v228
      %v230 = vpop.f32.mrb[0].mxu0
      %231 = vdwg.mxu0
      %vm232 = vcmask 195584
      %233 = vst.msk [vmem:[%s145] sm:$0xff] %vm232, %v224
      %234 = vst.msk [vmem:[%s145 + $0x8] sm:$0xff] %vm232, %v229
      %s235 = smul.u32 2, %s13
      %p236 = scmp.lt.s32.totalorder %s235, 9
      %s237 = scalar_select %p236, %s235, 9
      %s238 = smul.addr %s237, 8
      %s239 = scalar_lea.vmem %s2, %s238
      // Predicated region
      $region29: #{fwd.31} parent=27 // pred_check
        %p240 = pneg %p78
      $region30: #{fwd.31} parent=27 // pred_check_branch
        %242 = sbr.rel (%p240) target = $region32
      $region31: #{fwd.31} parent=27 // pred_region
        %s243 = smul.u32 2, %s13
      $region32: #{fwd.31} parent=27 // pred_fallthru
        _
    $region28: #{fwd.31} parent=5 // pred_fallthru
      _
    %p244 = scmp.le.s32.totalorder 2, %s8
    // Predicated region
    $region33: #{fwd.31} parent=5 // pred_check
      %p245 = pneg %p244
    $region34: #{fwd.31} parent=5 // pred_check_branch
      %247 = sbr.rel (%p245) target = $region36
    $region35: #{fwd.31} parent=5 // pred_region
      %s248 = ssub.s32 %s8, 2
      // Predicated region
      $region37: #{fwd.31} parent=35 // pred_check
        %p249 = pneg %p84
      $region38: #{fwd.31} parent=35 // pred_check_branch
        %251 = sbr.rel (%p249) target = $region40
      $region39: #{fwd.31} parent=35 // pred_region
        %s252 = smul.u32 2, %s14
        %p253 = scmp.lt.s32.totalorder %s252, 9
        %s254 = scalar_select %p253, %s252, 9
        %s255 = smul.addr %s254, 8
        %s256 = scalar_lea.vmem %s2, %s255
      $region40: #{fwd.31} parent=35 // pred_fallthru
        _
    $region36: #{fwd.31} parent=5 // pred_fallthru
      _
  $region6: #{fwd.31} parent=0 // loop_footer
    %s12 = sadd.s32 1, %s8
  $region7: #{fwd.31} parent=0 // loop_footer_branch
    %7 = sbr.rel target = $region3
  $region8: #{fwd.31} parent=0 // loop_exit
    _

// kernel: fwd.34
$region0: #{fwd.34}
  #allocation0 [shape = 'u32[]', space=smem, size = 0x4, offset = 0x4, fixed_abs, tag = 'smem constant byte address 0x4 - core index']
  #allocation1 [shape = 'u32[144,128]{1,0:T(1,128)}', space=vmem, size = 0x12000, scoped, tag = 'internal scratch']
  %s0 = inlined_call_operand.vmem [shape: f32[2,10,7,8], index: 0, kind: input, shape index: {}]
  %s1 = inlined_call_operand.vmem [shape: f32[3,3,8], index: 1, kind: input, shape index: {}]
  %s2 = inlined_call_operand.vmem [shape: f32[2,8,5,8], index: 2, kind: output, shape index: {}]
  %s3 = sld [smem:[#allocation0]]
  $region41: #{fwd.34} parent=0
    _
  %s5 = ssub.s32 1, %s3
  %s6 = scalar_select 0, %s5, %s3
  loop: start=0, step=1, limit=4
  $region2: #{fwd.34} parent=0 // loop_pre_header
    _
  $region3: #{fwd.34} parent=0 // loop_header
    %s8 = sphi 0, %s12
    %p9 = scmp.ge.s32.totalorder %s8, 4
    %s18 = sphi 0, %s20
    %s21 = sphi 0, %s18
    %s22 = sphi 0, %s21
    %s38 = sphi 0, %s22
    %s42 = sphi 0, %s42
    %s44 = sphi 0, %s42
    %s45 = sphi 0, %s44
    %s59 = sphi 0, %s45
    %s65 = sphi 0, %s67
    %s68 = sphi 0, %s65
    %s69 = sphi 0, %s68
    %s85 = sphi 0, %s69
  $region4: #{fwd.34} parent=0 // loop_header_branch
    %11 = sbr.rel (%p9) target = $region8
  $region5: #{fwd.34} parent=0 // loop_body
    %s13 = ssub.s32 %s8, 1
    %s14 = ssub.s32 %s8, 2
    %s15 = sadd.s32 %s8, 1
    %s16 = ssub.s32 %s8, %s15
    %p17 = scmp.eq.s32.totalorder %s16, 0
    %s19 = sadd.s32 %s18, 1
    %s20 = scalar_select %p17, %s18, %s19
    %p23 = pneg %p17
    %p24 = scmp.eq.s32.totalorder %s8, 1
    %p25 = por %p23, %p24
    %p26 = scmp.ne.s32.totalorder %s18, %s21
    %p27 = scmp.eq.s32.totalorder %s8, 0
    %p28 = por %p26, %p27
    %p29 = scmp.ne.s32.totalorder %s18, %s21
    %p30 = scmp.eq.s32.totalorder %s13, 1
    %p31 = por %p29, %p30
    %p32 = scmp.ne.s32.totalorder %s21, %s22
    %p33 = scmp.eq.s32.totalorder %s13, 0
    %p34 = por %p32, %p33
    %p35 = scmp.ne.s32.totalorder %s21, %s22
    %p36 = scmp.eq.s32.totalorder %s14, 1
    %p37 = por %p35, %p36
    %p39 = scmp.ne.s32.totalorder %s22, %s38
    %p40 = scmp.eq.s32.totalorder %s14, 0
    %p41 = por %p39, %p40
    %s43 = sadd.s32 %s42, 1
    %p46 = scmp.eq.s32.totalorder %s8, 1
    %p47 = scmp.ne.s32.totalorder %s42, %s44
    %p48 = scmp.eq.s32.totalorder %s8, 0
    %p49 = por %p47, %p48
    %p50 = scmp.ne.s32.totalorder %s42, %s44
    %p51 = scmp.eq.s32.totalorder %s13, 1
    %p52 = por %p50, %p51
    %p53 = scmp.ne.s32.totalorder %s44, %s45
    %p54 = scmp.eq.s32.totalorder %s13, 0
    %p55 = por %p53, %p54
    %p56 = scmp.ne.s32.totalorder %s44, %s45
    %p57 = scmp.eq.s32.totalorder %s14, 1
    %p58 = por %p56, %p57
    %p60 = scmp.ne.s32.totalorder %s45, %s59
    %p61 = scmp.eq.s32.totalorder %s14, 0
    %p62 = por %p60, %p61
    %s63 = ssub.s32 %s8, %s15
    %p64 = scmp.eq.s32.totalorder %s63, 0
    %s66 = sadd.s32 %s65, 1
    %s67 = scalar_select %p64, %s65, %s66
    %p70 = pneg %p64
    %p71 = scmp.eq.s32.totalorder %s8, 1
    %p72 = por %p70, %p71
    %p73 = scmp.ne.s32.totalorder %s65, %s68
    %p74 = scmp.eq.s32.totalorder %s8, 0
    %p75 = por %p73, %p74
    %p76 = scmp.ne.s32.totalorder %s65, %s68
    %p77 = scmp.eq.s32.totalorder %s13, 1
    %p78 = por %p76, %p77
    %p79 = scmp.ne.s32.totalorder %s68, %s69
    %p80 = scmp.eq.s32.totalorder %s13, 0
    %p81 = por %p79, %p80
    %p82 = scmp.ne.s32.totalorder %s68, %s69
    %p83 = scmp.eq.s32.totalorder %s14, 1
    %p84 = por %p82, %p83
    %p86 = scmp.ne.s32.totalorder %s69, %s85
    %p87 = scmp.eq.s32.totalorder %s14, 0
    %p88 = por %p86, %p87
    %p89 = scmp.le.s32.totalorder 1, %s8
    %p90 = scmp.lt.s32.totalorder %s8, 3
    %p91 = pnand %p89, %p90
    %p92 = pneg %p91
    // Predicated region
    $region9: #{fwd.34} parent=5 // pred_check
      _
    $region10: #{fwd.34} parent=5 // pred_check_branch
      %94 = sbr.rel (%p91) target = $region12
    $region11: #{fwd.34} parent=5 // pred_region
      %s95 = ssub.s32 %s8, 1
      // Predicated region
      $region13: #{fwd.34} parent=11 // pred_check
        %p96 = pneg %p55
      $region14: #{fwd.34} parent=11 // pred_check_branch
        %98 = sbr.rel (%p96) target = $region16
      $region15: #{fwd.34} parent=11 // pred_region
        _
      $region16: #{fwd.34} parent=11 // pred_fallthru
        _
    $region12: #{fwd.34} parent=5 // pred_fallthru
      _
    %p99 = scmp.lt.s32.totalorder %s8, 2
    // Predicated region
    $region17: #{fwd.34} parent=5 // pred_check
      %p100 = pneg %p99
    $region18: #{fwd.34} parent=5 // pred_check_branch
      %102 = sbr.rel (%p100) target = $region20
    $region19: #{fwd.34} parent=5 // pred_region
      // Predicated region
      $region21: #{fwd.34} parent=19 // pred_check
        %p103 = pneg %p28
      $region22: #{fwd.34} parent=19 // pred_check_branch
        %105 = sbr.rel (%p103) target = $region24
      $region23: #{fwd.34} parent=19 // pred_region
        %p106 = scmp.lt.s32.totalorder %s8, 1
        %s107 = scalar_select %p106, %s8, 1
        %s108 = smul.addr %s107, 10
        %s109 = smul.addr %s108, 8
        %s110 = scalar_lea.vmem %s0, %s109
      $region24: #{fwd.34} parent=19 // pred_fallthru
        _
    $region20: #{fwd.34} parent=5 // pred_fallthru
      _
    %p111 = scmp.le.s32.totalorder 1, %s8
    %p112 = scmp.lt.s32.totalorder %s8, 3
    %p113 = pnand %p111, %p112
    %p114 = pneg %p113
    // Predicated region
    $region25: #{fwd.34} parent=5 // pred_check
      _
    $region26: #{fwd.34} parent=5 // pred_check_branch
      %116 = sbr.rel (%p113) target = $region28
    $region27: #{fwd.34} parent=5 // pred_region
      %s117 = ssub.s32 %s8, 1
      %p118 = scmp.lt.s32.totalorder %s13, 1
      %s119 = scalar_select %p118, %s13, 1
      %s120 = smul.addr %s119, 10
      %s121 = smul.addr %s120, 8
      %s122 = scalar_lea.vmem %s0, %s121
      %p123 = pneg %p34
      %p124 = pneg %p31
      %p125 = pneg %p55
      %p126 = pneg %p52
      %p127 = pneg %p81
      %p128 = pneg %p78
      %p129 = scmp.lt.s32.totalorder %s13, 1
      %s130 = scalar_select %p129, %s13, 1
      %s131 = smul.addr %s130, 8
      %s132 = smul.addr %s131, 8
      %s133 = scalar_lea.vmem %s2, %s132
      %p134 = scmp.lt.s32.totalorder %s13, 1
      %s135 = scalar_select %p134, %s13, 1
      %s136 = smul.addr %s135, 10
      %s137 = smul.addr %s136, 8
      %s138 = scalar_lea.vmem %s0, %s137
      %p139 = scmp.lt.s32.totalorder %s13, 1
      %s140 = scalar_select %p139, %s13, 1
      %s141 = smul.addr %s140, 8
      %s142 = smul.addr %s141, 8
      %s143 = scalar_lea.vmem %s2, %s142
      %v144 = vld [vmem:[%s138] sm:$0x7f]
      %v145 = vld [vmem:[%s138 + $0x8] sm:$0x7f]
      %v146 = vld [vmem:[%s138 + $0x10] sm:$0x7f]
      %v147 = vld [vmem:[%s138 + $0x18] sm:$0x7f]
      %v148 = vld [vmem:[%s138 + $0x20] sm:$0x7f]
      %v149 = vld [vmem:[%s138 + $0x28] sm:$0x7f]
      %v150 = vld [vmem:[%s138 + $0x30] sm:$0x7f]
      %v151 = vld [vmem:[%s138 + $0x38] sm:$0x7f]
      %v152 = vld [vmem:[%s138 + $0x40] sm:$0x7f]
      %v153 = vld [vmem:[%s138 + $0x48] sm:$0x7f]
      %v154 = vld [vmem:[%s1] sm:$0x7]
      %v155 = vld [vmem:[%s1 + $0x4] sm:$0x7]
      %v156 = vld [vmem:[%s1 + $0x8] sm:$0x7]
      %v157 = vlaneseq
      %v158 = vshrl.u32 %v157, 7
      %v159 = vsub.s32 0, %v158
      %v160 = vrot.slane %v154, %v159
      %v161 = vmul.f32 %v144, %v160
      %v162 = vmul.f32 %v145, %v160
      %v163 = vmul.f32 %v146, %v160
      %v164 = vmul.f32 %v147, %v160
      %v165 = vmul.f32 %v148, %v160
      %v166 = vmul.f32 %v149, %v160
      %v167 = vmul.f32 %v150, %v160
      %v168 = vmul.f32 %v151, %v160
      %v169 = vadd.f32 %v161, 0.0
      %v170 = vadd.f32 %v162, 0.0
      %v171 = vadd.f32 %v163, 0.0
      %v172 = vadd.f32 %v164, 0.0
      %v173 = vadd.f32 %v165, 0.0
      %v174 = vadd.f32 %v166, 0.0
      %v175 = vadd.f32 %v167, 0.0
      %v176 = vadd.f32 %v168, 0.0
      %v177 = vlaneseq
      %v178 = vshrl.u32 %v177, 7
      %v179 = vsub.s32 1, %v178
      %v180 = vrot.slane %v154, %v179
      %v181 = vmul.f32 %v144, %v180
      %v182 = vmul.f32 %v145, %v180
      %v183 = vmul.f32 %v146, %v180
      %v184 = vmul.f32 %v147, %v180
      %v185 = vmul.f32 %v148, %v180
      %v186 = vmul.f32 %v149, %v180
      %v187 = vmul.f32 %v150, %v180
      %v188 = vmul.f32 %v151, %v180
      %v197 = vrot.slane %v181, 1
      %v198 = vrot.slane %v182, 1
      %v199 = vrot.slane %v183, 1
      %v200 = vrot.slane %v184, 1
      %v201 = vrot.slane %v185, 1
      %v202 = vrot.slane %v186, 1
      %v203 = vrot.slane %v187, 1
      %v204 = vrot.slane %v188, 1
      %v213 = vadd.f32 %v169, %v197
      %v214 = vadd.f32 %v170, %v198
      %v215 = vadd.f32 %v171, %v199
      %v216 = vadd.f32 %v172, %v200
      %v217 = vadd.f32 %v173, %v201
      %v218 = vadd.f32 %v174, %v202
      %v219 = vadd.f32 %v175, %v203
      %v220 = vadd.f32 %v176, %v204
      %v221 = vlaneseq
      %v222 = vshrl.u32 %v221, 7
      %v223 = vsub.s32 2, %v222
      %v224 = vrot.slane %v154, %v223
      %v225 = vmul.f32 %v144, %v224
      %v226 = vmul.f32 %v145, %v224
      %v227 = vmul.f32 %v146, %v224
      %v228 = vmul.f32 %v147, %v224
      %v229 = vmul.f32 %v148, %v224
      %v230 = vmul.f32 %v149, %v224
      %v231 = vmul.f32 %v150, %v224
      %v232 = vmul.f32 %v151, %v224
      %v241 = vrot.slane %v225, 2
      %v242 = vrot.slane %v226, 2
      %v243 = vrot.slane %v227, 2
      %v244 = vrot.slane %v228, 2
      %v245 = vrot.slane %v229, 2
      %v246 = vrot.slane %v230, 2
      %v247 = vrot.slane %v231, 2
      %v248 = vrot.slane %v232, 2
      %v257 = vadd.f32 %v213, %v241
      %v258 = vadd.f32 %v214, %v242
      %v259 = vadd.f32 %v215, %v243
      %v260 = vadd.f32 %v216, %v244
      %v261 = vadd.f32 %v217, %v245
      %v262 = vadd.f32 %v218, %v246
      %v263 = vadd.f32 %v219, %v247
      %v264 = vadd.f32 %v220, %v248
      %v265 = vlaneseq
      %v266 = vshrl.u32 %v265, 7
      %v267 = vsub.s32 0, %v266
      %v268 = vrot.slane %v155, %v267
      %v269 = vmul.f32 %v145, %v268
      %v270 = vmul.f32 %v146, %v268
      %v271 = vmul.f32 %v147, %v268
      %v272 = vmul.f32 %v148, %v268
      %v273 = vmul.f32 %v149, %v268
      %v274 = vmul.f32 %v150, %v268
      %v275 = vmul.f32 %v151, %v268
      %v276 = vmul.f32 %v152, %v268
      %v277 = vadd.f32 %v257, %v269
      %v278 = vadd.f32 %v258, %v270
      %v279 = vadd.f32 %v259, %v271
      %v280 = vadd.f32 %v260, %v272
      %v281 = vadd.f32 %v261, %v273
      %v282 = vadd.f32 %v262, %v274
      %v283 = vadd.f32 %v263, %v275
      %v284 = vadd.f32 %v264, %v276
      %v285 = vlaneseq
      %v286 = vshrl.u32 %v285, 7
      %v287 = vsub.s32 1, %v286
      %v288 = vrot.slane %v155, %v287
      %v289 = vmul.f32 %v145, %v288
      %v290 = vmul.f32 %v146, %v288
      %v291 = vmul.f32 %v147, %v288
      %v292 = vmul.f32 %v148, %v288
      %v293 = vmul.f32 %v149, %v288
      %v294 = vmul.f32 %v150, %v288
      %v295 = vmul.f32 %v151, %v288
      %v296 = vmul.f32 %v152, %v288
      %v305 = vrot.slane %v289, 1
      %v306 = vrot.slane %v290, 1
      %v307 = vrot.slane %v291, 1
      %v308 = vrot.slane %v292, 1
      %v309 = vrot.slane %v293, 1
      %v310 = vrot.slane %v294, 1
      %v311 = vrot.slane %v295, 1
      %v312 = vrot.slane %v296, 1
      %v321 = vadd.f32 %v277, %v305
      %v322 = vadd.f32 %v278, %v306
      %v323 = vadd.f32 %v279, %v307
      %v324 = vadd.f32 %v280, %v308
      %v325 = vadd.f32 %v281, %v309
      %v326 = vadd.f32 %v282, %v310
      %v327 = vadd.f32 %v283, %v311
      %v328 = vadd.f32 %v284, %v312
      %v329 = vlaneseq
      %v330 = vshrl.u32 %v329, 7
      %v331 = vsub.s32 2, %v330
      %v332 = vrot.slane %v155, %v331
      %v333 = vmul.f32 %v145, %v332
      %v334 = vmul.f32 %v146, %v332
      %v335 = vmul.f32 %v147, %v332
      %v336 = vmul.f32 %v148, %v332
      %v337 = vmul.f32 %v149, %v332
      %v338 = vmul.f32 %v150, %v332
      %v339 = vmul.f32 %v151, %v332
      %v340 = vmul.f32 %v152, %v332
      %v349 = vrot.slane %v333, 2
      %v350 = vrot.slane %v334, 2
      %v351 = vrot.slane %v335, 2
      %v352 = vrot.slane %v336, 2
      %v353 = vrot.slane %v337, 2
      %v354 = vrot.slane %v338, 2
      %v355 = vrot.slane %v339, 2
      %v356 = vrot.slane %v340, 2
      %v365 = vadd.f32 %v321, %v349
      %v366 = vadd.f32 %v322, %v350
      %v367 = vadd.f32 %v323, %v351
      %v368 = vadd.f32 %v324, %v352
      %v369 = vadd.f32 %v325, %v353
      %v370 = vadd.f32 %v326, %v354
      %v371 = vadd.f32 %v327, %v355
      %v372 = vadd.f32 %v328, %v356
      %v373 = vlaneseq
      %v374 = vshrl.u32 %v373, 7
      %v375 = vsub.s32 0, %v374
      %v376 = vrot.slane %v156, %v375
      %v377 = vmul.f32 %v146, %v376
      %v378 = vmul.f32 %v147, %v376
      %v379 = vmul.f32 %v148, %v376
      %v380 = vmul.f32 %v149, %v376
      %v381 = vmul.f32 %v150, %v376
      %v382 = vmul.f32 %v151, %v376
      %v383 = vmul.f32 %v152, %v376
      %v384 = vmul.f32 %v153, %v376
      %v385 = vadd.f32 %v365, %v377
      %v386 = vadd.f32 %v366, %v378
      %v387 = vadd.f32 %v367, %v379
      %v388 = vadd.f32 %v368, %v380
      %v389 = vadd.f32 %v369, %v381
      %v390 = vadd.f32 %v370, %v382
      %v391 = vadd.f32 %v371, %v383
      %v392 = vadd.f32 %v372, %v384
      %v393 = vlaneseq
      %v394 = vshrl.u32 %v393, 7
      %v395 = vsub.s32 1, %v394
      %v396 = vrot.slane %v156, %v395
      %v397 = vmul.f32 %v146, %v396
      %v398 = vmul.f32 %v147, %v396
      %v399 = vmul.f32 %v148, %v396
      %v400 = vmul.f32 %v149, %v396
      %v401 = vmul.f32 %v150, %v396
      %v402 = vmul.f32 %v151, %v396
      %v403 = vmul.f32 %v152, %v396
      %v404 = vmul.f32 %v153, %v396
      %v413 = vrot.slane %v397, 1
      %v414 = vrot.slane %v398, 1
      %v415 = vrot.slane %v399, 1
      %v416 = vrot.slane %v400, 1
      %v417 = vrot.slane %v401, 1
      %v418 = vrot.slane %v402, 1
      %v419 = vrot.slane %v403, 1
      %v420 = vrot.slane %v404, 1
      %v429 = vadd.f32 %v385, %v413
      %v430 = vadd.f32 %v386, %v414
      %v431 = vadd.f32 %v387, %v415
      %v432 = vadd.f32 %v388, %v416
      %v433 = vadd.f32 %v389, %v417
      %v434 = vadd.f32 %v390, %v418
      %v435 = vadd.f32 %v391, %v419
      %v436 = vadd.f32 %v392, %v420
      %v437 = vlaneseq
      %v438 = vshrl.u32 %v437, 7
      %v439 = vsub.s32 2, %v438
      %v440 = vrot.slane %v156, %v439
      %v441 = vmul.f32 %v146, %v440
      %v442 = vmul.f32 %v147, %v440
      %v443 = vmul.f32 %v148, %v440
      %v444 = vmul.f32 %v149, %v440
      %v445 = vmul.f32 %v150, %v440
      %v446 = vmul.f32 %v151, %v440
      %v447 = vmul.f32 %v152, %v440
      %v448 = vmul.f32 %v153, %v440
      %v457 = vrot.slane %v441, 2
      %v458 = vrot.slane %v442, 2
      %v459 = vrot.slane %v443, 2
      %v460 = vrot.slane %v444, 2
      %v461 = vrot.slane %v445, 2
      %v462 = vrot.slane %v446, 2
      %v463 = vrot.slane %v447, 2
      %v464 = vrot.slane %v448, 2
      %v473 = vadd.f32 %v429, %v457
      %v474 = vadd.f32 %v430, %v458
      %v475 = vadd.f32 %v431, %v459
      %v476 = vadd.f32 %v432, %v460
      %v477 = vadd.f32 %v433, %v461
      %v478 = vadd.f32 %v434, %v462
      %v479 = vadd.f32 %v435, %v463
      %v480 = vadd.f32 %v436, %v464
      %v481 = vmul.f32 %v473, 0.5
      %v482 = vmul.f32 %v474, 0.5
      %v483 = vmul.f32 %v475, 0.5
      %v484 = vmul.f32 %v476, 0.5
      %v485 = vmul.f32 %v477, 0.5
      %v486 = vmul.f32 %v478, 0.5
      %v487 = vmul.f32 %v479, 0.5
      %v488 = vmul.f32 %v480, 0.5
      %v489 = vmul.f32 %v473, %v473
      %v490 = vmul.f32 %v474, %v474
      %v491 = vmul.f32 %v475, %v475
      %v492 = vmul.f32 %v476, %v476
      %v493 = vmul.f32 %v477, %v477
      %v494 = vmul.f32 %v478, %v478
      %v495 = vmul.f32 %v479, %v479
      %v496 = vmul.f32 %v480, %v480
      %v497 = vmul.f32 %v489, %v473
      %v498 = vmul.f32 %v490, %v474
      %v499 = vmul.f32 %v491, %v475
      %v500 = vmul.f32 %v492, %v476
      %v501 = vmul.f32 %v493, %v477
      %v502 = vmul.f32 %v494, %v478
      %v503 = vmul.f32 %v495, %v479
      %v504 = vmul.f32 %v496, %v480
      %v505 = vmul.f32 %v497, 0.044715
      %v506 = vmul.f32 %v498, 0.044715
      %v507 = vmul.f32 %v499, 0.044715
      %v508 = vmul.f32 %v500, 0.044715
      %v509 = vmul.f32 %v501, 0.044715
      %v510 = vmul.f32 %v502, 0.044715
      %v511 = vmul.f32 %v503, 0.044715
      %v512 = vmul.f32 %v504, 0.044715
      %v513 = vadd.f32 %v473, %v505
      %v514 = vadd.f32 %v474, %v506
      %v515 = vadd.f32 %v475, %v507
      %v516 = vadd.f32 %v476, %v508
      %v517 = vadd.f32 %v477, %v509
      %v518 = vadd.f32 %v478, %v510
      %v519 = vadd.f32 %v479, %v511
      %v520 = vadd.f32 %v480, %v512
      %v521 = vmul.f32 %v513, 0.7978846
      %v522 = vmul.f32 %v514, 0.7978846
      %v523 = vmul.f32 %v515, 0.7978846
      %v524 = vmul.f32 %v516, 0.7978846
      %v525 = vmul.f32 %v517, 0.7978846
      %v526 = vmul.f32 %v518, 0.7978846
      %v527 = vmul.f32 %v519, 0.7978846
      %v528 = vmul.f32 %v520, 0.7978846
      %v529 = vtanh.pop %v521
      %v530 = vtanh.pop %v522
      %v531 = vtanh.pop %v523
      %v532 = vtanh.pop %v524
      %v533 = vtanh.pop %v525
      %v534 = vtanh.pop %v526
      %v535 = vtanh.pop %v527
      %v536 = vtanh.pop %v528
      %v537 = vadd.f32 %v529, 1.0
      %v538 = vadd.f32 %v530, 1.0
      %v539 = vadd.f32 %v531, 1.0
      %v540 = vadd.f32 %v532, 1.0
      %v541 = vadd.f32 %v533, 1.0
      %v542 = vadd.f32 %v534, 1.0
      %v543 = vadd.f32 %v535, 1.0
      %v544 = vadd.f32 %v536, 1.0
      %v545 = vmul.f32 %v481, %v537
      %v546 = vmul.f32 %v482, %v538
      %v547 = vmul.f32 %v483, %v539
      %v548 = vmul.f32 %v484, %v540
      %v549 = vmul.f32 %v485, %v541
      %v550 = vmul.f32 %v486, %v542
      %v551 = vmul.f32 %v487, %v543
      %v552 = vmul.f32 %v488, %v544
      %vm553 = vcmask 61440
      %554 = vst.msk [vmem:[%s143] sm:$0x1f] %vm553, %v545
      %555 = vst.msk [vmem:[%s143 + $0x8] sm:$0x1f] %vm553, %v546
      %556 = vst.msk [vmem:[%s143 + $0x10] sm:$0x1f] %vm553, %v547
      %557 = vst.msk [vmem:[%s143 + $0x18] sm:$0x1f] %vm553, %v548
      %558 = vst.msk [vmem:[%s143 + $0x20] sm:$0x1f] %vm553, %v549
      %559 = vst.msk [vmem:[%s143 + $0x28] sm:$0x1f] %vm553, %v550
      %560 = vst.msk [vmem:[%s143 + $0x30] sm:$0x1f] %vm553, %v551
      %561 = vst.msk [vmem:[%s143 + $0x38] sm:$0x1f] %vm553, %v552
      %p562 = scmp.lt.s32.totalorder %s13, 1
      %s563 = scalar_select %p562, %s13, 1
      %s564 = smul.addr %s563, 8
      %s565 = smul.addr %s564, 8
      %s566 = scalar_lea.vmem %s2, %s565
      // Predicated region
      $region29: #{fwd.34} parent=27 // pred_check
        %p567 = pneg %p78
      $region30: #{fwd.34} parent=27 // pred_check_branch
        %569 = sbr.rel (%p567) target = $region32
      $region31: #{fwd.34} parent=27 // pred_region
        _
      $region32: #{fwd.34} parent=27 // pred_fallthru
        _
    $region28: #{fwd.34} parent=5 // pred_fallthru
      _
    %p570 = scmp.le.s32.totalorder 2, %s8
    // Predicated region
    $region33: #{fwd.34} parent=5 // pred_check
      %p571 = pneg %p570
    $region34: #{fwd.34} parent=5 // pred_check_branch
      %573 = sbr.rel (%p571) target = $region36
    $region35: #{fwd.34} parent=5 // pred_region
      %s574 = ssub.s32 %s8, 2
      // Predicated region
      $region37: #{fwd.34} parent=35 // pred_check
        %p575 = pneg %p84
      $region38: #{fwd.34} parent=35 // pred_check_branch
        %577 = sbr.rel (%p575) target = $region40
      $region39: #{fwd.34} parent=35 // pred_region
        %p578 = scmp.lt.s32.totalorder %s14, 1
        %s579 = scalar_select %p578, %s14, 1
        %s580 = smul.addr %s579, 8
        %s581 = smul.addr %s580, 8
        %s582 = scalar_lea.vmem %s2, %s581
      $region40: #{fwd.34} parent=35 // pred_fallthru
        _
    $region36: #{fwd.34} parent=5 // pred_fallthru
      _
  $region6: #{fwd.34} parent=0 // loop_footer
    %s12 = sadd.s32 1, %s8
  $region7: #{fwd.34} parent=0 // loop_footer_branch
    %7 = sbr.rel target = $region3
  $region8: #{fwd.34} parent=0 // loop_exit
    _

// kernel: fwd.35
$region0: #{fwd.35}
  #allocation0 [shape = 'u32[]', space=smem, size = 0x4, offset = 0x4, fixed_abs, tag = 'smem constant byte address 0x4 - core index']
  #allocation1 [shape = 'u32[144,128]{1,0:T(1,128)}', space=vmem, size = 0x12000, scoped, tag = 'internal scratch']
  %s0 = inlined_call_operand.vmem [shape: f32[2,10,7,8], index: 0, kind: input, shape index: {}]
  %s1 = inlined_call_operand.vmem [shape: f32[3,3,8], index: 1, kind: input, shape index: {}]
  %s2 = inlined_call_operand.vmem [shape: f32[2,8,5,8], index: 2, kind: output, shape index: {}]
  %s3 = sld [smem:[#allocation0]]
  $region41: #{fwd.35} parent=0
    _
  %s5 = ssub.s32 1, %s3
  %s6 = scalar_select 0, %s5, %s3
  loop: start=0, step=1, limit=4
  $region2: #{fwd.35} parent=0 // loop_pre_header
    _
  $region3: #{fwd.35} parent=0 // loop_header
    %s8 = sphi 0, %s12
    %p9 = scmp.ge.s32.totalorder %s8, 4
    %s18 = sphi 0, %s20
    %s21 = sphi 0, %s18
    %s22 = sphi 0, %s21
    %s38 = sphi 0, %s22
    %s42 = sphi 0, %s42
    %s44 = sphi 0, %s42
    %s45 = sphi 0, %s44
    %s59 = sphi 0, %s45
    %s65 = sphi 0, %s67
    %s68 = sphi 0, %s65
    %s69 = sphi 0, %s68
    %s85 = sphi 0, %s69
  $region4: #{fwd.35} parent=0 // loop_header_branch
    %11 = sbr.rel (%p9) target = $region8
  $region5: #{fwd.35} parent=0 // loop_body
    %s13 = ssub.s32 %s8, 1
    %s14 = ssub.s32 %s8, 2
    %s15 = sadd.s32 %s8, 1
    %s16 = ssub.s32 %s8, %s15
    %p17 = scmp.eq.s32.totalorder %s16, 0
    %s19 = sadd.s32 %s18, 1
    %s20 = scalar_select %p17, %s18, %s19
    %p23 = pneg %p17
    %p24 = scmp.eq.s32.totalorder %s8, 1
    %p25 = por %p23, %p24
    %p26 = scmp.ne.s32.totalorder %s18, %s21
    %p27 = scmp.eq.s32.totalorder %s8, 0
    %p28 = por %p26, %p27
    %p29 = scmp.ne.s32.totalorder %s18, %s21
    %p30 = scmp.eq.s32.totalorder %s13, 1
    %p31 = por %p29, %p30
    %p32 = scmp.ne.s32.totalorder %s21, %s22
    %p33 = scmp.eq.s32.totalorder %s13, 0
    %p34 = por %p32, %p33
    %p35 = scmp.ne.s32.totalorder %s21, %s22
    %p36 = scmp.eq.s32.totalorder %s14, 1
    %p37 = por %p35, %p36
    %p39 = scmp.ne.s32.totalorder %s22, %s38
    %p40 = scmp.eq.s32.totalorder %s14, 0
    %p41 = por %p39, %p40
    %s43 = sadd.s32 %s42, 1
    %p46 = scmp.eq.s32.totalorder %s8, 1
    %p47 = scmp.ne.s32.totalorder %s42, %s44
    %p48 = scmp.eq.s32.totalorder %s8, 0
    %p49 = por %p47, %p48
    %p50 = scmp.ne.s32.totalorder %s42, %s44
    %p51 = scmp.eq.s32.totalorder %s13, 1
    %p52 = por %p50, %p51
    %p53 = scmp.ne.s32.totalorder %s44, %s45
    %p54 = scmp.eq.s32.totalorder %s13, 0
    %p55 = por %p53, %p54
    %p56 = scmp.ne.s32.totalorder %s44, %s45
    %p57 = scmp.eq.s32.totalorder %s14, 1
    %p58 = por %p56, %p57
    %p60 = scmp.ne.s32.totalorder %s45, %s59
    %p61 = scmp.eq.s32.totalorder %s14, 0
    %p62 = por %p60, %p61
    %s63 = ssub.s32 %s8, %s15
    %p64 = scmp.eq.s32.totalorder %s63, 0
    %s66 = sadd.s32 %s65, 1
    %s67 = scalar_select %p64, %s65, %s66
    %p70 = pneg %p64
    %p71 = scmp.eq.s32.totalorder %s8, 1
    %p72 = por %p70, %p71
    %p73 = scmp.ne.s32.totalorder %s65, %s68
    %p74 = scmp.eq.s32.totalorder %s8, 0
    %p75 = por %p73, %p74
    %p76 = scmp.ne.s32.totalorder %s65, %s68
    %p77 = scmp.eq.s32.totalorder %s13, 1
    %p78 = por %p76, %p77
    %p79 = scmp.ne.s32.totalorder %s68, %s69
    %p80 = scmp.eq.s32.totalorder %s13, 0
    %p81 = por %p79, %p80
    %p82 = scmp.ne.s32.totalorder %s68, %s69
    %p83 = scmp.eq.s32.totalorder %s14, 1
    %p84 = por %p82, %p83
    %p86 = scmp.ne.s32.totalorder %s69, %s85
    %p87 = scmp.eq.s32.totalorder %s14, 0
    %p88 = por %p86, %p87
    %p89 = scmp.le.s32.totalorder 1, %s8
    %p90 = scmp.lt.s32.totalorder %s8, 3
    %p91 = pnand %p89, %p90
    %p92 = pneg %p91
    // Predicated region
    $region9: #{fwd.35} parent=5 // pred_check
      _
    $region10: #{fwd.35} parent=5 // pred_check_branch
      %94 = sbr.rel (%p91) target = $region12
    $region11: #{fwd.35} parent=5 // pred_region
      %s95 = ssub.s32 %s8, 1
      // Predicated region
      $region13: #{fwd.35} parent=11 // pred_check
        %p96 = pneg %p55
      $region14: #{fwd.35} parent=11 // pred_check_branch
        %98 = sbr.rel (%p96) target = $region16
      $region15: #{fwd.35} parent=11 // pred_region
        _
      $region16: #{fwd.35} parent=11 // pred_fallthru
        _
    $region12: #{fwd.35} parent=5 // pred_fallthru
      _
    %p99 = scmp.lt.s32.totalorder %s8, 2
    // Predicated region
    $region17: #{fwd.35} parent=5 // pred_check
      %p100 = pneg %p99
    $region18: #{fwd.35} parent=5 // pred_check_branch
      %102 = sbr.rel (%p100) target = $region20
    $region19: #{fwd.35} parent=5 // pred_region
      // Predicated region
      $region21: #{fwd.35} parent=19 // pred_check
        %p103 = pneg %p28
      $region22: #{fwd.35} parent=19 // pred_check_branch
        %105 = sbr.rel (%p103) target = $region24
      $region23: #{fwd.35} parent=19 // pred_region
        %p106 = scmp.lt.s32.totalorder %s8, 1
        %s107 = scalar_select %p106, %s8, 1
        %s108 = smul.addr %s107, 10
        %s109 = smul.addr %s108, 8
        %s110 = scalar_lea.vmem %s0, %s109
      $region24: #{fwd.35} parent=19 // pred_fallthru
        _
    $region20: #{fwd.35} parent=5 // pred_fallthru
      _
    %p111 = scmp.le.s32.totalorder 1, %s8
    %p112 = scmp.lt.s32.totalorder %s8, 3
    %p113 = pnand %p111, %p112
    %p114 = pneg %p113
    // Predicated region
    $region25: #{fwd.35} parent=5 // pred_check
      _
    $region26: #{fwd.35} parent=5 // pred_check_branch
      %116 = sbr.rel (%p113) target = $region28
    $region27: #{fwd.35} parent=5 // pred_region
      %s117 = ssub.s32 %s8, 1
      %p118 = scmp.lt.s32.totalorder %s13, 1
      %s119 = scalar_select %p118, %s13, 1
      %s120 = smul.addr %s119, 10
      %s121 = smul.addr %s120, 8
      %s122 = scalar_lea.vmem %s0, %s121
      %p123 = pneg %p34
      %p124 = pneg %p31
      %p125 = pneg %p55
      %p126 = pneg %p52
      %p127 = pneg %p81
      %p128 = pneg %p78
      %p129 = scmp.lt.s32.totalorder %s13, 1
      %s130 = scalar_select %p129, %s13, 1
      %s131 = smul.addr %s130, 8
      %s132 = smul.addr %s131, 8
      %s133 = scalar_lea.vmem %s2, %s132
      %p134 = scmp.lt.s32.totalorder %s13, 1
      %s135 = scalar_select %p134, %s13, 1
      %s136 = smul.addr %s135, 10
      %s137 = smul.addr %s136, 8
      %s138 = scalar_lea.vmem %s0, %s137
      %p139 = scmp.lt.s32.totalorder %s13, 1
      %s140 = scalar_select %p139, %s13, 1
      %s141 = smul.addr %s140, 8
      %s142 = smul.addr %s141, 8
      %s143 = scalar_lea.vmem %s2, %s142
      %v144 = vld [vmem:[%s138] sm:$0x7f]
      %v145 = vld [vmem:[%s138 + $0x8] sm:$0x7f]
      %v146 = vld [vmem:[%s138 + $0x10] sm:$0x7f]
      %v147 = vld [vmem:[%s138 + $0x18] sm:$0x7f]
      %v148 = vld [vmem:[%s138 + $0x20] sm:$0x7f]
      %v149 = vld [vmem:[%s138 + $0x28] sm:$0x7f]
      %v150 = vld [vmem:[%s138 + $0x30] sm:$0x7f]
      %v151 = vld [vmem:[%s138 + $0x38] sm:$0x7f]
      %v152 = vld [vmem:[%s138 + $0x40] sm:$0x7f]
      %v153 = vld [vmem:[%s138 + $0x48] sm:$0x7f]
      %v154 = vld [vmem:[%s1] sm:$0x7]
      %v155 = vld [vmem:[%s1 + $0x4] sm:$0x7]
      %v156 = vld [vmem:[%s1 + $0x8] sm:$0x7]
      %v157 = vlaneseq
      %v158 = vshrl.u32 %v157, 7
      %v159 = vsub.s32 0, %v158
      %v160 = vrot.slane %v154, %v159
      %v161 = vmul.f32 %v144, %v160
      %v162 = vmul.f32 %v145, %v160
      %v163 = vmul.f32 %v146, %v160
      %v164 = vmul.f32 %v147, %v160
      %v165 = vmul.f32 %v148, %v160
      %v166 = vmul.f32 %v149, %v160
      %v167 = vmul.f32 %v150, %v160
      %v168 = vmul.f32 %v151, %v160
      %v169 = vadd.f32 %v161, 0.0
      %v170 = vadd.f32 %v162, 0.0
      %v171 = vadd.f32 %v163, 0.0
      %v172 = vadd.f32 %v164, 0.0
      %v173 = vadd.f32 %v165, 0.0
      %v174 = vadd.f32 %v166, 0.0
      %v175 = vadd.f32 %v167, 0.0
      %v176 = vadd.f32 %v168, 0.0
      %v177 = vlaneseq
      %v178 = vshrl.u32 %v177, 7
      %v179 = vsub.s32 1, %v178
      %v180 = vrot.slane %v154, %v179
      %v181 = vmul.f32 %v144, %v180
      %v182 = vmul.f32 %v145, %v180
      %v183 = vmul.f32 %v146, %v180
      %v184 = vmul.f32 %v147, %v180
      %v185 = vmul.f32 %v148, %v180
      %v186 = vmul.f32 %v149, %v180
      %v187 = vmul.f32 %v150, %v180
      %v188 = vmul.f32 %v151, %v180
      %v197 = vrot.slane %v181, 1
      %v198 = vrot.slane %v182, 1
      %v199 = vrot.slane %v183, 1
      %v200 = vrot.slane %v184, 1
      %v201 = vrot.slane %v185, 1
      %v202 = vrot.slane %v186, 1
      %v203 = vrot.slane %v187, 1
      %v204 = vrot.slane %v188, 1
      %v213 = vadd.f32 %v169, %v197
      %v214 = vadd.f32 %v170, %v198
      %v215 = vadd.f32 %v171, %v199
      %v216 = vadd.f32 %v172, %v200
      %v217 = vadd.f32 %v173, %v201
      %v218 = vadd.f32 %v174, %v202
      %v219 = vadd.f32 %v175, %v203
      %v220 = vadd.f32 %v176, %v204
      %v221 = vlaneseq
      %v222 = vshrl.u32 %v221, 7
      %v223 = vsub.s32 2, %v222
      %v224 = vrot.slane %v154, %v223
      %v225 = vmul.f32 %v144, %v224
      %v226 = vmul.f32 %v145, %v224
      %v227 = vmul.f32 %v146, %v224
      %v228 = vmul.f32 %v147, %v224
      %v229 = vmul.f32 %v148, %v224
      %v230 = vmul.f32 %v149, %v224
      %v231 = vmul.f32 %v150, %v224
      %v232 = vmul.f32 %v151, %v224
      %v241 = vrot.slane %v225, 2
      %v242 = vrot.slane %v226, 2
      %v243 = vrot.slane %v227, 2
      %v244 = vrot.slane %v228, 2
      %v245 = vrot.slane %v229, 2
      %v246 = vrot.slane %v230, 2
      %v247 = vrot.slane %v231, 2
      %v248 = vrot.slane %v232, 2
      %v257 = vadd.f32 %v213, %v241
      %v258 = vadd.f32 %v214, %v242
      %v259 = vadd.f32 %v215, %v243
      %v260 = vadd.f32 %v216, %v244
      %v261 = vadd.f32 %v217, %v245
      %v262 = vadd.f32 %v218, %v246
      %v263 = vadd.f32 %v219, %v247
      %v264 = vadd.f32 %v220, %v248
      %v265 = vlaneseq
      %v266 = vshrl.u32 %v265, 7
      %v267 = vsub.s32 0, %v266
      %v268 = vrot.slane %v155, %v267
      %v269 = vmul.f32 %v145, %v268
      %v270 = vmul.f32 %v146, %v268
      %v271 = vmul.f32 %v147, %v268
      %v272 = vmul.f32 %v148, %v268
      %v273 = vmul.f32 %v149, %v268
      %v274 = vmul.f32 %v150, %v268
      %v275 = vmul.f32 %v151, %v268
      %v276 = vmul.f32 %v152, %v268
      %v277 = vadd.f32 %v257, %v269
      %v278 = vadd.f32 %v258, %v270
      %v279 = vadd.f32 %v259, %v271
      %v280 = vadd.f32 %v260, %v272
      %v281 = vadd.f32 %v261, %v273
      %v282 = vadd.f32 %v262, %v274
      %v283 = vadd.f32 %v263, %v275
      %v284 = vadd.f32 %v264, %v276
      %v285 = vlaneseq
      %v286 = vshrl.u32 %v285, 7
      %v287 = vsub.s32 1, %v286
      %v288 = vrot.slane %v155, %v287
      %v289 = vmul.f32 %v145, %v288
      %v290 = vmul.f32 %v146, %v288
      %v291 = vmul.f32 %v147, %v288
      %v292 = vmul.f32 %v148, %v288
      %v293 = vmul.f32 %v149, %v288
      %v294 = vmul.f32 %v150, %v288
      %v295 = vmul.f32 %v151, %v288
      %v296 = vmul.f32 %v152, %v288
      %v305 = vrot.slane %v289, 1
      %v306 = vrot.slane %v290, 1
      %v307 = vrot.slane %v291, 1
      %v308 = vrot.slane %v292, 1
      %v309 = vrot.slane %v293, 1
      %v310 = vrot.slane %v294, 1
      %v311 = vrot.slane %v295, 1
      %v312 = vrot.slane %v296, 1
      %v321 = vadd.f32 %v277, %v305
      %v322 = vadd.f32 %v278, %v306
      %v323 = vadd.f32 %v279, %v307
      %v324 = vadd.f32 %v280, %v308
      %v325 = vadd.f32 %v281, %v309
      %v326 = vadd.f32 %v282, %v310
      %v327 = vadd.f32 %v283, %v311
      %v328 = vadd.f32 %v284, %v312
      %v329 = vlaneseq
      %v330 = vshrl.u32 %v329, 7
      %v331 = vsub.s32 2, %v330
      %v332 = vrot.slane %v155, %v331
      %v333 = vmul.f32 %v145, %v332
      %v334 = vmul.f32 %v146, %v332
      %v335 = vmul.f32 %v147, %v332
      %v336 = vmul.f32 %v148, %v332
      %v337 = vmul.f32 %v149, %v332
      %v338 = vmul.f32 %v150, %v332
      %v339 = vmul.f32 %v151, %v332
      %v340 = vmul.f32 %v152, %v332
      %v349 = vrot.slane %v333, 2
      %v350 = vrot.slane %v334, 2
      %v351 = vrot.slane %v335, 2
      %v352 = vrot.slane %v336, 2
      %v353 = vrot.slane %v337, 2
      %v354 = vrot.slane %v338, 2
      %v355 = vrot.slane %v339, 2
      %v356 = vrot.slane %v340, 2
      %v365 = vadd.f32 %v321, %v349
      %v366 = vadd.f32 %v322, %v350
      %v367 = vadd.f32 %v323, %v351
      %v368 = vadd.f32 %v324, %v352
      %v369 = vadd.f32 %v325, %v353
      %v370 = vadd.f32 %v326, %v354
      %v371 = vadd.f32 %v327, %v355
      %v372 = vadd.f32 %v328, %v356
      %v373 = vlaneseq
      %v374 = vshrl.u32 %v373, 7
      %v375 = vsub.s32 0, %v374
      %v376 = vrot.slane %v156, %v375
      %v377 = vmul.f32 %v146, %v376
      %v378 = vmul.f32 %v147, %v376
      %v379 = vmul.f32 %v148, %v376
      %v380 = vmul.f32 %v149, %v376
      %v381 = vmul.f32 %v150, %v376
      %v382 = vmul.f32 %v151, %v376
      %v383 = vmul.f32 %v152, %v376
      %v384 = vmul.f32 %v153, %v376
      %v385 = vadd.f32 %v365, %v377
      %v386 = vadd.f32 %v366, %v378
      %v387 = vadd.f32 %v367, %v379
      %v388 = vadd.f32 %v368, %v380
      %v389 = vadd.f32 %v369, %v381
      %v390 = vadd.f32 %v370, %v382
      %v391 = vadd.f32 %v371, %v383
      %v392 = vadd.f32 %v372, %v384
      %v393 = vlaneseq
      %v394 = vshrl.u32 %v393, 7
      %v395 = vsub.s32 1, %v394
      %v396 = vrot.slane %v156, %v395
      %v397 = vmul.f32 %v146, %v396
      %v398 = vmul.f32 %v147, %v396
      %v399 = vmul.f32 %v148, %v396
      %v400 = vmul.f32 %v149, %v396
      %v401 = vmul.f32 %v150, %v396
      %v402 = vmul.f32 %v151, %v396
      %v403 = vmul.f32 %v152, %v396
      %v404 = vmul.f32 %v153, %v396
      %v413 = vrot.slane %v397, 1
      %v414 = vrot.slane %v398, 1
      %v415 = vrot.slane %v399, 1
      %v416 = vrot.slane %v400, 1
      %v417 = vrot.slane %v401, 1
      %v418 = vrot.slane %v402, 1
      %v419 = vrot.slane %v403, 1
      %v420 = vrot.slane %v404, 1
      %v429 = vadd.f32 %v385, %v413
      %v430 = vadd.f32 %v386, %v414
      %v431 = vadd.f32 %v387, %v415
      %v432 = vadd.f32 %v388, %v416
      %v433 = vadd.f32 %v389, %v417
      %v434 = vadd.f32 %v390, %v418
      %v435 = vadd.f32 %v391, %v419
      %v436 = vadd.f32 %v392, %v420
      %v437 = vlaneseq
      %v438 = vshrl.u32 %v437, 7
      %v439 = vsub.s32 2, %v438
      %v440 = vrot.slane %v156, %v439
      %v441 = vmul.f32 %v146, %v440
      %v442 = vmul.f32 %v147, %v440
      %v443 = vmul.f32 %v148, %v440
      %v444 = vmul.f32 %v149, %v440
      %v445 = vmul.f32 %v150, %v440
      %v446 = vmul.f32 %v151, %v440
      %v447 = vmul.f32 %v152, %v440
      %v448 = vmul.f32 %v153, %v440
      %v457 = vrot.slane %v441, 2
      %v458 = vrot.slane %v442, 2
      %v459 = vrot.slane %v443, 2
      %v460 = vrot.slane %v444, 2
      %v461 = vrot.slane %v445, 2
      %v462 = vrot.slane %v446, 2
      %v463 = vrot.slane %v447, 2
      %v464 = vrot.slane %v448, 2
      %v473 = vadd.f32 %v429, %v457
      %v474 = vadd.f32 %v430, %v458
      %v475 = vadd.f32 %v431, %v459
      %v476 = vadd.f32 %v432, %v460
      %v477 = vadd.f32 %v433, %v461
      %v478 = vadd.f32 %v434, %v462
      %v479 = vadd.f32 %v435, %v463
      %v480 = vadd.f32 %v436, %v464
      %vm481 = vcmask 61440
      %482 = vst.msk [vmem:[%s143] sm:$0x1f] %vm481, %v473
      %483 = vst.msk [vmem:[%s143 + $0x8] sm:$0x1f] %vm481, %v474
      %484 = vst.msk [vmem:[%s143 + $0x10] sm:$0x1f] %vm481, %v475
      %485 = vst.msk [vmem:[%s143 + $0x18] sm:$0x1f] %vm481, %v476
      %486 = vst.msk [vmem:[%s143 + $0x20] sm:$0x1f] %vm481, %v477
      %487 = vst.msk [vmem:[%s143 + $0x28] sm:$0x1f] %vm481, %v478
      %488 = vst.msk [vmem:[%s143 + $0x30] sm:$0x1f] %vm481, %v479
      %489 = vst.msk [vmem:[%s143 + $0x38] sm:$0x1f] %vm481, %v480
      %p490 = scmp.lt.s32.totalorder %s13, 1
      %s491 = scalar_select %p490, %s13, 1
      %s492 = smul.addr %s491, 8
      %s493 = smul.addr %s492, 8
      %s494 = scalar_lea.vmem %s2, %s493
      // Predicated region
      $region29: #{fwd.35} parent=27 // pred_check
        %p495 = pneg %p78
      $region30: #{fwd.35} parent=27 // pred_check_branch
        %497 = sbr.rel (%p495) target = $region32
      $region31: #{fwd.35} parent=27 // pred_region
        _
      $region32: #{fwd.35} parent=27 // pred_fallthru
        _
    $region28: #{fwd.35} parent=5 // pred_fallthru
      _
    %p498 = scmp.le.s32.totalorder 2, %s8
    // Predicated region
    $region33: #{fwd.35} parent=5 // pred_check
      %p499 = pneg %p498
    $region34: #{fwd.35} parent=5 // pred_check_branch
      %501 = sbr.rel (%p499) target = $region36
    $region35: #{fwd.35} parent=5 // pred_region
      %s502 = ssub.s32 %s8, 2
      // Predicated region
      $region37: #{fwd.35} parent=35 // pred_check
        %p503 = pneg %p84
      $region38: #{fwd.35} parent=35 // pred_check_branch
        %505 = sbr.rel (%p503) target = $region40
      $region39: #{fwd.35} parent=35 // pred_region
        %p506 = scmp.lt.s32.totalorder %s14, 1
        %s507 = scalar_select %p506, %s14, 1
        %s508 = smul.addr %s507, 8
        %s509 = smul.addr %s508, 8
        %s510 = scalar_lea.vmem %s2, %s509
      $region40: #{fwd.35} parent=35 // pred_fallthru
        _
    $region36: #{fwd.35} parent=5 // pred_fallthru
      _
  $region6: #{fwd.35} parent=0 // loop_footer
    %s12 = sadd.s32 1, %s8
  $region7: #{fwd.35} parent=0 // loop_footer_branch
    %7 = sbr.rel target = $region3
  $region8: #{fwd.35} parent=0 // loop_exit
    _

// kernel: fwd.24
$region0: #{fwd.24}
  #allocation0 [shape = 'u32[]', space=smem, size = 0x4, offset = 0x4, fixed_abs, tag = 'smem constant byte address 0x4 - core index']
  #allocation1 [shape = 'u32[144,128]{1,0:T(1,128)}', space=vmem, size = 0x12000, scoped, tag = 'internal scratch']
  %s0 = inlined_call_operand.vmem [shape: f32[80,8], index: 0, kind: input, shape index: {}]
  %s1 = inlined_call_operand.vmem [shape: f32[8,8], index: 1, kind: input, shape index: {}]
  %s2 = inlined_call_operand.vmem [shape: f32[1,8], index: 2, kind: input, shape index: {}]
  %s3 = inlined_call_operand.vmem [shape: f32[80,8], index: 3, kind: output, shape index: {}]
  %s4 = sld [smem:[#allocation0]]
  $region45: #{fwd.24} parent=0
    _
  %s6 = ssub.s32 1, %s4
  %s7 = scalar_select 0, %s6, %s4
  loop: start=0, step=1, limit=7
  $region2: #{fwd.24} parent=0 // loop_pre_header
    _
  $region3: #{fwd.24} parent=0 // loop_header
    %s9 = sphi 0, %s13
    %p10 = scmp.ge.s32.totalorder %s9, 7
    %s19 = sphi 0, %s21
    %s22 = sphi 0, %s19
    %s23 = sphi 0, %s22
    %s39 = sphi 0, %s23
    %s43 = sphi 0, %s43
    %s45 = sphi 0, %s43
    %s46 = sphi 0, %s45
    %s60 = sphi 0, %s46
    %s64 = sphi 0, %s64
    %s66 = sphi 0, %s64
    %s67 = sphi 0, %s66
    %s81 = sphi 0, %s67
    %s87 = sphi 0, %s89
    %s90 = sphi 0, %s87
    %s91 = sphi 0, %s90
    %s107 = sphi 0, %s91
  $region4: #{fwd.24} parent=0 // loop_header_branch
    %12 = sbr.rel (%p10) target = $region8
  $region5: #{fwd.24} parent=0 // loop_body
    %s14 = ssub.s32 %s9, 1
    %s15 = ssub.s32 %s9, 2
    %s16 = sadd.s32 %s9, 1
    %s17 = ssub.s32 %s9, %s16
    %p18 = scmp.eq.s32.totalorder %s17, 0
    %s20 = sadd.s32 %s19, 1
    %s21 = scalar_select %p18, %s19, %s20
    %p24 = pneg %p18
    %p25 = scmp.eq.s32.totalorder %s9, 4
    %p26 = por %p24, %p25
    %p27 = scmp.ne.s32.totalorder %s19, %s22
    %p28 = scmp.eq.s32.totalorder %s9, 0
    %p29 = por %p27, %p28
    %p30 = scmp.ne.s32.totalorder %s19, %s22
    %p31 = scmp.eq.s32.totalorder %s14, 4
    %p32 = por %p30, %p31
    %p33 = scmp.ne.s32.totalorder %s22, %s23
    %p34 = scmp.eq.s32.totalorder %s14, 0
    %p35 = por %p33, %p34
    %p36 = scmp.ne.s32.totalorder %s22, %s23
    %p37 = scmp.eq.s32.totalorder %s15, 4
    %p38 = por %p36, %p37
    %p40 = scmp.ne.s32.totalorder %s23, %s39
    %p41 = scmp.eq.s32.totalorder %s15, 0
    %p42 = por %p40, %p41
    %s44 = sadd.s32 %s43, 1
    %p47 = scmp.eq.s32.totalorder %s9, 4
    %p48 = scmp.ne.s32.totalorder %s43, %s45
    %p49 = scmp.eq.s32.totalorder %s9, 0
    %p50 = por %p48, %p49
    %p51 = scmp.ne.s32.totalorder %s43, %s45
    %p52 = scmp.eq.s32.totalorder %s14, 4
    %p53 = por %p51, %p52
    %p54 = scmp.ne.s32.totalorder %s45, %s46
    %p55 = scmp.eq.s32.totalorder %s14, 0
    %p56 = por %p54, %p55
    %p57 = scmp.ne.s32.totalorder %s45, %s46
    %p58 = scmp.eq.s32.totalorder %s15, 4
    %p59 = por %p57, %p58
    %p61 = scmp.ne.s32.totalorder %s46, %s60
    %p62 = scmp.eq.s32.totalorder %s15, 0
    %p63 = por %p61, %p62
    %s65 = sadd.s32 %s64, 1
    %p68 = scmp.eq.s32.totalorder %s9, 4
    %p69 = scmp.ne.s32.totalorder %s64, %s66
    %p70 = scmp.eq.s32.totalorder %s9, 0
    %p71 = por %p69, %p70
    %p72 = scmp.ne.s32.totalorder %s64, %s66
    %p73 = scmp.eq.s32.totalorder %s14, 4
    %p74 = por %p72, %p73
    %p75 = scmp.ne.s32.totalorder %s66, %s67
    %p76 = scmp.eq.s32.totalorder %s14, 0
    %p77 = por %p75, %p76
    %p78 = scmp.ne.s32.totalorder %s66, %s67
    %p79 = scmp.eq.s32.totalorder %s15, 4
    %p80 = por %p78, %p79
    %p82 = scmp.ne.s32.totalorder %s67, %s81
    %p83 = scmp.eq.s32.totalorder %s15, 0
    %p84 = por %p82, %p83
    %s85 = ssub.s32 %s9, %s16
    %p86 = scmp.eq.s32.totalorder %s85, 0
    %s88 = sadd.s32 %s87, 1
    %s89 = scalar_select %p86, %s87, %s88
    %p92 = pneg %p86
    %p93 = scmp.eq.s32.totalorder %s9, 4
    %p94 = por %p92, %p93
    %p95 = scmp.ne.s32.totalorder %s87, %s90
    %p96 = scmp.eq.s32.totalorder %s9, 0
    %p97 = por %p95, %p96
    %p98 = scmp.ne.s32.totalorder %s87, %s90
    %p99 = scmp.eq.s32.totalorder %s14, 4
    %p100 = por %p98, %p99
    %p101 = scmp.ne.s32.totalorder %s90, %s91
    %p102 = scmp.eq.s32.totalorder %s14, 0
    %p103 = por %p101, %p102
    %p104 = scmp.ne.s32.totalorder %s90, %s91
    %p105 = scmp.eq.s32.totalorder %s15, 4
    %p106 = por %p104, %p105
    %p108 = scmp.ne.s32.totalorder %s91, %s107
    %p109 = scmp.eq.s32.totalorder %s15, 0
    %p110 = por %p108, %p109
    %p111 = scmp.le.s32.totalorder 1, %s9
    %p112 = scmp.lt.s32.totalorder %s9, 6
    %p113 = pnand %p111, %p112
    %p114 = pneg %p113
    // Predicated region
    $region9: #{fwd.24} parent=5 // pred_check
      _
    $region10: #{fwd.24} parent=5 // pred_check_branch
      %116 = sbr.rel (%p113) target = $region12
    $region11: #{fwd.24} parent=5 // pred_region
      %s117 = ssub.s32 %s9, 1
      // Predicated region
      $region13: #{fwd.24} parent=11 // pred_check
        %p118 = pneg %p56
      $region14: #{fwd.24} parent=11 // pred_check_branch
        %120 = sbr.rel (%p118) target = $region16
      $region15: #{fwd.24} parent=11 // pred_region
        _
      $region16: #{fwd.24} parent=11 // pred_fallthru
        _
      // Predicated region
      $region17: #{fwd.24} parent=11 // pred_check
        %p121 = pneg %p77
      $region18: #{fwd.24} parent=11 // pred_check_branch
        %123 = sbr.rel (%p121) target = $region20
      $region19: #{fwd.24} parent=11 // pred_region
        _
      $region20: #{fwd.24} parent=11 // pred_fallthru
        _
    $region12: #{fwd.24} parent=5 // pred_fallthru
      _
    %p124 = scmp.lt.s32.totalorder %s9, 5
    // Predicated region
    $region21: #{fwd.24} parent=5 // pred_check
      %p125 = pneg %p124
    $region22: #{fwd.24} parent=5 // pred_check_branch
      %127 = sbr.rel (%p125) target = $region24
    $region23: #{fwd.24} parent=5 // pred_region
      // Predicated region
      $region25: #{fwd.24} parent=23 // pred_check
        %p128 = pneg %p29
      $region26: #{fwd.24} parent=23 // pred_check_branch
        %130 = sbr.rel (%p128) target = $region28
      $region27: #{fwd.24} parent=23 // pred_region
        %s131 = smul.u32 2, %s9
        %p132 = scmp.lt.s32.totalorder %s131, 9
        %s133 = scalar_select %p132, %s131, 9
        %s134 = smul.addr %s133, 8
        %s135 = scalar_lea.vmem %s0, %s134
        %s136 = smul.u32 2, %s9
      $region28: #{fwd.24} parent=23 // pred_fallthru
        _
    $region24: #{fwd.24} parent=5 // pred_fallthru
      _
    %p137 = scmp.le.s32.totalorder 1, %s9
    %p138 = scmp.lt.s32.totalorder %s9, 6
    %p139 = pnand %p137, %p138
    %p140 = pneg %p139
    // Predicated region
    $region29: #{fwd.24} parent=5 // pred_check
      _
    $region30: #{fwd.24} parent=5 // pred_check_branch
      %142 = sbr.rel (%p139) target = $region32
    $region31: #{fwd.24} parent=5 // pred_region
      %s143 = ssub.s32 %s9, 1
      %s144 = smul.u32 2, %s14
      %p145 = scmp.lt.s32.totalorder %s144, 9
      %s146 = scalar_select %p145, %s144, 9
      %s147 = smul.addr %s146, 8
      %s148 = scalar_lea.vmem %s0, %s147
      %p149 = pneg %p35
      %p150 = pneg %p32
      %p151 = pneg %p56
      %p152 = pneg %p53
      %p153 = pneg %p77
      %p154 = pneg %p74
      %p155 = pneg %p103
      %p156 = pneg %p100
      %s157 = smul.u32 2, %s14
      %p158 = scmp.lt.s32.totalorder %s157, 9
      %s159 = scalar_select %p158, %s157, 9
      %s160 = smul.addr %s159, 8
      %s161 = scalar_lea.vmem %s3, %s160
      %s162 = smul.u32 2, %s14
      %p163 = scmp.lt.s32.totalorder %s162, 9
      %s164 = scalar_select %p163, %s162, 9
      %s165 = smul.addr %s164, 8
      %s166 = scalar_lea.vmem %s0, %s165
      %s167 = smul.u32 2, %s14
      %s168 = smul.u32 2, %s14
      %p169 = scmp.lt.s32.totalorder %s168, 9
      %s170 = scalar_select %p169, %s168, 9
      %s171 = smul.addr %s170, 8
      %s172 = scalar_lea.vmem %s3, %s171
      %s173 = smul.u32 2, %s14
      %v174 = vld [vmem:[%s166] sm:$0xff]
      %v175 = vld [vmem:[%s166 + $0x8] sm:$0xff]
      %v176 = vld [vmem:[%s1] sm:$0xff]
      %v177 = vld [vmem:[%s2] sm:$0x1]
      %v179 = vlaneseq
      %v180 = vshrl.u32 %v179, 7
      %v181 = vsub.s32 0, %v180
      %v182 = vrot.slane %v177, %v181
      %vm184 = vcmask 64512
      %v186 = vsel %vm184, %v174, 0
      %v189 = vsel %vm184, %v175, 0
      %191 = vmatprep.subr.mxu0 0.0
      %192 = vmatpush1.msra.mxu0 %v176
      %193 = vmatprep.subr.mxu0 0.0
      %194 = vmatpush1.msra.mxu0 0.0
      %195 = vmatprep.subr.mxu0 0.0
      %196 = vmatpush1.msra.mxu0 0.0
      %197 = vmatprep.subr.mxu0 0.0
      %198 = vmatpush1.msra.mxu0 0.0
      %199 = vmatprep.subr.mxu0 0.0
      %200 = vmatpush1.msra.mxu0 0.0
      %201 = vmatprep.subr.mxu0 0.0
      %202 = vmatpush1.msra.mxu0 0.0
      %203 = vmatprep.subr.mxu0 0.0
      %204 = vmatpush1.msra.mxu0 0.0
      %205 = vmatprep.subr.mxu0 0.0
      %206 = vmatpush1.msra.mxu0 0.0
      %207 = vmatprep.subr.mxu0 0.0
      %208 = vmatpush1.msra.mxu0 0.0
      %209 = vmatprep.subr.mxu0 0.0
      %210 = vmatpush1.msra.mxu0 0.0
      %211 = vmatprep.subr.mxu0 0.0
      %212 = vmatpush1.msra.mxu0 0.0
      %213 = vmatprep.subr.mxu0 0.0
      %214 = vmatpush1.msra.mxu0 0.0
      %215 = vmatprep.subr.mxu0 0.0
      %216 = vmatpush1.msra.mxu0 0.0
      %217 = vmatprep.subr.mxu0 0.0
      %218 = vmatpush1.msra.mxu0 0.0
      %219 = vmatprep.subr.mxu0 0.0
      %220 = vmatpush1.msra.mxu0 0.0
      %221 = vmatprep.subr.mxu0 0.0
      %222 = vmatpush1.msra.mxu0 0.0
      %223 = vmatprep.subr.mxu0 0.0
      %224 = vmatpush1.msra.mxu0 0.0
      %225 = vmatprep.subr.mxu0 0.0
      %226 = vmatpush1.msra.mxu0 0.0
      %227 = vmatprep.subr.mxu0 0.0
      %228 = vmatpush1.msra.mxu0 0.0
      %229 = vmatprep.subr.mxu0 0.0
      %230 = vmatpush1.msra.mxu0 0.0
      %231 = vmatprep.subr.mxu0 0.0
      %232 = vmatpush1.msra.mxu0 0.0
      %233 = vmatprep.subr.mxu0 0.0
      %234 = vmatpush1.msra.mxu0 0.0
      %235 = vmatprep.subr.mxu0 0.0
      %236 = vmatpush1.msra.mxu0 0.0
      %237 = vmatprep.subr.mxu0 0.0
      %238 = vmatpush1.msra.mxu0 0.0
      %239 = vmatprep.subr.mxu0 0.0
      %240 = vmatpush1.msra.mxu0 0.0
      %241 = vmatprep.subr.mxu0 0.0
      %242 = vmatpush1.msra.mxu0 0.0
      %243 = vmatprep.subr.mxu0 0.0
      %244 = vmatpush1.msra.mxu0 0.0
      %245 = vmatprep.subr.mxu0 0.0
      %246 = vmatpush1.msra.mxu0 0.0
      %247 = vmatprep.subr.mxu0 0.0
      %248 = vmatpush1.msra.mxu0 0.0
      %249 = vmatprep.subr.mxu0 0.0
      %250 = vmatpush1.msra.mxu0 0.0
      %251 = vmatprep.subr.mxu0 0.0
      %252 = vmatpush1.msra.mxu0 0.0
      %253 = vmatprep.subr.mxu0 0.0
      %254 = vmatpush1.msra.mxu0 0.0
      %255 = vmatprep.mubr.f32.mxu0 0.0
      %256 = vmatmul.mubr.f32.gmra.mrb[0].mxu0 %v186
      %v257 = vpop.f32.mrb[0].mxu0
      %v258 = vadd.f32 %v182, %v257
      %v259 = vpop.f32.mrb[0].mxu0
      %260 = vmatprep.mubr.f32.mxu0 0.0
      %261 = vmatmul.mubr.f32.gmra.mrb[0].mxu0 %v189
      %v262 = vpop.f32.mrb[0].mxu0
      %v263 = vadd.f32 %v182, %v262
      %v264 = vpop.f32.mrb[0].mxu0
      %265 = vdwg.mxu0
      %266 = vst.msk [vmem:[%s172] sm:$0xff] %vm184, %v258
      %267 = vst.msk [vmem:[%s172 + $0x8] sm:$0xff] %vm184, %v263
      %s268 = smul.u32 2, %s14
      %p269 = scmp.lt.s32.totalorder %s268, 9
      %s270 = scalar_select %p269, %s268, 9
      %s271 = smul.addr %s270, 8
      %s272 = scalar_lea.vmem %s3, %s271
      // Predicated region
      $region33: #{fwd.24} parent=31 // pred_check
        %p273 = pneg %p100
      $region34: #{fwd.24} parent=31 // pred_check_branch
        %275 = sbr.rel (%p273) target = $region36
      $region35: #{fwd.24} parent=31 // pred_region
        %s276 = smul.u32 2, %s14
      $region36: #{fwd.24} parent=31 // pred_fallthru
        _
    $region32: #{fwd.24} parent=5 // pred_fallthru
      _
    %p277 = scmp.le.s32.totalorder 2, %s9
    // Predicated region
    $region37: #{fwd.24} parent=5 // pred_check
      %p278 = pneg %p277
    $region38: #{fwd.24} parent=5 // pred_check_branch
      %280 = sbr.rel (%p278) target = $region40
    $region39: #{fwd.24} parent=5 // pred_region
      %s281 = ssub.s32 %s9, 2
      // Predicated region
      $region41: #{fwd.24} parent=39 // pred_check
        %p282 = pneg %p106
      $region42: #{fwd.24} parent=39 // pred_check_branch
        %284 = sbr.rel (%p282) target = $region44
      $region43: #{fwd.24} parent=39 // pred_region
        %s285 = smul.u32 2, %s15
        %p286 = scmp.lt.s32.totalorder %s285, 9
        %s287 = scalar_select %p286, %s285, 9
        %s288 = smul.addr %s287, 8
        %s289 = scalar_lea.vmem %s3, %s288
      $region44: #{fwd.24} parent=39 // pred_fallthru
        _
    $region40: #{fwd.24} parent=5 // pred_fallthru
      _
  $region6: #{fwd.24} parent=0 // loop_footer
    %s13 = sadd.s32 1, %s9
  $region7: #{fwd.24} parent=0 // loop_footer_branch
    %8 = sbr.rel target = $region3
  $region8: #{fwd.24} parent=0 // loop_exit
    _

// kernel: fwd.23
$region0: #{fwd.23}
  #allocation0 [shape = 'u32[]', space=smem, size = 0x4, offset = 0x4, fixed_abs, tag = 'smem constant byte address 0x4 - core index']
  #allocation1 [shape = 'u32[144,128]{1,0:T(1,128)}', space=vmem, size = 0x12000, scoped, tag = 'internal scratch']
  %s0 = inlined_call_operand.vmem [shape: f32[2,40,24], index: 0, kind: input, shape index: {}]
  %s1 = inlined_call_operand.vmem [shape: f32[2], index: 1, kind: input, shape index: {}]
  %s2 = inlined_call_operand.vmem [shape: f32[2,40,8], index: 2, kind: output, shape index: {}]
  %s3 = sld [smem:[#allocation0]]
  $region45: #{fwd.23} parent=0
    _
  %s5 = ssub.s32 1, %s3
  %s6 = scalar_select 0, %s5, %s3
  $region1: #{fwd.23} parent=0
    #allocation2 [shape = 'u8[512]{0}', space=smem, size = 0x200, scoped, tag = 'input window, operand 1, single buffered']
    #allocation3 [shape = 's32[2]{0}', space=sflag, size = 0x8, scoped, tag = 'scoped memory for fwd.23']
    %7 = vsyncpa [#allocation3], 0
    loop: start=0, step=1, limit=4
    $region2: #{fwd.23} parent=1 // loop_pre_header
      _
    $region3: #{fwd.23} parent=1 // loop_header
      %s9 = sphi 0, %s13
      %p10 = scmp.ge.s32.totalorder %s9, 4
      %s19 = sphi 0, %s21
      %s22 = sphi 0, %s19
      %s23 = sphi 0, %s22
      %s39 = sphi 0, %s23
      %s43 = sphi 0, %s43
      %s45 = sphi 0, %s43
      %s46 = sphi 0, %s45
      %s60 = sphi 0, %s46
      %s66 = sphi 0, %s68
      %s69 = sphi 0, %s66
      %s70 = sphi 0, %s69
      %s86 = sphi 0, %s70
    $region4: #{fwd.23} parent=1 // loop_header_branch
      %12 = sbr.rel (%p10) target = $region8
    $region5: #{fwd.23} parent=1 // loop_body
      %s14 = ssub.s32 %s9, 1
      %s15 = ssub.s32 %s9, 2
      %s16 = sadd.s32 %s9, 1
      %s17 = ssub.s32 %s9, %s16
      %p18 = scmp.eq.s32.totalorder %s17, 0
      %s20 = sadd.s32 %s19, 1
      %s21 = scalar_select %p18, %s19, %s20
      %p24 = pneg %p18
      %p25 = scmp.eq.s32.totalorder %s9, 1
      %p26 = por %p24, %p25
      %p27 = scmp.ne.s32.totalorder %s19, %s22
      %p28 = scmp.eq.s32.totalorder %s9, 0
      %p29 = por %p27, %p28
      %p30 = scmp.ne.s32.totalorder %s19, %s22
      %p31 = scmp.eq.s32.totalorder %s14, 1
      %p32 = por %p30, %p31
      %p33 = scmp.ne.s32.totalorder %s22, %s23
      %p34 = scmp.eq.s32.totalorder %s14, 0
      %p35 = por %p33, %p34
      %p36 = scmp.ne.s32.totalorder %s22, %s23
      %p37 = scmp.eq.s32.totalorder %s15, 1
      %p38 = por %p36, %p37
      %p40 = scmp.ne.s32.totalorder %s23, %s39
      %p41 = scmp.eq.s32.totalorder %s15, 0
      %p42 = por %p40, %p41
      %s44 = sadd.s32 %s43, 1
      %p47 = scmp.eq.s32.totalorder %s9, 1
      %p48 = scmp.ne.s32.totalorder %s43, %s45
      %p49 = scmp.eq.s32.totalorder %s9, 0
      %p50 = por %p48, %p49
      %p51 = scmp.ne.s32.totalorder %s43, %s45
      %p52 = scmp.eq.s32.totalorder %s14, 1
      %p53 = por %p51, %p52
      %p54 = scmp.ne.s32.totalorder %s45, %s46
      %p55 = scmp.eq.s32.totalorder %s14, 0
      %p56 = por %p54, %p55
      %p57 = scmp.ne.s32.totalorder %s45, %s46
      %p58 = scmp.eq.s32.totalorder %s15, 1
      %p59 = por %p57, %p58
      %p61 = scmp.ne.s32.totalorder %s46, %s60
      %p62 = scmp.eq.s32.totalorder %s15, 0
      %p63 = por %p61, %p62
      %s64 = ssub.s32 %s9, %s16
      %p65 = scmp.eq.s32.totalorder %s64, 0
      %s67 = sadd.s32 %s66, 1
      %s68 = scalar_select %p65, %s66, %s67
      %p71 = pneg %p65
      %p72 = scmp.eq.s32.totalorder %s9, 1
      %p73 = por %p71, %p72
      %p74 = scmp.ne.s32.totalorder %s66, %s69
      %p75 = scmp.eq.s32.totalorder %s9, 0
      %p76 = por %p74, %p75
      %p77 = scmp.ne.s32.totalorder %s66, %s69
      %p78 = scmp.eq.s32.totalorder %s14, 1
      %p79 = por %p77, %p78
      %p80 = scmp.ne.s32.totalorder %s69, %s70
      %p81 = scmp.eq.s32.totalorder %s14, 0
      %p82 = por %p80, %p81
      %p83 = scmp.ne.s32.totalorder %s69, %s70
      %p84 = scmp.eq.s32.totalorder %s15, 1
      %p85 = por %p83, %p84
      %p87 = scmp.ne.s32.totalorder %s70, %s86
      %p88 = scmp.eq.s32.totalorder %s15, 0
      %p89 = por %p87, %p88
      %p90 = scmp.le.s32.totalorder 1, %s9
      %p91 = scmp.lt.s32.totalorder %s9, 3
      %p92 = pnand %p90, %p91
      %p93 = pneg %p92
      // Predicated region
      $region9: #{fwd.23} parent=5 // pred_check
        _
      $region10: #{fwd.23} parent=5 // pred_check_branch
        %95 = sbr.rel (%p92) target = $region12
      $region11: #{fwd.23} parent=5 // pred_region
        %s96 = ssub.s32 %s9, 1
        // Predicated region
        $region13: #{fwd.23} parent=11 // pred_check
          %p97 = pneg %p56
        $region14: #{fwd.23} parent=11 // pred_check_branch
          %99 = sbr.rel (%p97) target = $region16
        $region15: #{fwd.23} parent=11 // pred_region
          %s101 = ssub.s32 16, 16
          %102 = vsyncadd [#allocation3], %s101
          %s104 = sshll.u32 %s1, 4
          %s105 = int_to_ptr.vmem [resolvable:$true] %s104
          %107 = dma.vmem_to_smem %s105, 16, [#allocation2], [#allocation3]
        $region16: #{fwd.23} parent=11 // pred_fallthru
          _
      $region12: #{fwd.23} parent=5 // pred_fallthru
        _
      %p108 = scmp.lt.s32.totalorder %s9, 2
      // Predicated region
      $region17: #{fwd.23} parent=5 // pred_check
        %p109 = pneg %p108
      $region18: #{fwd.23} parent=5 // pred_check_branch
        %111 = sbr.rel (%p109) target = $region20
      $region19: #{fwd.23} parent=5 // pred_region
        // Predicated region
        $region21: #{fwd.23} parent=19 // pred_check
          %p112 = pneg %p29
        $region22: #{fwd.23} parent=19 // pred_check_branch
          %114 = sbr.rel (%p112) target = $region24
        $region23: #{fwd.23} parent=19 // pred_region
          %p115 = scmp.lt.s32.totalorder %s9, 1
          %s116 = scalar_select %p115, %s9, 1
          %s117 = smul.addr %s116, 5
          %s118 = smul.addr %s117, 8
          %s119 = scalar_lea.vmem %s0, %s118
        $region24: #{fwd.23} parent=19 // pred_fallthru
          _
      $region20: #{fwd.23} parent=5 // pred_fallthru
        _
      %p120 = scmp.le.s32.totalorder 1, %s9
      %p121 = scmp.lt.s32.totalorder %s9, 3
      %p122 = pnand %p120, %p121
      %p123 = pneg %p122
      // Predicated region
      $region25: #{fwd.23} parent=5 // pred_check
        _
      $region26: #{fwd.23} parent=5 // pred_check_branch
        %125 = sbr.rel (%p122) target = $region28
      $region27: #{fwd.23} parent=5 // pred_region
        %s126 = ssub.s32 %s9, 1
        // Predicated region
        $region29: #{fwd.23} parent=27 // pred_check
          %p127 = pneg %p56
        $region30: #{fwd.23} parent=27 // pred_check_branch
          %129 = sbr.rel (%p127) target = $region32
        $region31: #{fwd.23} parent=27 // pred_region
          %130 = dma.done [#allocation3], 16
        $region32: #{fwd.23} parent=27 // pred_fallthru
          _
        %131 = sfence
        %p132 = scmp.lt.s32.totalorder %s14, 1
        %s133 = scalar_select %p132, %s14, 1
        %s134 = smul.addr %s133, 5
        %s135 = smul.addr %s134, 8
        %s136 = scalar_lea.vmem %s0, %s135
        %p137 = pneg %p35
        %p138 = pneg %p32
        %p139 = pneg %p56
        %p140 = pneg %p53
        %p141 = pneg %p82
        %p142 = pneg %p79
        %p143 = scmp.lt.s32.totalorder %s14, 1
        %s144 = scalar_select %p143, %s14, 1
        %s145 = smul.addr %s144, 5
        %s146 = smul.addr %s145, 8
        %s147 = scalar_lea.vmem %s2, %s146
        %p148 = scmp.lt.s32.totalorder %s14, 1
        %s149 = scalar_select %p148, %s14, 1
        %s150 = smul.addr %s149, 5
        %s151 = smul.addr %s150, 8
        %s152 = scalar_lea.vmem %s0, %s151
        %p153 = scmp.lt.s32.totalorder %s14, 1
        %s154 = scalar_select %p153, %s14, 1
        %s155 = smul.addr %s154, 5
        %s156 = smul.addr %s155, 8
        %s157 = scalar_lea.vmem %s2, %s156
        %v158 = vld [vmem:[%s152] sm:$0xff]
        %v159 = vld [vmem:[%s152 + $0x8] sm:$0xff]
        %v160 = vld [vmem:[%s152 + $0x10] sm:$0xff]
        %v161 = vld [vmem:[%s152 + $0x18] sm:$0xff]
        %v162 = vld [vmem:[%s152 + $0x20] sm:$0xff]
        %v163 = vmul.f32 %v158, %v158
        %v164 = vmul.f32 %v159, %v159
        %v165 = vmul.f32 %v160, %v160
        %v166 = vmul.f32 %v161, %v161
        %v167 = vmul.f32 %v162, %v162
        %vm168 = vcmask 31744
        %v169 = vsel %vm168, %v163, 0.0
        %v170 = vsel %vm168, %v164, 0.0
        %v171 = vadd.f32 %v169, %v170
        %v172 = vsel %vm168, %v165, 0.0
        %v173 = vadd.f32 %v171, %v172
        %v174 = vsel %vm168, %v166, 0.0
        %v175 = vadd.f32 %v173, %v174
        %v176 = vsel %vm168, %v167, 0.0
        %v177 = vadd.f32 %v175, %v176
        %v178 = vrot.slane %v177, 4
        %v179 = vadd.f32 %v177, %v178
        %v180 = vrot.slane %v179, 2
        %v181 = vadd.f32 %v179, %v180
        %v182 = vrot.slane %v181, 1
        %v183 = vadd.f32 %v181, %v182
        %v184 = vmax.f32 %v183, 1e-24
        %v185 = vrsqrt.pop %v184
        %v186 = vmul.f32 %v158, %v185
        %v187 = vmul.f32 %v159, %v185
        %v188 = vmul.f32 %v160, %v185
        %v189 = vmul.f32 %v161, %v185
        %v190 = vmul.f32 %v162, %v185
        %vm191 = vcmask 97344
        %v192 = vsel %vm191, %v163, 0.0
        %v193 = vsel %vm191, %v164, 0.0
        %v194 = vadd.f32 %v192, %v193
        %v195 = vsel %vm191, %v165, 0.0
        %v196 = vadd.f32 %v194, %v195
        %v197 = vsel %vm191, %v166, 0.0
        %v198 = vadd.f32 %v196, %v197
        %v199 = vsel %vm191, %v167, 0.0
        %v200 = vadd.f32 %v198, %v199
        %v201 = vrot.slane %v200, 4
        %v202 = vadd.f32 %v200, %v201
        %v203 = vrot.slane %v202, 2
        %v204 = vadd.f32 %v202, %v203
        %v205 = vrot.slane %v204, 1
        %v206 = vadd.f32 %v204, %v205
        %v207 = vmax.f32 %v206, 1e-24
        %v208 = vrsqrt.pop %v207
        %v209 = vmul.f32 %v158, %v208
        %v210 = vmul.f32 %v159, %v208
        %v211 = vmul.f32 %v160, %v208
        %v212 = vmul.f32 %v161, %v208
        %v213 = vmul.f32 %v162, %v208
        %219 = vrot.lane.b32.xlu0 %v209, 120
        %v220 = vpop.permute.xlu0 %219
        %221 = vrot.lane.b32.xlu0 %v210, 120
        %v222 = vpop.permute.xlu0 %221
        %223 = vrot.lane.b32.xlu0 %v211, 120
        %v224 = vpop.permute.xlu0 %223
        %225 = vrot.lane.b32.xlu0 %v212, 120
        %v226 = vpop.permute.xlu0 %225
        %227 = vrot.lane.b32.xlu0 %v213, 120
        %v228 = vpop.permute.xlu0 %227
        %234 = vxpose.xlu0.b32.start [1/16] %v220, 128
        %235 = vxpose.xlu0.b32.cont [2/16] %v222, 128
        %236 = vxpose.xlu0.b32.cont [3/16] %v224, 128
        %237 = vxpose.xlu0.b32.cont [4/16] %v226, 128
        %238 = vxpose.xlu0.b32.cont [5/16] %v228, 128
        %239 = vxpose.xlu0.b32.cont [6/16] 0.0, 128
        %240 = vxpose.xlu0.b32.cont [7/16] 0.0, 128
        %241 = vxpose.xlu0.b32.cont [8/16] 0.0, 128
        %242 = vxpose.xlu0.b32.cont [9/16] 0.0, 128
        %243 = vxpose.xlu0.b32.cont [10/16] 0.0, 128
        %244 = vxpose.xlu0.b32.cont [11/16] 0.0, 128
        %245 = vxpose.xlu0.b32.cont [12/16] 0.0, 128
        %246 = vxpose.xlu0.b32.cont [13/16] 0.0, 128
        %247 = vxpose.xlu0.b32.cont [14/16] 0.0, 128
        %248 = vxpose.xlu0.b32.cont [15/16] 0.0, 128
        %249 = vxpose.xlu0.b32.end [16/16] 0.0, 128
        %v250 = vpop.trf.xlu0
        %v251 = vpop.trf.xlu0
        %v252 = vpop.trf.xlu0
        %v253 = vpop.trf.xlu0
        %v254 = vpop.trf.xlu0
        %v255 = vpop.trf.xlu0
        %v256 = vpop.trf.xlu0
        %v257 = vpop.trf.xlu0
        %v258 = vpop.trf.xlu0
        %v259 = vpop.trf.xlu0
        %v260 = vpop.trf.xlu0
        %v261 = vpop.trf.xlu0
        %v262 = vpop.trf.xlu0
        %v263 = vpop.trf.xlu0
        %v264 = vpop.trf.xlu0
        %v265 = vpop.trf.xlu0
        %vm266 = vcmask 326656
        %v268 = vsel %vm266, %v250, 0
        %270 = vmatprep.subr.mxu0 0.0
        %271 = vmatpush1.msra.mxu0 %v186
        %272 = vmatprep.subr.mxu0 0.0
        %273 = vmatpush1.msra.mxu0 %v187
        %274 = vmatprep.subr.mxu0 0.0
        %275 = vmatpush1.msra.mxu0 %v188
        %276 = vmatprep.subr.mxu0 0.0
        %277 = vmatpush1.msra.mxu0 %v189
        %278 = vmatprep.subr.mxu0 0.0
        %279 = vmatpush1.msra.mxu0 %v190
        %280 = vmatprep.subr.mxu0 0.0
        %281 = vmatpush1.msra.mxu0 0.0
        %282 = vmatprep.subr.mxu0 0.0
        %283 = vmatpush1.msra.mxu0 0.0
        %284 = vmatprep.subr.mxu0 0.0
        %285 = vmatpush1.msra.mxu0 0.0
        %286 = vmatprep.subr.mxu0 0.0
        %287 = vmatpush1.msra.mxu0 0.0
        %288 = vmatprep.subr.mxu0 0.0
        %289 = vmatpush1.msra.mxu0 0.0
        %290 = vmatprep.subr.mxu0 0.0
        %291 = vmatpush1.msra.mxu0 0.0
        %292 = vmatprep.subr.mxu0 0.0
        %293 = vmatpush1.msra.mxu0 0.0
        %294 = vmatprep.subr.mxu0 0.0
        %295 = vmatpush1.msra.mxu0 0.0
        %296 = vmatprep.subr.mxu0 0.0
        %297 = vmatpush1.msra.mxu0 0.0
        %298 = vmatprep.subr.mxu0 0.0
        %299 = vmatpush1.msra.mxu0 0.0
        %300 = vmatprep.subr.mxu0 0.0
        %301 = vmatpush1.msra.mxu0 0.0
        %302 = vmatprep.subr.mxu0 0.0
        %303 = vmatpush1.msra.mxu0 0.0
        %304 = vmatprep.subr.mxu0 0.0
        %305 = vmatpush1.msra.mxu0 0.0
        %306 = vmatprep.subr.mxu0 0.0
        %307 = vmatpush1.msra.mxu0 0.0
        %308 = vmatprep.subr.mxu0 0.0
        %309 = vmatpush1.msra.mxu0 0.0
        %310 = vmatprep.subr.mxu0 0.0
        %311 = vmatpush1.msra.mxu0 0.0
        %312 = vmatprep.subr.mxu0 0.0
        %313 = vmatpush1.msra.mxu0 0.0
        %314 = vmatprep.subr.mxu0 0.0
        %315 = vmatpush1.msra.mxu0 0.0
        %316 = vmatprep.subr.mxu0 0.0
        %317 = vmatpush1.msra.mxu0 0.0
        %318 = vmatprep.subr.mxu0 0.0
        %319 = vmatpush1.msra.mxu0 0.0
        %320 = vmatprep.subr.mxu0 0.0
        %321 = vmatpush1.msra.mxu0 0.0
        %322 = vmatprep.subr.mxu0 0.0
        %323 = vmatpush1.msra.mxu0 0.0
        %324 = vmatprep.subr.mxu0 0.0
        %325 = vmatpush1.msra.mxu0 0.0
        %326 = vmatprep.subr.mxu0 0.0
        %327 = vmatpush1.msra.mxu0 0.0
        %328 = vmatprep.subr.mxu0 0.0
        %329 = vmatpush1.msra.mxu0 0.0
        %330 = vmatprep.subr.mxu0 0.0
        %331 = vmatpush1.msra.mxu0 0.0
        %332 = vmatprep.subr.mxu0 0.0
        %333 = vmatpush1.msra.mxu0 0.0
        %334 = vmatprep.mubr.f32.mxu0 0.0
        %335 = vmatmul.mubr.f32.gmra.mrb[0].mxu0 %v268
        %v336 = vpop.f32.mrb[0].mxu0
        %v337 = vadd.f32 0.0, %v336
        %v338 = vpop.f32.mrb[0].mxu0
        %339 = vdwg.mxu0
        %s340 = sld [smem:[#allocation2]]
        %v341 = vstv %s340
        %v342 = vmul.f32 %v337, %v341
        %vm343 = vcmask 27648
        %v344 = vsel %vm343, %v342, -inf
        %345 = vmax.xlane.f32.xlu0 %v344
        %v346 = vpop.xlane.xlu0 %345
        %v347 = vsub.f32 %v342, %v346
        %v348 = vmul.f32 %v347, 1.442695
        %v349 = vpow.pop %v348
        %v350 = vsel %vm343, %v349, 0.0
        %351 = vadd.xlane.f32.xlu0 %v350
        %v352 = vpop.xlane.xlu0 %351
        %v353 = vrcp.pop %v352
        %v354 = vmul.f32 %v349, %v353
        %360 = vrot.lane.b32.xlu0 %v158, 112
        %v361 = vpop.permute.xlu0 %360
        %362 = vrot.lane.b32.xlu0 %v159, 112
        %v363 = vpop.permute.xlu0 %362
        %364 = vrot.lane.b32.xlu0 %v160, 112
        %v365 = vpop.permute.xlu0 %364
        %366 = vrot.lane.b32.xlu0 %v161, 112
        %v367 = vpop.permute.xlu0 %366
        %368 = vrot.lane.b32.xlu0 %v162, 112
        %v369 = vpop.permute.xlu0 %368
        %v370 = vsel %vm168, %v361, 0
        %v372 = vsel %vm168, %v363, 0
        %v374 = vsel %vm168, %v365, 0
        %v376 = vsel %vm168, %v367, 0
        %v378 = vsel %vm168, %v369, 0
        %v381 = vsel %vm168, %v354, 0
        %383 = vmatprep.subr.mxu0 0.0
        %384 = vmatpush1.xpose.msra.mxu0 %v381
        %385 = vmatprep.subr.mxu0 0.0
        %386 = vmatpush1.xpose.msra.mxu0 0.0
        %387 = vmatprep.subr.mxu0 0.0
        %388 = vmatpush1.xpose.msra.mxu0 0.0
        %389 = vmatprep.subr.mxu0 0.0
        %390 = vmatpush1.xpose.msra.mxu0 0.0
        %391 = vmatprep.subr.mxu0 0.0
        %392 = vmatpush1.xpose.msra.mxu0 0.0
        %393 = vmatprep.subr.mxu0 0.0
        %394 = vmatpush1.xpose.msra.mxu0 0.0
        %395 = vmatprep.subr.mxu0 0.0
        %396 = vmatpush1.xpose.msra.mxu0 0.0
        %397 = vmatprep.subr.mxu0 0.0
        %398 = vmatpush1.xpose.msra.mxu0 0.0
        %399 = vmatprep.subr.mxu0 0.0
        %400 = vmatpush1.xpose.msra.mxu0 0.0
        %401 = vmatprep.subr.mxu0 0.0
        %402 = vmatpush1.xpose.msra.mxu0 0.0
        %403 = vmatprep.subr.mxu0 0.0
        %404 = vmatpush1.xpose.msra.mxu0 0.0
        %405 = vmatprep.subr.mxu0 0.0
        %406 = vmatpush1.xpose.msra.mxu0 0.0
        %407 = vmatprep.subr.mxu0 0.0
        %408 = vmatpush1.xpose.msra.mxu0 0.0
        %409 = vmatprep.subr.mxu0 0.0
        %410 = vmatpush1.xpose.msra.mxu0 0.0
        %411 = vmatprep.subr.mxu0 0.0
        %412 = vmatpush1.xpose.msra.mxu0 0.0
        %413 = vmatprep.subr.mxu0 0.0
        %414 = vmatpush1.xpose.msra.mxu0 0.0
        %415 = vmatprep.subr.mxu0 0.0
        %416 = vmatpush1.xpose.msra.mxu0 0.0
        %417 = vmatprep.subr.mxu0 0.0
        %418 = vmatpush1.xpose.msra.mxu0 0.0
        %419 = vmatprep.subr.mxu0 0.0
        %420 = vmatpush1.xpose.msra.mxu0 0.0
        %421 = vmatprep.subr.mxu0 0.0
        %422 = vmatpush1.xpose.msra.mxu0 0.0
        %423 = vmatprep.subr.mxu0 0.0
        %424 = vmatpush1.xpose.msra.mxu0 0.0
        %425 = vmatprep.subr.mxu0 0.0
        %426 = vmatpush1.xpose.msra.mxu0 0.0
        %427 = vmatprep.subr.mxu0 0.0
        %428 = vmatpush1.xpose.msra.mxu0 0.0
        %429 = vmatprep.subr.mxu0 0.0
        %430 = vmatpush1.xpose.msra.mxu0 0.0
        %431 = vmatprep.subr.mxu0 0.0
        %432 = vmatpush1.xpose.msra.mxu0 0.0
        %433 = vmatprep.subr.mxu0 0.0
        %434 = vmatpush1.xpose.msra.mxu0 0.0
        %435 = vmatprep.subr.mxu0 0.0
        %436 = vmatpush1.xpose.msra.mxu0 0.0
        %437 = vmatprep.subr.mxu0 0.0
        %438 = vmatpush1.xpose.msra.mxu0 0.0
        %439 = vmatprep.subr.mxu0 0.0
        %440 = vmatpush1.xpose.msra.mxu0 0.0
        %441 = vmatprep.subr.mxu0 0.0
        %442 = vmatpush1.xpose.msra.mxu0 0.0
        %443 = vmatprep.subr.mxu0 0.0
        %444 = vmatpush1.xpose.msra.mxu0 0.0
        %445 = vmatprep.subr.mxu0 0.0
        %446 = vmatpush1.xpose.msra.mxu0 0.0
        %447 = vmatprep.mubr.f32.mxu0 0.0
        %448 = vmatmul.mubr.f32.gmra.mrb[0].mxu0 %v370
        %v449 = vpop.f32.mrb[0].mxu0
        %v450 = vadd.f32 0.0, %v449
        %v451 = vpop.f32.mrb[0].mxu0
        %452 = vmatprep.mubr.f32.mxu0 0.0
        %453 = vmatmul.mubr.f32.gmra.mrb[0].mxu0 %v372
        %v454 = vpop.f32.mrb[0].mxu0
        %v455 = vadd.f32 0.0, %v454
        %v456 = vpop.f32.mrb[0].mxu0
        %457 = vmatprep.mubr.f32.mxu0 0.0
        %458 = vmatmul.mubr.f32.gmra.mrb[0].mxu0 %v374
        %v459 = vpop.f32.mrb[0].mxu0
        %v460 = vadd.f32 0.0, %v459
        %v461 = vpop.f32.mrb[0].mxu0
        %462 = vmatprep.mubr.f32.mxu0 0.0
        %463 = vmatmul.mubr.f32.gmra.mrb[0].mxu0 %v376
        %v464 = vpop.f32.mrb[0].mxu0
        %v465 = vadd.f32 0.0, %v464
        %v466 = vpop.f32.mrb[0].mxu0
        %467 = vmatprep.mubr.f32.mxu0 0.0
        %468 = vmatmul.mubr.f32.gmra.mrb[0].mxu0 %v378
        %v469 = vpop.f32.mrb[0].mxu0
        %v470 = vadd.f32 0.0, %v469
        %v471 = vpop.f32.mrb[0].mxu0
        %472 = vdwg.mxu0
        %vm473 = vcmask 64544
        %v474 = vsel %vm473, %v163, 0.0
        %v475 = vsel %vm473, %v164, 0.0
        %v476 = vadd.f32 %v474, %v475
        %v477 = vsel %vm473, %v165, 0.0
        %v478 = vadd.f32 %v476, %v477
        %v479 = vsel %vm473, %v166, 0.0
        %v480 = vadd.f32 %v478, %v479
        %v481 = vsel %vm473, %v167, 0.0
        %v482 = vadd.f32 %v480, %v481
        %v483 = vrot.slane %v482, 4
        %v484 = vadd.f32 %v482, %v483
        %v485 = vrot.slane %v484, 2
        %v486 = vadd.f32 %v484, %v485
        %v487 = vrot.slane %v486, 1
        %v488 = vadd.f32 %v486, %v487
        %v489 = vmax.f32 %v488, 1e-24
        %v490 = vrsqrt.pop %v489
        %v491 = vmul.f32 %v158, %v490
        %v492 = vmul.f32 %v159, %v490
        %v493 = vmul.f32 %v160, %v490
        %v494 = vmul.f32 %v161, %v490
        %v495 = vmul.f32 %v162, %v490
        %vm496 = vcmask 130144
        %v497 = vsel %vm496, %v163, 0.0
        %v498 = vsel %vm496, %v164, 0.0
        %v499 = vadd.f32 %v497, %v498
        %v500 = vsel %vm496, %v165, 0.0
        %v501 = vadd.f32 %v499, %v500
        %v502 = vsel %vm496, %v166, 0.0
        %v503 = vadd.f32 %v501, %v502
        %v504 = vsel %vm496, %v167, 0.0
        %v505 = vadd.f32 %v503, %v504
        %v506 = vrot.slane %v505, 4
        %v507 = vadd.f32 %v505, %v506
        %v508 = vrot.slane %v507, 2
        %v509 = vadd.f32 %v507, %v508
        %v510 = vrot.slane %v509, 1
        %v511 = vadd.f32 %v509, %v510
        %v512 = vmax.f32 %v511, 1e-24
        %v513 = vrsqrt.pop %v512
        %v514 = vmul.f32 %v158, %v513
        %v515 = vmul.f32 %v159, %v513
        %v516 = vmul.f32 %v160, %v513
        %v517 = vmul.f32 %v161, %v513
        %v518 = vmul.f32 %v162, %v513
        %524 = vrot.lane.b32.xlu0 %v514, 116
        %v525 = vpop.permute.xlu0 %524
        %526 = vrot.lane.b32.xlu0 %v515, 116
        %v527 = vpop.permute.xlu0 %526
        %528 = vrot.lane.b32.xlu0 %v516, 116
        %v529 = vpop.permute.xlu0 %528
        %530 = vrot.lane.b32.xlu0 %v517, 116
        %v531 = vpop.permute.xlu0 %530
        %532 = vrot.lane.b32.xlu0 %v518, 116
        %v533 = vpop.permute.xlu0 %532
        %539 = vxpose.xlu0.b32.start [1/16] %v525, 128
        %540 = vxpose.xlu0.b32.cont [2/16] %v527, 128
        %541 = vxpose.xlu0.b32.cont [3/16] %v529, 128
        %542 = vxpose.xlu0.b32.cont [4/16] %v531, 128
        %543 = vxpose.xlu0.b32.cont [5/16] %v533, 128
        %544 = vxpose.xlu0.b32.cont [6/16] 0.0, 128
        %545 = vxpose.xlu0.b32.cont [7/16] 0.0, 128
        %546 = vxpose.xlu0.b32.cont [8/16] 0.0, 128
        %547 = vxpose.xlu0.b32.cont [9/16] 0.0, 128
        %548 = vxpose.xlu0.b32.cont [10/16] 0.0, 128
        %549 = vxpose.xlu0.b32.cont [11/16] 0.0, 128
        %550 = vxpose.xlu0.b32.cont [12/16] 0.0, 128
        %551 = vxpose.xlu0.b32.cont [13/16] 0.0, 128
        %552 = vxpose.xlu0.b32.cont [14/16] 0.0, 128
        %553 = vxpose.xlu0.b32.cont [15/16] 0.0, 128
        %554 = vxpose.xlu0.b32.end [16/16] 0.0, 128
        %v555 = vpop.trf.xlu0
        %v556 = vpop.trf.xlu0
        %v557 = vpop.trf.xlu0
        %v558 = vpop.trf.xlu0
        %v559 = vpop.trf.xlu0
        %v560 = vpop.trf.xlu0
        %v561 = vpop.trf.xlu0
        %v562 = vpop.trf.xlu0
        %v563 = vpop.trf.xlu0
        %v564 = vpop.trf.xlu0
        %v565 = vpop.trf.xlu0
        %v566 = vpop.trf.xlu0
        %v567 = vpop.trf.xlu0
        %v568 = vpop.trf.xlu0
        %v569 = vpop.trf.xlu0
        %v570 = vpop.trf.xlu0
        %576 = vrot.lane.b32.xlu0 %v491, 124
        %v577 = vpop.permute.xlu0 %576
        %578 = vrot.lane.b32.xlu0 %v492, 124
        %v579 = vpop.permute.xlu0 %578
        %580 = vrot.lane.b32.xlu0 %v493, 124
        %v581 = vpop.permute.xlu0 %580
        %582 = vrot.lane.b32.xlu0 %v494, 124
        %v583 = vpop.permute.xlu0 %582
        %584 = vrot.lane.b32.xlu0 %v495, 124
        %v585 = vpop.permute.xlu0 %584
        %v592 = vsel %vm266, %v555, 0
        %594 = vmatprep.subr.mxu0 0.0
        %595 = vmatpush1.msra.mxu0 %v577
        %596 = vmatprep.subr.mxu0 0.0
        %597 = vmatpush1.msra.mxu0 %v579
        %598 = vmatprep.subr.mxu0 0.0
        %599 = vmatpush1.msra.mxu0 %v581
        %600 = vmatprep.subr.mxu0 0.0
        %601 = vmatpush1.msra.mxu0 %v583
        %602 = vmatprep.subr.mxu0 0.0
        %603 = vmatpush1.msra.mxu0 %v585
        %604 = vmatprep.subr.mxu0 0.0
        %605 = vmatpush1.msra.mxu0 0.0
        %606 = vmatprep.subr.mxu0 0.0
        %607 = vmatpush1.msra.mxu0 0.0
        %608 = vmatprep.subr.mxu0 0.0
        %609 = vmatpush1.msra.mxu0 0.0
        %610 = vmatprep.subr.mxu0 0.0
        %611 = vmatpush1.msra.mxu0 0.0
        %612 = vmatprep.subr.mxu0 0.0
        %613 = vmatpush1.msra.mxu0 0.0
        %614 = vmatprep.subr.mxu0 0.0
        %615 = vmatpush1.msra.mxu0 0.0
        %616 = vmatprep.subr.mxu0 0.0
        %617 = vmatpush1.msra.mxu0 0.0
        %618 = vmatprep.subr.mxu0 0.0
        %619 = vmatpush1.msra.mxu0 0.0
        %620 = vmatprep.subr.mxu0 0.0
        %621 = vmatpush1.msra.mxu0 0.0
        %622 = vmatprep.subr.mxu0 0.0
        %623 = vmatpush1.msra.mxu0 0.0
        %624 = vmatprep.subr.mxu0 0.0
        %625 = vmatpush1.msra.mxu0 0.0
        %626 = vmatprep.subr.mxu0 0.0
        %627 = vmatpush1.msra.mxu0 0.0
        %628 = vmatprep.subr.mxu0 0.0
        %629 = vmatpush1.msra.mxu0 0.0
        %630 = vmatprep.subr.mxu0 0.0
        %631 = vmatpush1.msra.mxu0 0.0
        %632 = vmatprep.subr.mxu0 0.0
        %633 = vmatpush1.msra.mxu0 0.0
        %634 = vmatprep.subr.mxu0 0.0
        %635 = vmatpush1.msra.mxu0 0.0
        %636 = vmatprep.subr.mxu0 0.0
        %637 = vmatpush1.msra.mxu0 0.0
        %638 = vmatprep.subr.mxu0 0.0
        %639 = vmatpush1.msra.mxu0 0.0
        %640 = vmatprep.subr.mxu0 0.0
        %641 = vmatpush1.msra.mxu0 0.0
        %642 = vmatprep.subr.mxu0 0.0
        %643 = vmatpush1.msra.mxu0 0.0
        %644 = vmatprep.subr.mxu0 0.0
        %645 = vmatpush1.msra.mxu0 0.0
        %646 = vmatprep.subr.mxu0 0.0
        %647 = vmatpush1.msra.mxu0 0.0
        %648 = vmatprep.subr.mxu0 0.0
        %649 = vmatpush1.msra.mxu0 0.0
        %650 = vmatprep.subr.mxu0 0.0
        %651 = vmatpush1.msra.mxu0 0.0
        %652 = vmatprep.subr.mxu0 0.0
        %653 = vmatpush1.msra.mxu0 0.0
        %654 = vmatprep.subr.mxu0 0.0
        %655 = vmatpush1.msra.mxu0 0.0
        %656 = vmatprep.subr.mxu0 0.0
        %657 = vmatpush1.msra.mxu0 0.0
        %658 = vmatprep.mubr.f32.mxu0 0.0
        %659 = vmatmul.mubr.f32.gmra.mrb[0].mxu0 %v592
        %v660 = vpop.f32.mrb[0].mxu0
        %v661 = vadd.f32 0.0, %v660
        %v662 = vpop.f32.mrb[0].mxu0
        %663 = vdwg.mxu0
        %s664 = sld [smem:[#allocation2 + $0x1]]
        %v665 = vstv %s664
        %v666 = vmul.f32 %v661, %v665
        %v667 = vsel %vm343, %v666, -inf
        %668 = vmax.xlane.f32.xlu0 %v667
        %v669 = vpop.xlane.xlu0 %668
        %v670 = vsub.f32 %v666, %v669
        %v671 = vmul.f32 %v670, 1.442695
        %v672 = vpow.pop %v671
        %v673 = vsel %vm343, %v672, 0.0
        %674 = vadd.xlane.f32.xlu0 %v673
        %v675 = vpop.xlane.xlu0 %674
        %v676 = vrcp.pop %v675
        %v677 = vmul.f32 %v672, %v676
        %678 = vrot.lane.b32.xlu0 %v158, 108
        %v679 = vpop.permute.xlu0 %678
        %680 = vrot.lane.b32.xlu0 %v159, 108
        %v681 = vpop.permute.xlu0 %680
        %682 = vrot.lane.b32.xlu0 %v160, 108
        %v683 = vpop.permute.xlu0 %682
        %684 = vrot.lane.b32.xlu0 %v161, 108
        %v685 = vpop.permute.xlu0 %684
        %686 = vrot.lane.b32.xlu0 %v162, 108
        %v687 = vpop.permute.xlu0 %686
        %v688 = vsel %vm168, %v679, 0
        %v690 = vsel %vm168, %v681, 0
        %v692 = vsel %vm168, %v683, 0
        %v694 = vsel %vm168, %v685, 0
        %v696 = vsel %vm168, %v687, 0
        %v699 = vsel %vm168, %v677, 0
        %701 = vmatprep.subr.mxu0 0.0
        %702 = vmatpush1.xpose.msra.mxu0 %v699
        %703 = vmatprep.subr.mxu0 0.0
        %704 = vmatpush1.xpose.msra.mxu0 0.0
        %705 = vmatprep.subr.mxu0 0.0
        %706 = vmatpush1.xpose.msra.mxu0 0.0
        %707 = vmatprep.subr.mxu0 0.0
        %708 = vmatpush1.xpose.msra.mxu0 0.0
        %709 = vmatprep.subr.mxu0 0.0
        %710 = vmatpush1.xpose.msra.mxu0 0.0
        %711 = vmatprep.subr.mxu0 0.0
        %712 = vmatpush1.xpose.msra.mxu0 0.0
        %713 = vmatprep.subr.mxu0 0.0
        %714 = vmatpush1.xpose.msra.mxu0 0.0
        %715 = vmatprep.subr.mxu0 0.0
        %716 = vmatpush1.xpose.msra.mxu0 0.0
        %717 = vmatprep.subr.mxu0 0.0
        %718 = vmatpush1.xpose.msra.mxu0 0.0
        %719 = vmatprep.subr.mxu0 0.0
        %720 = vmatpush1.xpose.msra.mxu0 0.0
        %721 = vmatprep.subr.mxu0 0.0
        %722 = vmatpush1.xpose.msra.mxu0 0.0
        %723 = vmatprep.subr.mxu0 0.0
        %724 = vmatpush1.xpose.msra.mxu0 0.0
        %725 = vmatprep.subr.mxu0 0.0
        %726 = vmatpush1.xpose.msra.mxu0 0.0
        %727 = vmatprep.subr.mxu0 0.0
        %728 = vmatpush1.xpose.msra.mxu0 0.0
        %729 = vmatprep.subr.mxu0 0.0
        %730 = vmatpush1.xpose.msra.mxu0 0.0
        %731 = vmatprep.subr.mxu0 0.0
        %732 = vmatpush1.xpose.msra.mxu0 0.0
        %733 = vmatprep.subr.mxu0 0.0
        %734 = vmatpush1.xpose.msra.mxu0 0.0
        %735 = vmatprep.subr.mxu0 0.0
        %736 = vmatpush1.xpose.msra.mxu0 0.0
        %737 = vmatprep.subr.mxu0 0.0
        %738 = vmatpush1.xpose.msra.mxu0 0.0
        %739 = vmatprep.subr.mxu0 0.0
        %740 = vmatpush1.xpose.msra.mxu0 0.0
        %741 = vmatprep.subr.mxu0 0.0
        %742 = vmatpush1.xpose.msra.mxu0 0.0
        %743 = vmatprep.subr.mxu0 0.0
        %744 = vmatpush1.xpose.msra.mxu0 0.0
        %745 = vmatprep.subr.mxu0 0.0
        %746 = vmatpush1.xpose.msra.mxu0 0.0
        %747 = vmatprep.subr.mxu0 0.0
        %748 = vmatpush1.xpose.msra.mxu0 0.0
        %749 = vmatprep.subr.mxu0 0.0
        %750 = vmatpush1.xpose.msra.mxu0 0.0
        %751 = vmatprep.subr.mxu0 0.0
        %752 = vmatpush1.xpose.msra.mxu0 0.0
        %753 = vmatprep.subr.mxu0 0.0
        %754 = vmatpush1.xpose.msra.mxu0 0.0
        %755 = vmatprep.subr.mxu0 0.0
        %756 = vmatpush1.xpose.msra.mxu0 0.0
        %757 = vmatprep.subr.mxu0 0.0
        %758 = vmatpush1.xpose.msra.mxu0 0.0
        %759 = vmatprep.subr.mxu0 0.0
        %760 = vmatpush1.xpose.msra.mxu0 0.0
        %761 = vmatprep.subr.mxu0 0.0
        %762 = vmatpush1.xpose.msra.mxu0 0.0
        %763 = vmatprep.subr.mxu0 0.0
        %764 = vmatpush1.xpose.msra.mxu0 0.0
        %765 = vmatprep.mubr.f32.mxu0 0.0
        %766 = vmatmul.mubr.f32.gmra.mrb[0].mxu0 %v688
        %v767 = vpop.f32.mrb[0].mxu0
        %v768 = vadd.f32 0.0, %v767
        %v769 = vpop.f32.mrb[0].mxu0
        %770 = vmatprep.mubr.f32.mxu0 0.0
        %771 = vmatmul.mubr.f32.gmra.mrb[0].mxu0 %v690
        %v772 = vpop.f32.mrb[0].mxu0
        %v773 = vadd.f32 0.0, %v772
        %v774 = vpop.f32.mrb[0].mxu0
        %775 = vmatprep.mubr.f32.mxu0 0.0
        %776 = vmatmul.mubr.f32.gmra.mrb[0].mxu0 %v692
        %v777 = vpop.f32.mrb[0].mxu0
        %v778 = vadd.f32 0.0, %v777
        %v779 = vpop.f32.mrb[0].mxu0
        %780 = vmatprep.mubr.f32.mxu0 0.0
        %781 = vmatmul.mubr.f32.gmra.mrb[0].mxu0 %v694
        %v782 = vpop.f32.mrb[0].mxu0
        %v783 = vadd.f32 0.0, %v782
        %v784 = vpop.f32.mrb[0].mxu0
        %785 = vmatprep.mubr.f32.mxu0 0.0
        %786 = vmatmul.mubr.f32.gmra.mrb[0].mxu0 %v696
        %v787 = vpop.f32.mrb[0].mxu0
        %v788 = vadd.f32 0.0, %v787
        %v789 = vpop.f32.mrb[0].mxu0
        %790 = vdwg.mxu0
        %796 = vrot.lane.b32.xlu0 %v768, 4
        %v797 = vpop.permute.xlu0 %796
        %798 = vrot.lane.b32.xlu0 %v773, 4
        %v799 = vpop.permute.xlu0 %798
        %800 = vrot.lane.b32.xlu0 %v778, 4
        %v801 = vpop.permute.xlu0 %800
        %802 = vrot.lane.b32.xlu0 %v783, 4
        %v803 = vpop.permute.xlu0 %802
        %804 = vrot.lane.b32.xlu0 %v788, 4
        %v805 = vpop.permute.xlu0 %804
        %v811 = vsel %vm168, %v450, %v797
        %v812 = vsel %vm168, %v455, %v799
        %v813 = vsel %vm168, %v460, %v801
        %v814 = vsel %vm168, %v465, %v803
        %v815 = vsel %vm168, %v470, %v805
        %vm816 = vcmask 64512
        %817 = vst.msk [vmem:[%s157] sm:$0xff] %vm816, %v811
        %818 = vst.msk [vmem:[%s157 + $0x8] sm:$0xff] %vm816, %v812
        %819 = vst.msk [vmem:[%s157 + $0x10] sm:$0xff] %vm816, %v813
        %820 = vst.msk [vmem:[%s157 + $0x18] sm:$0xff] %vm816, %v814
        %821 = vst.msk [vmem:[%s157 + $0x20] sm:$0xff] %vm816, %v815
        %p822 = scmp.lt.s32.totalorder %s14, 1
        %s823 = scalar_select %p822, %s14, 1
        %s824 = smul.addr %s823, 5
        %s825 = smul.addr %s824, 8
        %s826 = scalar_lea.vmem %s2, %s825
        // Predicated region
        $region33: #{fwd.23} parent=27 // pred_check
          %p827 = pneg %p79
        $region34: #{fwd.23} parent=27 // pred_check_branch
          %829 = sbr.rel (%p827) target = $region36
        $region35: #{fwd.23} parent=27 // pred_region
          _
        $region36: #{fwd.23} parent=27 // pred_fallthru
          _
      $region28: #{fwd.23} parent=5 // pred_fallthru
        _
      %p830 = scmp.le.s32.totalorder 2, %s9
      // Predicated region
      $region37: #{fwd.23} parent=5 // pred_check
        %p831 = pneg %p830
      $region38: #{fwd.23} parent=5 // pred_check_branch
        %833 = sbr.rel (%p831) target = $region40
      $region39: #{fwd.23} parent=5 // pred_region
        %s834 = ssub.s32 %s9, 2
        // Predicated region
        $region41: #{fwd.23} parent=39 // pred_check
          %p835 = pneg %p85
        $region42: #{fwd.23} parent=39 // pred_check_branch
          %837 = sbr.rel (%p835) target = $region44
        $region43: #{fwd.23} parent=39 // pred_region
          %p838 = scmp.lt.s32.totalorder %s15, 1
          %s839 = scalar_select %p838, %s15, 1
          %s840 = smul.addr %s839, 5
          %s841 = smul.addr %s840, 8
          %s842 = scalar_lea.vmem %s2, %s841
        $region44: #{fwd.23} parent=39 // pred_fallthru
          _
      $region40: #{fwd.23} parent=5 // pred_fallthru
        _
    $region6: #{fwd.23} parent=1 // loop_footer
      %s13 = sadd.s32 1, %s9
    $region7: #{fwd.23} parent=1 // loop_footer_branch
      %8 = sbr.rel target = $region3
    $region8: #{fwd.23} parent=1 // loop_exit
      _
    %843 = vsyncpa [#allocation3], 1
    %s844 = scalar_lea.sflag [#allocation3], 1
    %845 = vsyncpa %s844, 1

// kernel: fwd.37
$region0: #{fwd.37}
  #allocation0 [shape = 'u32[]', space=smem, size = 0x4, offset = 0x4, fixed_abs, tag = 'smem constant byte address 0x4 - core index']
  #allocation1 [shape = 'u32[144,128]{1,0:T(1,128)}', space=vmem, size = 0x12000, scoped, tag = 'internal scratch']
  %s0 = inlined_call_operand.vmem [shape: f32[80,8], index: 0, kind: input, shape index: {}]
  %s1 = inlined_call_operand.vmem [shape: f32[8,32], index: 1, kind: input, shape index: {}]
  %s2 = inlined_call_operand.vmem [shape: f32[80,32], index: 2, kind: output, shape index: {}]
  %s3 = sld [smem:[#allocation0]]
  $region41: #{fwd.37} parent=0
    _
  %s5 = ssub.s32 1, %s3
  %s6 = scalar_select 0, %s5, %s3
  loop: start=0, step=1, limit=7
  $region2: #{fwd.37} parent=0 // loop_pre_header
    _
  $region3: #{fwd.37} parent=0 // loop_header
    %s8 = sphi 0, %s12
    %p9 = scmp.ge.s32.totalorder %s8, 7
    %s18 = sphi 0, %s20
    %s21 = sphi 0, %s18
    %s22 = sphi 0, %s21
    %s38 = sphi 0, %s22
    %s42 = sphi 0, %s42
    %s44 = sphi 0, %s42
    %s45 = sphi 0, %s44
    %s59 = sphi 0, %s45
    %s65 = sphi 0, %s67
    %s68 = sphi 0, %s65
    %s69 = sphi 0, %s68
    %s85 = sphi 0, %s69
  $region4: #{fwd.37} parent=0 // loop_header_branch
    %11 = sbr.rel (%p9) target = $region8
  $region5: #{fwd.37} parent=0 // loop_body
    %s13 = ssub.s32 %s8, 1
    %s14 = ssub.s32 %s8, 2
    %s15 = sadd.s32 %s8, 1
    %s16 = ssub.s32 %s8, %s15
    %p17 = scmp.eq.s32.totalorder %s16, 0
    %s19 = sadd.s32 %s18, 1
    %s20 = scalar_select %p17, %s18, %s19
    %p23 = pneg %p17
    %p24 = scmp.eq.s32.totalorder %s8, 4
    %p25 = por %p23, %p24
    %p26 = scmp.ne.s32.totalorder %s18, %s21
    %p27 = scmp.eq.s32.totalorder %s8, 0
    %p28 = por %p26, %p27
    %p29 = scmp.ne.s32.totalorder %s18, %s21
    %p30 = scmp.eq.s32.totalorder %s13, 4
    %p31 = por %p29, %p30
    %p32 = scmp.ne.s32.totalorder %s21, %s22
    %p33 = scmp.eq.s32.totalorder %s13, 0
    %p34 = por %p32, %p33
    %p35 = scmp.ne.s32.totalorder %s21, %s22
    %p36 = scmp.eq.s32.totalorder %s14, 4
    %p37 = por %p35, %p36
    %p39 = scmp.ne.s32.totalorder %s22, %s38
    %p40 = scmp.eq.s32.totalorder %s14, 0
    %p41 = por %p39, %p40
    %s43 = sadd.s32 %s42, 1
    %p46 = scmp.eq.s32.totalorder %s8, 4
    %p47 = scmp.ne.s32.totalorder %s42, %s44
    %p48 = scmp.eq.s32.totalorder %s8, 0
    %p49 = por %p47, %p48
    %p50 = scmp.ne.s32.totalorder %s42, %s44
    %p51 = scmp.eq.s32.totalorder %s13, 4
    %p52 = por %p50, %p51
    %p53 = scmp.ne.s32.totalorder %s44, %s45
    %p54 = scmp.eq.s32.totalorder %s13, 0
    %p55 = por %p53, %p54
    %p56 = scmp.ne.s32.totalorder %s44, %s45
    %p57 = scmp.eq.s32.totalorder %s14, 4
    %p58 = por %p56, %p57
    %p60 = scmp.ne.s32.totalorder %s45, %s59
    %p61 = scmp.eq.s32.totalorder %s14, 0
    %p62 = por %p60, %p61
    %s63 = ssub.s32 %s8, %s15
    %p64 = scmp.eq.s32.totalorder %s63, 0
    %s66 = sadd.s32 %s65, 1
    %s67 = scalar_select %p64, %s65, %s66
    %p70 = pneg %p64
    %p71 = scmp.eq.s32.totalorder %s8, 4
    %p72 = por %p70, %p71
    %p73 = scmp.ne.s32.totalorder %s65, %s68
    %p74 = scmp.eq.s32.totalorder %s8, 0
    %p75 = por %p73, %p74
    %p76 = scmp.ne.s32.totalorder %s65, %s68
    %p77 = scmp.eq.s32.totalorder %s13, 4
    %p78 = por %p76, %p77
    %p79 = scmp.ne.s32.totalorder %s68, %s69
    %p80 = scmp.eq.s32.totalorder %s13, 0
    %p81 = por %p79, %p80
    %p82 = scmp.ne.s32.totalorder %s68, %s69
    %p83 = scmp.eq.s32.totalorder %s14, 4
    %p84 = por %p82, %p83
    %p86 = scmp.ne.s32.totalorder %s69, %s85
    %p87 = scmp.eq.s32.totalorder %s14, 0
    %p88 = por %p86, %p87
    %p89 = scmp.le.s32.totalorder 1, %s8
    %p90 = scmp.lt.s32.totalorder %s8, 6
    %p91 = pnand %p89, %p90
    %p92 = pneg %p91
    // Predicated region
    $region9: #{fwd.37} parent=5 // pred_check
      _
    $region10: #{fwd.37} parent=5 // pred_check_branch
      %94 = sbr.rel (%p91) target = $region12
    $region11: #{fwd.37} parent=5 // pred_region
      %s95 = ssub.s32 %s8, 1
      // Predicated region
      $region13: #{fwd.37} parent=11 // pred_check
        %p96 = pneg %p55
      $region14: #{fwd.37} parent=11 // pred_check_branch
        %98 = sbr.rel (%p96) target = $region16
      $region15: #{fwd.37} parent=11 // pred_region
        _
      $region16: #{fwd.37} parent=11 // pred_fallthru
        _
    $region12: #{fwd.37} parent=5 // pred_fallthru
      _
    %p99 = scmp.lt.s32.totalorder %s8, 5
    // Predicated region
    $region17: #{fwd.37} parent=5 // pred_check
      %p100 = pneg %p99
    $region18: #{fwd.37} parent=5 // pred_check_branch
      %102 = sbr.rel (%p100) target = $region20
    $region19: #{fwd.37} parent=5 // pred_region
      // Predicated region
      $region21: #{fwd.37} parent=19 // pred_check
        %p103 = pneg %p28
      $region22: #{fwd.37} parent=19 // pred_check_branch
        %105 = sbr.rel (%p103) target = $region24
      $region23: #{fwd.37} parent=19 // pred_region
        %s106 = smul.u32 2, %s8
        %p107 = scmp.lt.s32.totalorder %s106, 9
        %s108 = scalar_select %p107, %s106, 9
        %s109 = smul.addr %s108, 8
        %s110 = scalar_lea.vmem %s0, %s109
        %s111 = smul.u32 2, %s8
      $region24: #{fwd.37} parent=19 // pred_fallthru
        _
    $region20: #{fwd.37} parent=5 // pred_fallthru
      _
    %p112 = scmp.le.s32.totalorder 1, %s8
    %p113 = scmp.lt.s32.totalorder %s8, 6
    %p114 = pnand %p112, %p113
    %p115 = pneg %p114
    // Predicated region
    $region25: #{fwd.37} parent=5 // pred_check
      _
    $region26: #{fwd.37} parent=5 // pred_check_branch
      %117 = sbr.rel (%p114) target = $region28
    $region27: #{fwd.37} parent=5 // pred_region
      %s118 = ssub.s32 %s8, 1
      %s119 = smul.u32 2, %s13
      %p120 = scmp.lt.s32.totalorder %s119, 9
      %s121 = scalar_select %p120, %s119, 9
      %s122 = smul.addr %s121, 8
      %s123 = scalar_lea.vmem %s0, %s122
      %p124 = pneg %p34
      %p125 = pneg %p31
      %p126 = pneg %p55
      %p127 = pneg %p52
      %p128 = pneg %p81
      %p129 = pneg %p78
      %s130 = smul.u32 2, %s13
      %p131 = scmp.lt.s32.totalorder %s130, 9
      %s132 = scalar_select %p131, %s130, 9
      %s133 = smul.addr %s132, 8
      %s134 = scalar_lea.vmem %s2, %s133
      %s135 = smul.u32 2, %s13
      %p136 = scmp.lt.s32.totalorder %s135, 9
      %s137 = scalar_select %p136, %s135, 9
      %s138 = smul.addr %s137, 8
      %s139 = scalar_lea.vmem %s0, %s138
      %s140 = smul.u32 2, %s13
      %s141 = smul.u32 2, %s13
      %p142 = scmp.lt.s32.totalorder %s141, 9
      %s143 = scalar_select %p142, %s141, 9
      %s144 = smul.addr %s143, 8
      %s145 = scalar_lea.vmem %s2, %s144
      %s146 = smul.u32 2, %s13
      %v147 = vld [vmem:[%s139] sm:$0xff]
      %v148 = vld [vmem:[%s139 + $0x8] sm:$0xff]
      %v149 = vld [vmem:[%s1] sm:$0xff]
      %vm150 = vcmask 64512
      %v152 = vsel %vm150, %v147, 0
      %v155 = vsel %vm150, %v148, 0
      %157 = vmatprep.subr.mxu0 0.0
      %158 = vmatpush1.msra.mxu0 %v149
      %159 = vmatprep.subr.mxu0 0.0
      %160 = vmatpush1.msra.mxu0 0.0
      %161 = vmatprep.subr.mxu0 0.0
      %162 = vmatpush1.msra.mxu0 0.0
      %163 = vmatprep.subr.mxu0 0.0
      %164 = vmatpush1.msra.mxu0 0.0
      %165 = vmatprep.subr.mxu0 0.0
      %166 = vmatpush1.msra.mxu0 0.0
      %167 = vmatprep.subr.mxu0 0.0
      %168 = vmatpush1.msra.mxu0 0.0
      %169 = vmatprep.subr.mxu0 0.0
      %170 = vmatpush1.msra.mxu0 0.0
      %171 = vmatprep.subr.mxu0 0.0
      %172 = vmatpush1.msra.mxu0 0.0
      %173 = vmatprep.subr.mxu0 0.0
      %174 = vmatpush1.msra.mxu0 0.0
      %175 = vmatprep.subr.mxu0 0.0
      %176 = vmatpush1.msra.mxu0 0.0
      %177 = vmatprep.subr.mxu0 0.0
      %178 = vmatpush1.msra.mxu0 0.0
      %179 = vmatprep.subr.mxu0 0.0
      %180 = vmatpush1.msra.mxu0 0.0
      %181 = vmatprep.subr.mxu0 0.0
      %182 = vmatpush1.msra.mxu0 0.0
      %183 = vmatprep.subr.mxu0 0.0
      %184 = vmatpush1.msra.mxu0 0.0
      %185 = vmatprep.subr.mxu0 0.0
      %186 = vmatpush1.msra.mxu0 0.0
      %187 = vmatprep.subr.mxu0 0.0
      %188 = vmatpush1.msra.mxu0 0.0
      %189 = vmatprep.subr.mxu0 0.0
      %190 = vmatpush1.msra.mxu0 0.0
      %191 = vmatprep.subr.mxu0 0.0
      %192 = vmatpush1.msra.mxu0 0.0
      %193 = vmatprep.subr.mxu0 0.0
      %194 = vmatpush1.msra.mxu0 0.0
      %195 = vmatprep.subr.mxu0 0.0
      %196 = vmatpush1.msra.mxu0 0.0
      %197 = vmatprep.subr.mxu0 0.0
      %198 = vmatpush1.msra.mxu0 0.0
      %199 = vmatprep.subr.mxu0 0.0
      %200 = vmatpush1.msra.mxu0 0.0
      %201 = vmatprep.subr.mxu0 0.0
      %202 = vmatpush1.msra.mxu0 0.0
      %203 = vmatprep.subr.mxu0 0.0
      %204 = vmatpush1.msra.mxu0 0.0
      %205 = vmatprep.subr.mxu0 0.0
      %206 = vmatpush1.msra.mxu0 0.0
      %207 = vmatprep.subr.mxu0 0.0
      %208 = vmatpush1.msra.mxu0 0.0
      %209 = vmatprep.subr.mxu0 0.0
      %210 = vmatpush1.msra.mxu0 0.0
      %211 = vmatprep.subr.mxu0 0.0
      %212 = vmatpush1.msra.mxu0 0.0
      %213 = vmatprep.subr.mxu0 0.0
      %214 = vmatpush1.msra.mxu0 0.0
      %215 = vmatprep.subr.mxu0 0.0
      %216 = vmatpush1.msra.mxu0 0.0
      %217 = vmatprep.subr.mxu0 0.0
      %218 = vmatpush1.msra.mxu0 0.0
      %219 = vmatprep.subr.mxu0 0.0
      %220 = vmatpush1.msra.mxu0 0.0
      %221 = vmatprep.mubr.f32.mxu0 0.0
      %222 = vmatmul.mubr.f32.gmra.mrb[0].mxu0 %v152
      %v223 = vpop.f32.mrb[0].mxu0
      %v224 = vadd.f32 0.0, %v223
      %v225 = vpop.f32.mrb[0].mxu0
      %226 = vmatprep.mubr.f32.mxu0 0.0
      %227 = vmatmul.mubr.f32.gmra.mrb[0].mxu0 %v155
      %v228 = vpop.f32.mrb[0].mxu0
      %v229 = vadd.f32 0.0, %v228
      %v230 = vpop.f32.mrb[0].mxu0
      %231 = vdwg.mxu0
      %v232 = vmul.f32 %v224, 0.5
      %v233 = vmul.f32 %v229, 0.5
      %v234 = vmul.f32 %v224, %v224
      %v235 = vmul.f32 %v229, %v229
      %v236 = vmul.f32 %v234, %v224
      %v237 = vmul.f32 %v235, %v229
      %v238 = vmul.f32 %v236, 0.044715
      %v239 = vmul.f32 %v237, 0.044715
      %v240 = vadd.f32 %v224, %v238
      %v241 = vadd.f32 %v229, %v239
      %v242 = vmul.f32 %v240, 0.7978846
      %v243 = vmul.f32 %v241, 0.7978846
      %v244 = vtanh.pop %v242
      %v245 = vtanh.pop %v243
      %v246 = vadd.f32 %v244, 1.0
      %v247 = vadd.f32 %v245, 1.0
      %v248 = vmul.f32 %v232, %v246
      %v249 = vmul.f32 %v233, %v247
      %vm250 = vcmask 261120
      %251 = vst.msk [vmem:[%s145] sm:$0xff] %vm250, %v248
      %252 = vst.msk [vmem:[%s145 + $0x8] sm:$0xff] %vm250, %v249
      %s253 = smul.u32 2, %s13
      %p254 = scmp.lt.s32.totalorder %s253, 9
      %s255 = scalar_select %p254, %s253, 9
      %s256 = smul.addr %s255, 8
      %s257 = scalar_lea.vmem %s2, %s256
      // Predicated region
      $region29: #{fwd.37} parent=27 // pred_check
        %p258 = pneg %p78
      $region30: #{fwd.37} parent=27 // pred_check_branch
        %260 = sbr.rel (%p258) target = $region32
      $region31: #{fwd.37} parent=27 // pred_region
        %s261 = smul.u32 2, %s13
      $region32: #{fwd.37} parent=27 // pred_fallthru
        _
    $region28: #{fwd.37} parent=5 // pred_fallthru
      _
    %p262 = scmp.le.s32.totalorder 2, %s8
    // Predicated region
    $region33: #{fwd.37} parent=5 // pred_check
      %p263 = pneg %p262
    $region34: #{fwd.37} parent=5 // pred_check_branch
      %265 = sbr.rel (%p263) target = $region36
    $region35: #{fwd.37} parent=5 // pred_region
      %s266 = ssub.s32 %s8, 2
      // Predicated region
      $region37: #{fwd.37} parent=35 // pred_check
        %p267 = pneg %p84
      $region38: #{fwd.37} parent=35 // pred_check_branch
        %269 = sbr.rel (%p267) target = $region40
      $region39: #{fwd.37} parent=35 // pred_region
        %s270 = smul.u32 2, %s14
        %p271 = scmp.lt.s32.totalorder %s270, 9
        %s272 = scalar_select %p271, %s270, 9
        %s273 = smul.addr %s272, 8
        %s274 = scalar_lea.vmem %s2, %s273
      $region40: #{fwd.37} parent=35 // pred_fallthru
        _
    $region36: #{fwd.37} parent=5 // pred_fallthru
      _
  $region6: #{fwd.37} parent=0 // loop_footer
    %s12 = sadd.s32 1, %s8
  $region7: #{fwd.37} parent=0 // loop_footer_branch
    %7 = sbr.rel target = $region3
  $region8: #{fwd.37} parent=0 // loop_exit
    _

// kernel: fwd.36
$region0: #{fwd.36}
  #allocation0 [shape = 'u32[]', space=smem, size = 0x4, offset = 0x4, fixed_abs, tag = 'smem constant byte address 0x4 - core index']
  #allocation1 [shape = 'u32[144,128]{1,0:T(1,128)}', space=vmem, size = 0x12000, scoped, tag = 'internal scratch']
  %s0 = inlined_call_operand.vmem [shape: f32[80,8], index: 0, kind: input, shape index: {}]
  %s1 = inlined_call_operand.vmem [shape: f32[1,8], index: 1, kind: input, shape index: {}]
  %s2 = inlined_call_operand.vmem [shape: f32[1,8], index: 2, kind: input, shape index: {}]
  %s3 = inlined_call_operand.vmem [shape: f32[80,8], index: 3, kind: output, shape index: {}]
  %s4 = sld [smem:[#allocation0]]
  $region45: #{fwd.36} parent=0
    _
  %s6 = ssub.s32 1, %s4
  %s7 = scalar_select 0, %s6, %s4
  loop: start=0, step=1, limit=7
  $region2: #{fwd.36} parent=0 // loop_pre_header
    _
  $region3: #{fwd.36} parent=0 // loop_header
    %s9 = sphi 0, %s13
    %p10 = scmp.ge.s32.totalorder %s9, 7
    %s19 = sphi 0, %s21
    %s22 = sphi 0, %s19
    %s23 = sphi 0, %s22
    %s39 = sphi 0, %s23
    %s43 = sphi 0, %s43
    %s45 = sphi 0, %s43
    %s46 = sphi 0, %s45
    %s60 = sphi 0, %s46
    %s64 = sphi 0, %s64
    %s66 = sphi 0, %s64
    %s67 = sphi 0, %s66
    %s81 = sphi 0, %s67
    %s87 = sphi 0, %s89
    %s90 = sphi 0, %s87
    %s91 = sphi 0, %s90
    %s107 = sphi 0, %s91
  $region4: #{fwd.36} parent=0 // loop_header_branch
    %12 = sbr.rel (%p10) target = $region8
  $region5: #{fwd.36} parent=0 // loop_body
    %s14 = ssub.s32 %s9, 1
    %s15 = ssub.s32 %s9, 2
    %s16 = sadd.s32 %s9, 1
    %s17 = ssub.s32 %s9, %s16
    %p18 = scmp.eq.s32.totalorder %s17, 0
    %s20 = sadd.s32 %s19, 1
    %s21 = scalar_select %p18, %s19, %s20
    %p24 = pneg %p18
    %p25 = scmp.eq.s32.totalorder %s9, 4
    %p26 = por %p24, %p25
    %p27 = scmp.ne.s32.totalorder %s19, %s22
    %p28 = scmp.eq.s32.totalorder %s9, 0
    %p29 = por %p27, %p28
    %p30 = scmp.ne.s32.totalorder %s19, %s22
    %p31 = scmp.eq.s32.totalorder %s14, 4
    %p32 = por %p30, %p31
    %p33 = scmp.ne.s32.totalorder %s22, %s23
    %p34 = scmp.eq.s32.totalorder %s14, 0
    %p35 = por %p33, %p34
    %p36 = scmp.ne.s32.totalorder %s22, %s23
    %p37 = scmp.eq.s32.totalorder %s15, 4
    %p38 = por %p36, %p37
    %p40 = scmp.ne.s32.totalorder %s23, %s39
    %p41 = scmp.eq.s32.totalorder %s15, 0
    %p42 = por %p40, %p41
    %s44 = sadd.s32 %s43, 1
    %p47 = scmp.eq.s32.totalorder %s9, 4
    %p48 = scmp.ne.s32.totalorder %s43, %s45
    %p49 = scmp.eq.s32.totalorder %s9, 0
    %p50 = por %p48, %p49
    %p51 = scmp.ne.s32.totalorder %s43, %s45
    %p52 = scmp.eq.s32.totalorder %s14, 4
    %p53 = por %p51, %p52
    %p54 = scmp.ne.s32.totalorder %s45, %s46
    %p55 = scmp.eq.s32.totalorder %s14, 0
    %p56 = por %p54, %p55
    %p57 = scmp.ne.s32.totalorder %s45, %s46
    %p58 = scmp.eq.s32.totalorder %s15, 4
    %p59 = por %p57, %p58
    %p61 = scmp.ne.s32.totalorder %s46, %s60
    %p62 = scmp.eq.s32.totalorder %s15, 0
    %p63 = por %p61, %p62
    %s65 = sadd.s32 %s64, 1
    %p68 = scmp.eq.s32.totalorder %s9, 4
    %p69 = scmp.ne.s32.totalorder %s64, %s66
    %p70 = scmp.eq.s32.totalorder %s9, 0
    %p71 = por %p69, %p70
    %p72 = scmp.ne.s32.totalorder %s64, %s66
    %p73 = scmp.eq.s32.totalorder %s14, 4
    %p74 = por %p72, %p73
    %p75 = scmp.ne.s32.totalorder %s66, %s67
    %p76 = scmp.eq.s32.totalorder %s14, 0
    %p77 = por %p75, %p76
    %p78 = scmp.ne.s32.totalorder %s66, %s67
    %p79 = scmp.eq.s32.totalorder %s15, 4
    %p80 = por %p78, %p79
    %p82 = scmp.ne.s32.totalorder %s67, %s81
    %p83 = scmp.eq.s32.totalorder %s15, 0
    %p84 = por %p82, %p83
    %s85 = ssub.s32 %s9, %s16
    %p86 = scmp.eq.s32.totalorder %s85, 0
    %s88 = sadd.s32 %s87, 1
    %s89 = scalar_select %p86, %s87, %s88
    %p92 = pneg %p86
    %p93 = scmp.eq.s32.totalorder %s9, 4
    %p94 = por %p92, %p93
    %p95 = scmp.ne.s32.totalorder %s87, %s90
    %p96 = scmp.eq.s32.totalorder %s9, 0
    %p97 = por %p95, %p96
    %p98 = scmp.ne.s32.totalorder %s87, %s90
    %p99 = scmp.eq.s32.totalorder %s14, 4
    %p100 = por %p98, %p99
    %p101 = scmp.ne.s32.totalorder %s90, %s91
    %p102 = scmp.eq.s32.totalorder %s14, 0
    %p103 = por %p101, %p102
    %p104 = scmp.ne.s32.totalorder %s90, %s91
    %p105 = scmp.eq.s32.totalorder %s15, 4
    %p106 = por %p104, %p105
    %p108 = scmp.ne.s32.totalorder %s91, %s107
    %p109 = scmp.eq.s32.totalorder %s15, 0
    %p110 = por %p108, %p109
    %p111 = scmp.le.s32.totalorder 1, %s9
    %p112 = scmp.lt.s32.totalorder %s9, 6
    %p113 = pnand %p111, %p112
    %p114 = pneg %p113
    // Predicated region
    $region9: #{fwd.36} parent=5 // pred_check
      _
    $region10: #{fwd.36} parent=5 // pred_check_branch
      %116 = sbr.rel (%p113) target = $region12
    $region11: #{fwd.36} parent=5 // pred_region
      %s117 = ssub.s32 %s9, 1
      // Predicated region
      $region13: #{fwd.36} parent=11 // pred_check
        %p118 = pneg %p56
      $region14: #{fwd.36} parent=11 // pred_check_branch
        %120 = sbr.rel (%p118) target = $region16
      $region15: #{fwd.36} parent=11 // pred_region
        _
      $region16: #{fwd.36} parent=11 // pred_fallthru
        _
      // Predicated region
      $region17: #{fwd.36} parent=11 // pred_check
        %p121 = pneg %p77
      $region18: #{fwd.36} parent=11 // pred_check_branch
        %123 = sbr.rel (%p121) target = $region20
      $region19: #{fwd.36} parent=11 // pred_region
        _
      $region20: #{fwd.36} parent=11 // pred_fallthru
        _
    $region12: #{fwd.36} parent=5 // pred_fallthru
      _
    %p124 = scmp.lt.s32.totalorder %s9, 5
    // Predicated region
    $region21: #{fwd.36} parent=5 // pred_check
      %p125 = pneg %p124
    $region22: #{fwd.36} parent=5 // pred_check_branch
      %127 = sbr.rel (%p125) target = $region24
    $region23: #{fwd.36} parent=5 // pred_region
      // Predicated region
      $region25: #{fwd.36} parent=23 // pred_check
        %p128 = pneg %p29
      $region26: #{fwd.36} parent=23 // pred_check_branch
        %130 = sbr.rel (%p128) target = $region28
      $region27: #{fwd.36} parent=23 // pred_region
        %s131 = smul.u32 2, %s9
        %p132 = scmp.lt.s32.totalorder %s131, 9
        %s133 = scalar_select %p132, %s131, 9
        %s134 = smul.addr %s133, 8
        %s135 = scalar_lea.vmem %s0, %s134
        %s136 = smul.u32 2, %s9
      $region28: #{fwd.36} parent=23 // pred_fallthru
        _
    $region24: #{fwd.36} parent=5 // pred_fallthru
      _
    %p137 = scmp.le.s32.totalorder 1, %s9
    %p138 = scmp.lt.s32.totalorder %s9, 6
    %p139 = pnand %p137, %p138
    %p140 = pneg %p139
    // Predicated region
    $region29: #{fwd.36} parent=5 // pred_check
      _
    $region30: #{fwd.36} parent=5 // pred_check_branch
      %142 = sbr.rel (%p139) target = $region32
    $region31: #{fwd.36} parent=5 // pred_region
      %s143 = ssub.s32 %s9, 1
      %s144 = smul.u32 2, %s14
      %p145 = scmp.lt.s32.totalorder %s144, 9
      %s146 = scalar_select %p145, %s144, 9
      %s147 = smul.addr %s146, 8
      %s148 = scalar_lea.vmem %s0, %s147
      %p149 = pneg %p35
      %p150 = pneg %p32
      %p151 = pneg %p56
      %p152 = pneg %p53
      %p153 = pneg %p77
      %p154 = pneg %p74
      %p155 = pneg %p103
      %p156 = pneg %p100
      %s157 = smul.u32 2, %s14
      %p158 = scmp.lt.s32.totalorder %s157, 9
      %s159 = scalar_select %p158, %s157, 9
      %s160 = smul.addr %s159, 8
      %s161 = scalar_lea.vmem %s3, %s160
      %s162 = smul.u32 2, %s14
      %p163 = scmp.lt.s32.totalorder %s162, 9
      %s164 = scalar_select %p163, %s162, 9
      %s165 = smul.addr %s164, 8
      %s166 = scalar_lea.vmem %s0, %s165
      %s167 = smul.u32 2, %s14
      %s168 = smul.u32 2, %s14
      %p169 = scmp.lt.s32.totalorder %s168, 9
      %s170 = scalar_select %p169, %s168, 9
      %s171 = smul.addr %s170, 8
      %s172 = scalar_lea.vmem %s3, %s171
      %s173 = smul.u32 2, %s14
      %v174 = vld [vmem:[%s166] sm:$0xff]
      %v175 = vld [vmem:[%s166 + $0x8] sm:$0xff]
      %vm176 = vcmask 64512
      %v177 = vsel %vm176, %v174, 0.0
      %178 = vadd.xlane.f32.xlu0 %v177
      %v179 = vpop.xlane.xlu0 %178
      %v180 = vsel %vm176, %v175, 0.0
      %181 = vadd.xlane.f32.xlu0 %v180
      %v182 = vpop.xlane.xlu0 %181
      %v183 = vrcp.pop 8.0
      %v184 = vmul.f32 %v179, %v183
      %v185 = vmul.f32 %v182, %v183
      %v186 = vsub.f32 %v174, %v184
      %v187 = vsub.f32 %v175, %v185
      %v188 = vmul.f32 %v186, %v186
      %v189 = vmul.f32 %v187, %v187
      %v190 = vsel %vm176, %v188, 0.0
      %191 = vadd.xlane.f32.xlu0 %v190
      %v192 = vpop.xlane.xlu0 %191
      %v193 = vsel %vm176, %v189, 0.0
      %194 = vadd.xlane.f32.xlu0 %v193
      %v195 = vpop.xlane.xlu0 %194
      %v196 = vmul.f32 %v192, %v183
      %v197 = vmul.f32 %v195, %v183
      %v198 = vadd.f32 %v196, 1e-05
      %v199 = vadd.f32 %v197, 1e-05
      %v200 = vrsqrt.pop %v198
      %v201 = vrsqrt.pop %v199
      %v202 = vmul.f32 %v186, %v200
      %v203 = vmul.f32 %v187, %v201
      %v204 = vld [vmem:[%s1] sm:$0x1]
      %v206 = vlaneseq
      %v207 = vshrl.u32 %v206, 7
      %v208 = vsub.s32 0, %v207
      %v209 = vrot.slane %v204, %v208
      %v211 = vmul.f32 %v202, %v209
      %v212 = vmul.f32 %v203, %v209
      %v213 = vld [vmem:[%s2] sm:$0x1]
      %v215 = vlaneseq
      %v216 = vshrl.u32 %v215, 7
      %v217 = vsub.s32 0, %v216
      %v218 = vrot.slane %v213, %v217
      %v220 = vadd.f32 %v211, %v218
      %v221 = vadd.f32 %v212, %v218
      %222 = vst.msk [vmem:[%s172] sm:$0xff] %vm176, %v220
      %223 = vst.msk [vmem:[%s172 + $0x8] sm:$0xff] %vm176, %v221
      %s224 = smul.u32 2, %s14
      %p225 = scmp.lt.s32.totalorder %s224, 9
      %s226 = scalar_select %p225, %s224, 9
      %s227 = smul.addr %s226, 8
      %s228 = scalar_lea.vmem %s3, %s227
      // Predicated region
      $region33: #{fwd.36} parent=31 // pred_check
        %p229 = pneg %p100
      $region34: #{fwd.36} parent=31 // pred_check_branch
        %231 = sbr.rel (%p229) target = $region36
      $region35: #{fwd.36} parent=31 // pred_region
        %s232 = smul.u32 2, %s14
      $region36: #{fwd.36} parent=31 // pred_fallthru
        _
    $region32: #{fwd.36} parent=5 // pred_fallthru
      _
    %p233 = scmp.le.s32.totalorder 2, %s9
    // Predicated region
    $region37: #{fwd.36} parent=5 // pred_check
      %p234 = pneg %p233
    $region38: #{fwd.36} parent=5 // pred_check_branch
      %236 = sbr.rel (%p234) target = $region40
    $region39: #{fwd.36} parent=5 // pred_region
      %s237 = ssub.s32 %s9, 2
      // Predicated region
      $region41: #{fwd.36} parent=39 // pred_check
        %p238 = pneg %p106
      $region42: #{fwd.36} parent=39 // pred_check_branch
        %240 = sbr.rel (%p238) target = $region44
      $region43: #{fwd.36} parent=39 // pred_region
        %s241 = smul.u32 2, %s15
        %p242 = scmp.lt.s32.totalorder %s241, 9
        %s243 = scalar_select %p242, %s241, 9
        %s244 = smul.addr %s243, 8
        %s245 = scalar_lea.vmem %s3, %s244
      $region44: #{fwd.36} parent=39 // pred_fallthru
        _
    $region40: #{fwd.36} parent=5 // pred_fallthru
      _
  $region6: #{fwd.36} parent=0 // loop_footer
    %s13 = sadd.s32 1, %s9
  $region7: #{fwd.36} parent=0 // loop_footer_branch
    %8 = sbr.rel target = $region3
  $region8: #{fwd.36} parent=0 // loop_exit
    _

// kernel: fwd.39
$region0: #{fwd.39}
  #allocation0 [shape = 'u32[]', space=smem, size = 0x4, offset = 0x4, fixed_abs, tag = 'smem constant byte address 0x4 - core index']
  #allocation1 [shape = 'u32[144,128]{1,0:T(1,128)}', space=vmem, size = 0x12000, scoped, tag = 'internal scratch']
  %s0 = inlined_call_operand.vmem [shape: f32[80,32], index: 0, kind: input, shape index: {}]
  %s1 = inlined_call_operand.vmem [shape: f32[32,8], index: 1, kind: input, shape index: {}]
  %s2 = inlined_call_operand.vmem [shape: f32[80,8], index: 2, kind: output, shape index: {}]
  %s3 = sld [smem:[#allocation0]]
  $region41: #{fwd.39} parent=0
    _
  %s5 = ssub.s32 1, %s3
  %s6 = scalar_select 0, %s5, %s3
  loop: start=0, step=1, limit=7
  $region2: #{fwd.39} parent=0 // loop_pre_header
    _
  $region3: #{fwd.39} parent=0 // loop_header
    %s8 = sphi 0, %s12
    %p9 = scmp.ge.s32.totalorder %s8, 7
    %s18 = sphi 0, %s20
    %s21 = sphi 0, %s18
    %s22 = sphi 0, %s21
    %s38 = sphi 0, %s22
    %s42 = sphi 0, %s42
    %s44 = sphi 0, %s42
    %s45 = sphi 0, %s44
    %s59 = sphi 0, %s45
    %s65 = sphi 0, %s67
    %s68 = sphi 0, %s65
    %s69 = sphi 0, %s68
    %s85 = sphi 0, %s69
  $region4: #{fwd.39} parent=0 // loop_header_branch
    %11 = sbr.rel (%p9) target = $region8
  $region5: #{fwd.39} parent=0 // loop_body
    %s13 = ssub.s32 %s8, 1
    %s14 = ssub.s32 %s8, 2
    %s15 = sadd.s32 %s8, 1
    %s16 = ssub.s32 %s8, %s15
    %p17 = scmp.eq.s32.totalorder %s16, 0
    %s19 = sadd.s32 %s18, 1
    %s20 = scalar_select %p17, %s18, %s19
    %p23 = pneg %p17
    %p24 = scmp.eq.s32.totalorder %s8, 4
    %p25 = por %p23, %p24
    %p26 = scmp.ne.s32.totalorder %s18, %s21
    %p27 = scmp.eq.s32.totalorder %s8, 0
    %p28 = por %p26, %p27
    %p29 = scmp.ne.s32.totalorder %s18, %s21
    %p30 = scmp.eq.s32.totalorder %s13, 4
    %p31 = por %p29, %p30
    %p32 = scmp.ne.s32.totalorder %s21, %s22
    %p33 = scmp.eq.s32.totalorder %s13, 0
    %p34 = por %p32, %p33
    %p35 = scmp.ne.s32.totalorder %s21, %s22
    %p36 = scmp.eq.s32.totalorder %s14, 4
    %p37 = por %p35, %p36
    %p39 = scmp.ne.s32.totalorder %s22, %s38
    %p40 = scmp.eq.s32.totalorder %s14, 0
    %p41 = por %p39, %p40
    %s43 = sadd.s32 %s42, 1
    %p46 = scmp.eq.s32.totalorder %s8, 4
    %p47 = scmp.ne.s32.totalorder %s42, %s44
    %p48 = scmp.eq.s32.totalorder %s8, 0
    %p49 = por %p47, %p48
    %p50 = scmp.ne.s32.totalorder %s42, %s44
    %p51 = scmp.eq.s32.totalorder %s13, 4
    %p52 = por %p50, %p51
    %p53 = scmp.ne.s32.totalorder %s44, %s45
    %p54 = scmp.eq.s32.totalorder %s13, 0
    %p55 = por %p53, %p54
    %p56 = scmp.ne.s32.totalorder %s44, %s45
    %p57 = scmp.eq.s32.totalorder %s14, 4
    %p58 = por %p56, %p57
    %p60 = scmp.ne.s32.totalorder %s45, %s59
    %p61 = scmp.eq.s32.totalorder %s14, 0
    %p62 = por %p60, %p61
    %s63 = ssub.s32 %s8, %s15
    %p64 = scmp.eq.s32.totalorder %s63, 0
    %s66 = sadd.s32 %s65, 1
    %s67 = scalar_select %p64, %s65, %s66
    %p70 = pneg %p64
    %p71 = scmp.eq.s32.totalorder %s8, 4
    %p72 = por %p70, %p71
    %p73 = scmp.ne.s32.totalorder %s65, %s68
    %p74 = scmp.eq.s32.totalorder %s8, 0
    %p75 = por %p73, %p74
    %p76 = scmp.ne.s32.totalorder %s65, %s68
    %p77 = scmp.eq.s32.totalorder %s13, 4
    %p78 = por %p76, %p77
    %p79 = scmp.ne.s32.totalorder %s68, %s69
    %p80 = scmp.eq.s32.totalorder %s13, 0
    %p81 = por %p79, %p80
    %p82 = scmp.ne.s32.totalorder %s68, %s69
    %p83 = scmp.eq.s32.totalorder %s14, 4
    %p84 = por %p82, %p83
    %p86 = scmp.ne.s32.totalorder %s69, %s85
    %p87 = scmp.eq.s32.totalorder %s14, 0
    %p88 = por %p86, %p87
    %p89 = scmp.le.s32.totalorder 1, %s8
    %p90 = scmp.lt.s32.totalorder %s8, 6
    %p91 = pnand %p89, %p90
    %p92 = pneg %p91
    // Predicated region
    $region9: #{fwd.39} parent=5 // pred_check
      _
    $region10: #{fwd.39} parent=5 // pred_check_branch
      %94 = sbr.rel (%p91) target = $region12
    $region11: #{fwd.39} parent=5 // pred_region
      %s95 = ssub.s32 %s8, 1
      // Predicated region
      $region13: #{fwd.39} parent=11 // pred_check
        %p96 = pneg %p55
      $region14: #{fwd.39} parent=11 // pred_check_branch
        %98 = sbr.rel (%p96) target = $region16
      $region15: #{fwd.39} parent=11 // pred_region
        _
      $region16: #{fwd.39} parent=11 // pred_fallthru
        _
    $region12: #{fwd.39} parent=5 // pred_fallthru
      _
    %p99 = scmp.lt.s32.totalorder %s8, 5
    // Predicated region
    $region17: #{fwd.39} parent=5 // pred_check
      %p100 = pneg %p99
    $region18: #{fwd.39} parent=5 // pred_check_branch
      %102 = sbr.rel (%p100) target = $region20
    $region19: #{fwd.39} parent=5 // pred_region
      // Predicated region
      $region21: #{fwd.39} parent=19 // pred_check
        %p103 = pneg %p28
      $region22: #{fwd.39} parent=19 // pred_check_branch
        %105 = sbr.rel (%p103) target = $region24
      $region23: #{fwd.39} parent=19 // pred_region
        %s106 = smul.u32 2, %s8
        %p107 = scmp.lt.s32.totalorder %s106, 9
        %s108 = scalar_select %p107, %s106, 9
        %s109 = smul.addr %s108, 8
        %s110 = scalar_lea.vmem %s0, %s109
        %s111 = smul.u32 2, %s8
      $region24: #{fwd.39} parent=19 // pred_fallthru
        _
    $region20: #{fwd.39} parent=5 // pred_fallthru
      _
    %p112 = scmp.le.s32.totalorder 1, %s8
    %p113 = scmp.lt.s32.totalorder %s8, 6
    %p114 = pnand %p112, %p113
    %p115 = pneg %p114
    // Predicated region
    $region25: #{fwd.39} parent=5 // pred_check
      _
    $region26: #{fwd.39} parent=5 // pred_check_branch
      %117 = sbr.rel (%p114) target = $region28
    $region27: #{fwd.39} parent=5 // pred_region
      %s118 = ssub.s32 %s8, 1
      %s119 = smul.u32 2, %s13
      %p120 = scmp.lt.s32.totalorder %s119, 9
      %s121 = scalar_select %p120, %s119, 9
      %s122 = smul.addr %s121, 8
      %s123 = scalar_lea.vmem %s0, %s122
      %p124 = pneg %p34
      %p125 = pneg %p31
      %p126 = pneg %p55
      %p127 = pneg %p52
      %p128 = pneg %p81
      %p129 = pneg %p78
      %s130 = smul.u32 2, %s13
      %p131 = scmp.lt.s32.totalorder %s130, 9
      %s132 = scalar_select %p131, %s130, 9
      %s133 = smul.addr %s132, 8
      %s134 = scalar_lea.vmem %s2, %s133
      %s135 = smul.u32 2, %s13
      %p136 = scmp.lt.s32.totalorder %s135, 9
      %s137 = scalar_select %p136, %s135, 9
      %s138 = smul.addr %s137, 8
      %s139 = scalar_lea.vmem %s0, %s138
      %s140 = smul.u32 2, %s13
      %s141 = smul.u32 2, %s13
      %p142 = scmp.lt.s32.totalorder %s141, 9
      %s143 = scalar_select %p142, %s141, 9
      %s144 = smul.addr %s143, 8
      %s145 = scalar_lea.vmem %s2, %s144
      %s146 = smul.u32 2, %s13
      %v147 = vld [vmem:[%s139] sm:$0xff]
      %v148 = vld [vmem:[%s139 + $0x8] sm:$0xff]
      %v149 = vld [vmem:[%s1] sm:$0xff]
      %v150 = vld [vmem:[%s1 + $0x8] sm:$0xff]
      %v151 = vld [vmem:[%s1 + $0x10] sm:$0xff]
      %v152 = vld [vmem:[%s1 + $0x18] sm:$0xff]
      %vm153 = vcmask 261120
      %v155 = vsel %vm153, %v147, 0
      %v158 = vsel %vm153, %v148, 0
      %160 = vmatprep.subr.mxu0 0.0
      %161 = vmatpush1.msra.mxu0 %v149
      %162 = vmatprep.subr.mxu0 0.0
      %163 = vmatpush1.msra.mxu0 %v150
      %164 = vmatprep.subr.mxu0 0.0
      %165 = vmatpush1.msra.mxu0 %v151
      %166 = vmatprep.subr.mxu0 0.0
      %167 = vmatpush1.msra.mxu0 %v152
      %168 = vmatprep.subr.mxu0 0.0
      %169 = vmatpush1.msra.mxu0 0.0
      %170 = vmatprep.subr.mxu0 0.0
      %171 = vmatpush1.msra.mxu0 0.0
      %172 = vmatprep.subr.mxu0 0.0
      %173 = vmatpush1.msra.mxu0 0.0
      %174 = vmatprep.subr.mxu0 0.0
      %175 = vmatpush1.msra.mxu0 0.0
      %176 = vmatprep.subr.mxu0 0.0
      %177 = vmatpush1.msra.mxu0 0.0
      %178 = vmatprep.subr.mxu0 0.0
      %179 = vmatpush1.msra.mxu0 0.0
      %180 = vmatprep.subr.mxu0 0.0
      %181 = vmatpush1.msra.mxu0 0.0
      %182 = vmatprep.subr.mxu0 0.0
      %183 = vmatpush1.msra.mxu0 0.0
      %184 = vmatprep.subr.mxu0 0.0
      %185 = vmatpush1.msra.mxu0 0.0
      %186 = vmatprep.subr.mxu0 0.0
      %187 = vmatpush1.msra.mxu0 0.0
      %188 = vmatprep.subr.mxu0 0.0
      %189 = vmatpush1.msra.mxu0 0.0
      %190 = vmatprep.subr.mxu0 0.0
      %191 = vmatpush1.msra.mxu0 0.0
      %192 = vmatprep.subr.mxu0 0.0
      %193 = vmatpush1.msra.mxu0 0.0
      %194 = vmatprep.subr.mxu0 0.0
      %195 = vmatpush1.msra.mxu0 0.0
      %196 = vmatprep.subr.mxu0 0.0
      %197 = vmatpush1.msra.mxu0 0.0
      %198 = vmatprep.subr.mxu0 0.0
      %199 = vmatpush1.msra.mxu0 0.0
      %200 = vmatprep.subr.mxu0 0.0
      %201 = vmatpush1.msra.mxu0 0.0
      %202 = vmatprep.subr.mxu0 0.0
      %203 = vmatpush1.msra.mxu0 0.0
      %204 = vmatprep.subr.mxu0 0.0
      %205 = vmatpush1.msra.mxu0 0.0
      %206 = vmatprep.subr.mxu0 0.0
      %207 = vmatpush1.msra.mxu0 0.0
      %208 = vmatprep.subr.mxu0 0.0
      %209 = vmatpush1.msra.mxu0 0.0
      %210 = vmatprep.subr.mxu0 0.0
      %211 = vmatpush1.msra.mxu0 0.0
      %212 = vmatprep.subr.mxu0 0.0
      %213 = vmatpush1.msra.mxu0 0.0
      %214 = vmatprep.subr.mxu0 0.0
      %215 = vmatpush1.msra.mxu0 0.0
      %216 = vmatprep.subr.mxu0 0.0
      %217 = vmatpush1.msra.mxu0 0.0
      %218 = vmatprep.subr.mxu0 0.0
      %219 = vmatpush1.msra.mxu0 0.0
      %220 = vmatprep.subr.mxu0 0.0
      %221 = vmatpush1.msra.mxu0 0.0
      %222 = vmatprep.subr.mxu0 0.0
      %223 = vmatpush1.msra.mxu0 0.0
      %224 = vmatprep.mubr.f32.mxu0 0.0
      %225 = vmatmul.mubr.f32.gmra.mrb[0].mxu0 %v155
      %v226 = vpop.f32.mrb[0].mxu0
      %v227 = vadd.f32 0.0, %v226
      %v228 = vpop.f32.mrb[0].mxu0
      %229 = vmatprep.mubr.f32.mxu0 0.0
      %230 = vmatmul.mubr.f32.gmra.mrb[0].mxu0 %v158
      %v231 = vpop.f32.mrb[0].mxu0
      %v232 = vadd.f32 0.0, %v231
      %v233 = vpop.f32.mrb[0].mxu0
      %234 = vdwg.mxu0
      %vm235 = vcmask 64512
      %236 = vst.msk [vmem:[%s145] sm:$0xff] %vm235, %v227
      %237 = vst.msk [vmem:[%s145 + $0x8] sm:$0xff] %vm235, %v232
      %s238 = smul.u32 2, %s13
      %p239 = scmp.lt.s32.totalorder %s238, 9
      %s240 = scalar_select %p239, %s238, 9
      %s241 = smul.addr %s240, 8
      %s242 = scalar_lea.vmem %s2, %s241
      // Predicated region
      $region29: #{fwd.39} parent=27 // pred_check
        %p243 = pneg %p78
      $region30: #{fwd.39} parent=27 // pred_check_branch
        %245 = sbr.rel (%p243) target = $region32
      $region31: #{fwd.39} parent=27 // pred_region
        %s246 = smul.u32 2, %s13
      $region32: #{fwd.39} parent=27 // pred_fallthru
        _
    $region28: #{fwd.39} parent=5 // pred_fallthru
      _
    %p247 = scmp.le.s32.totalorder 2, %s8
    // Predicated region
    $region33: #{fwd.39} parent=5 // pred_check
      %p248 = pneg %p247
    $region34: #{fwd.39} parent=5 // pred_check_branch
      %250 = sbr.rel (%p248) target = $region36
    $region35: #{fwd.39} parent=5 // pred_region
      %s251 = ssub.s32 %s8, 2
      // Predicated region
      $region37: #{fwd.39} parent=35 // pred_check
        %p252 = pneg %p84
      $region38: #{fwd.39} parent=35 // pred_check_branch
        %254 = sbr.rel (%p252) target = $region40
      $region39: #{fwd.39} parent=35 // pred_region
        %s255 = smul.u32 2, %s14
        %p256 = scmp.lt.s32.totalorder %s255, 9
        %s257 = scalar_select %p256, %s255, 9
        %s258 = smul.addr %s257, 8
        %s259 = scalar_lea.vmem %s2, %s258
      $region40: #{fwd.39} parent=35 // pred_fallthru
        _
    $region36: #{fwd.39} parent=5 // pred_fallthru
      _
  $region6: #{fwd.39} parent=0 // loop_footer
    %s12 = sadd.s32 1, %s8
  $region7: #{fwd.39} parent=0 // loop_footer_branch
    %7 = sbr.rel target = $region3
  $region8: #{fwd.39} parent=0 // loop_exit
    _

// kernel: fwd.38
$region0: #{fwd.38}
  #allocation0 [shape = 'u32[]', space=smem, size = 0x4, offset = 0x4, fixed_abs, tag = 'smem constant byte address 0x4 - core index']
  #allocation1 [shape = 'u32[144,128]{1,0:T(1,128)}', space=vmem, size = 0x12000, scoped, tag = 'internal scratch']
  %s0 = inlined_call_operand.vmem [shape: f32[2,10,7,32], index: 0, kind: input, shape index: {}]
  %s1 = inlined_call_operand.vmem [shape: f32[3,3,32], index: 1, kind: input, shape index: {}]
  %s2 = inlined_call_operand.vmem [shape: f32[2,8,5,32], index: 2, kind: output, shape index: {}]
  %s3 = sld [smem:[#allocation0]]
  $region41: #{fwd.38} parent=0
    _
  %s5 = ssub.s32 1, %s3
  %s6 = scalar_select 0, %s5, %s3
  loop: start=0, step=1, limit=4
  $region2: #{fwd.38} parent=0 // loop_pre_header
    _
  $region3: #{fwd.38} parent=0 // loop_header
    %s8 = sphi 0, %s12
    %p9 = scmp.ge.s32.totalorder %s8, 4
    %s18 = sphi 0, %s20
    %s21 = sphi 0, %s18
    %s22 = sphi 0, %s21
    %s38 = sphi 0, %s22
    %s42 = sphi 0, %s42
    %s44 = sphi 0, %s42
    %s45 = sphi 0, %s44
    %s59 = sphi 0, %s45
    %s65 = sphi 0, %s67
    %s68 = sphi 0, %s65
    %s69 = sphi 0, %s68
    %s85 = sphi 0, %s69
  $region4: #{fwd.38} parent=0 // loop_header_branch
    %11 = sbr.rel (%p9) target = $region8
  $region5: #{fwd.38} parent=0 // loop_body
    %s13 = ssub.s32 %s8, 1
    %s14 = ssub.s32 %s8, 2
    %s15 = sadd.s32 %s8, 1
    %s16 = ssub.s32 %s8, %s15
    %p17 = scmp.eq.s32.totalorder %s16, 0
    %s19 = sadd.s32 %s18, 1
    %s20 = scalar_select %p17, %s18, %s19
    %p23 = pneg %p17
    %p24 = scmp.eq.s32.totalorder %s8, 1
    %p25 = por %p23, %p24
    %p26 = scmp.ne.s32.totalorder %s18, %s21
    %p27 = scmp.eq.s32.totalorder %s8, 0
    %p28 = por %p26, %p27
    %p29 = scmp.ne.s32.totalorder %s18, %s21
    %p30 = scmp.eq.s32.totalorder %s13, 1
    %p31 = por %p29, %p30
    %p32 = scmp.ne.s32.totalorder %s21, %s22
    %p33 = scmp.eq.s32.totalorder %s13, 0
    %p34 = por %p32, %p33
    %p35 = scmp.ne.s32.totalorder %s21, %s22
    %p36 = scmp.eq.s32.totalorder %s14, 1
    %p37 = por %p35, %p36
    %p39 = scmp.ne.s32.totalorder %s22, %s38
    %p40 = scmp.eq.s32.totalorder %s14, 0
    %p41 = por %p39, %p40
    %s43 = sadd.s32 %s42, 1
    %p46 = scmp.eq.s32.totalorder %s8, 1
    %p47 = scmp.ne.s32.totalorder %s42, %s44
    %p48 = scmp.eq.s32.totalorder %s8, 0
    %p49 = por %p47, %p48
    %p50 = scmp.ne.s32.totalorder %s42, %s44
    %p51 = scmp.eq.s32.totalorder %s13, 1
    %p52 = por %p50, %p51
    %p53 = scmp.ne.s32.totalorder %s44, %s45
    %p54 = scmp.eq.s32.totalorder %s13, 0
    %p55 = por %p53, %p54
    %p56 = scmp.ne.s32.totalorder %s44, %s45
    %p57 = scmp.eq.s32.totalorder %s14, 1
    %p58 = por %p56, %p57
    %p60 = scmp.ne.s32.totalorder %s45, %s59
    %p61 = scmp.eq.s32.totalorder %s14, 0
    %p62 = por %p60, %p61
    %s63 = ssub.s32 %s8, %s15
    %p64 = scmp.eq.s32.totalorder %s63, 0
    %s66 = sadd.s32 %s65, 1
    %s67 = scalar_select %p64, %s65, %s66
    %p70 = pneg %p64
    %p71 = scmp.eq.s32.totalorder %s8, 1
    %p72 = por %p70, %p71
    %p73 = scmp.ne.s32.totalorder %s65, %s68
    %p74 = scmp.eq.s32.totalorder %s8, 0
    %p75 = por %p73, %p74
    %p76 = scmp.ne.s32.totalorder %s65, %s68
    %p77 = scmp.eq.s32.totalorder %s13, 1
    %p78 = por %p76, %p77
    %p79 = scmp.ne.s32.totalorder %s68, %s69
    %p80 = scmp.eq.s32.totalorder %s13, 0
    %p81 = por %p79, %p80
    %p82 = scmp.ne.s32.totalorder %s68, %s69
    %p83 = scmp.eq.s32.totalorder %s14, 1
    %p84 = por %p82, %p83
    %p86 = scmp.ne.s32.totalorder %s69, %s85
    %p87 = scmp.eq.s32.totalorder %s14, 0
    %p88 = por %p86, %p87
    %p89 = scmp.le.s32.totalorder 1, %s8
    %p90 = scmp.lt.s32.totalorder %s8, 3
    %p91 = pnand %p89, %p90
    %p92 = pneg %p91
    // Predicated region
    $region9: #{fwd.38} parent=5 // pred_check
      _
    $region10: #{fwd.38} parent=5 // pred_check_branch
      %94 = sbr.rel (%p91) target = $region12
    $region11: #{fwd.38} parent=5 // pred_region
      %s95 = ssub.s32 %s8, 1
      // Predicated region
      $region13: #{fwd.38} parent=11 // pred_check
        %p96 = pneg %p55
      $region14: #{fwd.38} parent=11 // pred_check_branch
        %98 = sbr.rel (%p96) target = $region16
      $region15: #{fwd.38} parent=11 // pred_region
        _
      $region16: #{fwd.38} parent=11 // pred_fallthru
        _
    $region12: #{fwd.38} parent=5 // pred_fallthru
      _
    %p99 = scmp.lt.s32.totalorder %s8, 2
    // Predicated region
    $region17: #{fwd.38} parent=5 // pred_check
      %p100 = pneg %p99
    $region18: #{fwd.38} parent=5 // pred_check_branch
      %102 = sbr.rel (%p100) target = $region20
    $region19: #{fwd.38} parent=5 // pred_region
      // Predicated region
      $region21: #{fwd.38} parent=19 // pred_check
        %p103 = pneg %p28
      $region22: #{fwd.38} parent=19 // pred_check_branch
        %105 = sbr.rel (%p103) target = $region24
      $region23: #{fwd.38} parent=19 // pred_region
        %p106 = scmp.lt.s32.totalorder %s8, 1
        %s107 = scalar_select %p106, %s8, 1
        %s108 = smul.addr %s107, 10
        %s109 = smul.addr %s108, 8
        %s110 = scalar_lea.vmem %s0, %s109
      $region24: #{fwd.38} parent=19 // pred_fallthru
        _
    $region20: #{fwd.38} parent=5 // pred_fallthru
      _
    %p111 = scmp.le.s32.totalorder 1, %s8
    %p112 = scmp.lt.s32.totalorder %s8, 3
    %p113 = pnand %p111, %p112
    %p114 = pneg %p113
    // Predicated region
    $region25: #{fwd.38} parent=5 // pred_check
      _
    $region26: #{fwd.38} parent=5 // pred_check_branch
      %116 = sbr.rel (%p113) target = $region28
    $region27: #{fwd.38} parent=5 // pred_region
      %s117 = ssub.s32 %s8, 1
      %p118 = scmp.lt.s32.totalorder %s13, 1
      %s119 = scalar_select %p118, %s13, 1
      %s120 = smul.addr %s119, 10
      %s121 = smul.addr %s120, 8
      %s122 = scalar_lea.vmem %s0, %s121
      %p123 = pneg %p34
      %p124 = pneg %p31
      %p125 = pneg %p55
      %p126 = pneg %p52
      %p127 = pneg %p81
      %p128 = pneg %p78
      %p129 = scmp.lt.s32.totalorder %s13, 1
      %s130 = scalar_select %p129, %s13, 1
      %s131 = smul.addr %s130, 8
      %s132 = smul.addr %s131, 8
      %s133 = scalar_lea.vmem %s2, %s132
      %p134 = scmp.lt.s32.totalorder %s13, 1
      %s135 = scalar_select %p134, %s13, 1
      %s136 = smul.addr %s135, 10
      %s137 = smul.addr %s136, 8
      %s138 = scalar_lea.vmem %s0, %s137
      %p139 = scmp.lt.s32.totalorder %s13, 1
      %s140 = scalar_select %p139, %s13, 1
      %s141 = smul.addr %s140, 8
      %s142 = smul.addr %s141, 8
      %s143 = scalar_lea.vmem %s2, %s142
      %v144 = vld [vmem:[%s138] sm:$0x7f]
      %v145 = vld [vmem:[%s138 + $0x8] sm:$0x7f]
      %v146 = vld [vmem:[%s138 + $0x10] sm:$0x7f]
      %v147 = vld [vmem:[%s138 + $0x18] sm:$0x7f]
      %v148 = vld [vmem:[%s138 + $0x20] sm:$0x7f]
      %v149 = vld [vmem:[%s138 + $0x28] sm:$0x7f]
      %v150 = vld [vmem:[%s138 + $0x30] sm:$0x7f]
      %v151 = vld [vmem:[%s138 + $0x38] sm:$0x7f]
      %v152 = vld [vmem:[%s138 + $0x40] sm:$0x7f]
      %v153 = vld [vmem:[%s138 + $0x48] sm:$0x7f]
      %v154 = vld [vmem:[%s1] sm:$0x7]
      %v155 = vld [vmem:[%s1 + $0x4] sm:$0x7]
      %v156 = vld [vmem:[%s1 + $0x8] sm:$0x7]
      %v157 = vlaneseq
      %v158 = vshrl.u32 %v157, 7
      %v159 = vsub.s32 0, %v158
      %v160 = vrot.slane %v154, %v159
      %v161 = vmul.f32 %v144, %v160
      %v162 = vmul.f32 %v145, %v160
      %v163 = vmul.f32 %v146, %v160
      %v164 = vmul.f32 %v147, %v160
      %v165 = vmul.f32 %v148, %v160
      %v166 = vmul.f32 %v149, %v160
      %v167 = vmul.f32 %v150, %v160
      %v168 = vmul.f32 %v151, %v160
      %v169 = vadd.f32 %v161, 0.0
      %v170 = vadd.f32 %v162, 0.0
      %v171 = vadd.f32 %v163, 0.0
      %v172 = vadd.f32 %v164, 0.0
      %v173 = vadd.f32 %v165, 0.0
      %v174 = vadd.f32 %v166, 0.0
      %v175 = vadd.f32 %v167, 0.0
      %v176 = vadd.f32 %v168, 0.0
      %v177 = vlaneseq
      %v178 = vshrl.u32 %v177, 7
      %v179 = vsub.s32 1, %v178
      %v180 = vrot.slane %v154, %v179
      %v181 = vmul.f32 %v144, %v180
      %v182 = vmul.f32 %v145, %v180
      %v183 = vmul.f32 %v146, %v180
      %v184 = vmul.f32 %v147, %v180
      %v185 = vmul.f32 %v148, %v180
      %v186 = vmul.f32 %v149, %v180
      %v187 = vmul.f32 %v150, %v180
      %v188 = vmul.f32 %v151, %v180
      %v197 = vrot.slane %v181, 1
      %v198 = vrot.slane %v182, 1
      %v199 = vrot.slane %v183, 1
      %v200 = vrot.slane %v184, 1
      %v201 = vrot.slane %v185, 1
      %v202 = vrot.slane %v186, 1
      %v203 = vrot.slane %v187, 1
      %v204 = vrot.slane %v188, 1
      %v213 = vadd.f32 %v169, %v197
      %v214 = vadd.f32 %v170, %v198
      %v215 = vadd.f32 %v171, %v199
      %v216 = vadd.f32 %v172, %v200
      %v217 = vadd.f32 %v173, %v201
      %v218 = vadd.f32 %v174, %v202
      %v219 = vadd.f32 %v175, %v203
      %v220 = vadd.f32 %v176, %v204
      %v221 = vlaneseq
      %v222 = vshrl.u32 %v221, 7
      %v223 = vsub.s32 2, %v222
      %v224 = vrot.slane %v154, %v223
      %v225 = vmul.f32 %v144, %v224
      %v226 = vmul.f32 %v145, %v224
      %v227 = vmul.f32 %v146, %v224
      %v228 = vmul.f32 %v147, %v224
      %v229 = vmul.f32 %v148, %v224
      %v230 = vmul.f32 %v149, %v224
      %v231 = vmul.f32 %v150, %v224
      %v232 = vmul.f32 %v151, %v224
      %v241 = vrot.slane %v225, 2
      %v242 = vrot.slane %v226, 2
      %v243 = vrot.slane %v227, 2
      %v244 = vrot.slane %v228, 2
      %v245 = vrot.slane %v229, 2
      %v246 = vrot.slane %v230, 2
      %v247 = vrot.slane %v231, 2
      %v248 = vrot.slane %v232, 2
      %v257 = vadd.f32 %v213, %v241
      %v258 = vadd.f32 %v214, %v242
      %v259 = vadd.f32 %v215, %v243
      %v260 = vadd.f32 %v216, %v244
      %v261 = vadd.f32 %v217, %v245
      %v262 = vadd.f32 %v218, %v246
      %v263 = vadd.f32 %v219, %v247
      %v264 = vadd.f32 %v220, %v248
      %v265 = vlaneseq
      %v266 = vshrl.u32 %v265, 7
      %v267 = vsub.s32 0, %v266
      %v268 = vrot.slane %v155, %v267
      %v269 = vmul.f32 %v145, %v268
      %v270 = vmul.f32 %v146, %v268
      %v271 = vmul.f32 %v147, %v268
      %v272 = vmul.f32 %v148, %v268
      %v273 = vmul.f32 %v149, %v268
      %v274 = vmul.f32 %v150, %v268
      %v275 = vmul.f32 %v151, %v268
      %v276 = vmul.f32 %v152, %v268
      %v277 = vadd.f32 %v257, %v269
      %v278 = vadd.f32 %v258, %v270
      %v279 = vadd.f32 %v259, %v271
      %v280 = vadd.f32 %v260, %v272
      %v281 = vadd.f32 %v261, %v273
      %v282 = vadd.f32 %v262, %v274
      %v283 = vadd.f32 %v263, %v275
      %v284 = vadd.f32 %v264, %v276
      %v285 = vlaneseq
      %v286 = vshrl.u32 %v285, 7
      %v287 = vsub.s32 1, %v286
      %v288 = vrot.slane %v155, %v287
      %v289 = vmul.f32 %v145, %v288
      %v290 = vmul.f32 %v146, %v288
      %v291 = vmul.f32 %v147, %v288
      %v292 = vmul.f32 %v148, %v288
      %v293 = vmul.f32 %v149, %v288
      %v294 = vmul.f32 %v150, %v288
      %v295 = vmul.f32 %v151, %v288
      %v296 = vmul.f32 %v152, %v288
      %v305 = vrot.slane %v289, 1
      %v306 = vrot.slane %v290, 1
      %v307 = vrot.slane %v291, 1
      %v308 = vrot.slane %v292, 1
      %v309 = vrot.slane %v293, 1
      %v310 = vrot.slane %v294, 1
      %v311 = vrot.slane %v295, 1
      %v312 = vrot.slane %v296, 1
      %v321 = vadd.f32 %v277, %v305
      %v322 = vadd.f32 %v278, %v306
      %v323 = vadd.f32 %v279, %v307
      %v324 = vadd.f32 %v280, %v308
      %v325 = vadd.f32 %v281, %v309
      %v326 = vadd.f32 %v282, %v310
      %v327 = vadd.f32 %v283, %v311
      %v328 = vadd.f32 %v284, %v312
      %v329 = vlaneseq
      %v330 = vshrl.u32 %v329, 7
      %v331 = vsub.s32 2, %v330
      %v332 = vrot.slane %v155, %v331
      %v333 = vmul.f32 %v145, %v332
      %v334 = vmul.f32 %v146, %v332
      %v335 = vmul.f32 %v147, %v332
      %v336 = vmul.f32 %v148, %v332
      %v337 = vmul.f32 %v149, %v332
      %v338 = vmul.f32 %v150, %v332
      %v339 = vmul.f32 %v151, %v332
      %v340 = vmul.f32 %v152, %v332
      %v349 = vrot.slane %v333, 2
      %v350 = vrot.slane %v334, 2
      %v351 = vrot.slane %v335, 2
      %v352 = vrot.slane %v336, 2
      %v353 = vrot.slane %v337, 2
      %v354 = vrot.slane %v338, 2
      %v355 = vrot.slane %v339, 2
      %v356 = vrot.slane %v340, 2
      %v365 = vadd.f32 %v321, %v349
      %v366 = vadd.f32 %v322, %v350
      %v367 = vadd.f32 %v323, %v351
      %v368 = vadd.f32 %v324, %v352
      %v369 = vadd.f32 %v325, %v353
      %v370 = vadd.f32 %v326, %v354
      %v371 = vadd.f32 %v327, %v355
      %v372 = vadd.f32 %v328, %v356
      %v373 = vlaneseq
      %v374 = vshrl.u32 %v373, 7
      %v375 = vsub.s32 0, %v374
      %v376 = vrot.slane %v156, %v375
      %v377 = vmul.f32 %v146, %v376
      %v378 = vmul.f32 %v147, %v376
      %v379 = vmul.f32 %v148, %v376
      %v380 = vmul.f32 %v149, %v376
      %v381 = vmul.f32 %v150, %v376
      %v382 = vmul.f32 %v151, %v376
      %v383 = vmul.f32 %v152, %v376
      %v384 = vmul.f32 %v153, %v376
      %v385 = vadd.f32 %v365, %v377
      %v386 = vadd.f32 %v366, %v378
      %v387 = vadd.f32 %v367, %v379
      %v388 = vadd.f32 %v368, %v380
      %v389 = vadd.f32 %v369, %v381
      %v390 = vadd.f32 %v370, %v382
      %v391 = vadd.f32 %v371, %v383
      %v392 = vadd.f32 %v372, %v384
      %v393 = vlaneseq
      %v394 = vshrl.u32 %v393, 7
      %v395 = vsub.s32 1, %v394
      %v396 = vrot.slane %v156, %v395
      %v397 = vmul.f32 %v146, %v396
      %v398 = vmul.f32 %v147, %v396
      %v399 = vmul.f32 %v148, %v396
      %v400 = vmul.f32 %v149, %v396
      %v401 = vmul.f32 %v150, %v396
      %v402 = vmul.f32 %v151, %v396
      %v403 = vmul.f32 %v152, %v396
      %v404 = vmul.f32 %v153, %v396
      %v413 = vrot.slane %v397, 1
      %v414 = vrot.slane %v398, 1
      %v415 = vrot.slane %v399, 1
      %v416 = vrot.slane %v400, 1
      %v417 = vrot.slane %v401, 1
      %v418 = vrot.slane %v402, 1
      %v419 = vrot.slane %v403, 1
      %v420 = vrot.slane %v404, 1
      %v429 = vadd.f32 %v385, %v413
      %v430 = vadd.f32 %v386, %v414
      %v431 = vadd.f32 %v387, %v415
      %v432 = vadd.f32 %v388, %v416
      %v433 = vadd.f32 %v389, %v417
      %v434 = vadd.f32 %v390, %v418
      %v435 = vadd.f32 %v391, %v419
      %v436 = vadd.f32 %v392, %v420
      %v437 = vlaneseq
      %v438 = vshrl.u32 %v437, 7
      %v439 = vsub.s32 2, %v438
      %v440 = vrot.slane %v156, %v439
      %v441 = vmul.f32 %v146, %v440
      %v442 = vmul.f32 %v147, %v440
      %v443 = vmul.f32 %v148, %v440
      %v444 = vmul.f32 %v149, %v440
      %v445 = vmul.f32 %v150, %v440
      %v446 = vmul.f32 %v151, %v440
      %v447 = vmul.f32 %v152, %v440
      %v448 = vmul.f32 %v153, %v440
      %v457 = vrot.slane %v441, 2
      %v458 = vrot.slane %v442, 2
      %v459 = vrot.slane %v443, 2
      %v460 = vrot.slane %v444, 2
      %v461 = vrot.slane %v445, 2
      %v462 = vrot.slane %v446, 2
      %v463 = vrot.slane %v447, 2
      %v464 = vrot.slane %v448, 2
      %v473 = vadd.f32 %v429, %v457
      %v474 = vadd.f32 %v430, %v458
      %v475 = vadd.f32 %v431, %v459
      %v476 = vadd.f32 %v432, %v460
      %v477 = vadd.f32 %v433, %v461
      %v478 = vadd.f32 %v434, %v462
      %v479 = vadd.f32 %v435, %v463
      %v480 = vadd.f32 %v436, %v464
      %v481 = vmul.f32 %v473, 0.5
      %v482 = vmul.f32 %v474, 0.5
      %v483 = vmul.f32 %v475, 0.5
      %v484 = vmul.f32 %v476, 0.5
      %v485 = vmul.f32 %v477, 0.5
      %v486 = vmul.f32 %v478, 0.5
      %v487 = vmul.f32 %v479, 0.5
      %v488 = vmul.f32 %v480, 0.5
      %v489 = vmul.f32 %v473, %v473
      %v490 = vmul.f32 %v474, %v474
      %v491 = vmul.f32 %v475, %v475
      %v492 = vmul.f32 %v476, %v476
      %v493 = vmul.f32 %v477, %v477
      %v494 = vmul.f32 %v478, %v478
      %v495 = vmul.f32 %v479, %v479
      %v496 = vmul.f32 %v480, %v480
      %v497 = vmul.f32 %v489, %v473
      %v498 = vmul.f32 %v490, %v474
      %v499 = vmul.f32 %v491, %v475
      %v500 = vmul.f32 %v492, %v476
      %v501 = vmul.f32 %v493, %v477
      %v502 = vmul.f32 %v494, %v478
      %v503 = vmul.f32 %v495, %v479
      %v504 = vmul.f32 %v496, %v480
      %v505 = vmul.f32 %v497, 0.044715
      %v506 = vmul.f32 %v498, 0.044715
      %v507 = vmul.f32 %v499, 0.044715
      %v508 = vmul.f32 %v500, 0.044715
      %v509 = vmul.f32 %v501, 0.044715
      %v510 = vmul.f32 %v502, 0.044715
      %v511 = vmul.f32 %v503, 0.044715
      %v512 = vmul.f32 %v504, 0.044715
      %v513 = vadd.f32 %v473, %v505
      %v514 = vadd.f32 %v474, %v506
      %v515 = vadd.f32 %v475, %v507
      %v516 = vadd.f32 %v476, %v508
      %v517 = vadd.f32 %v477, %v509
      %v518 = vadd.f32 %v478, %v510
      %v519 = vadd.f32 %v479, %v511
      %v520 = vadd.f32 %v480, %v512
      %v521 = vmul.f32 %v513, 0.7978846
      %v522 = vmul.f32 %v514, 0.7978846
      %v523 = vmul.f32 %v515, 0.7978846
      %v524 = vmul.f32 %v516, 0.7978846
      %v525 = vmul.f32 %v517, 0.7978846
      %v526 = vmul.f32 %v518, 0.7978846
      %v527 = vmul.f32 %v519, 0.7978846
      %v528 = vmul.f32 %v520, 0.7978846
      %v529 = vtanh.pop %v521
      %v530 = vtanh.pop %v522
      %v531 = vtanh.pop %v523
      %v532 = vtanh.pop %v524
      %v533 = vtanh.pop %v525
      %v534 = vtanh.pop %v526
      %v535 = vtanh.pop %v527
      %v536 = vtanh.pop %v528
      %v537 = vadd.f32 %v529, 1.0
      %v538 = vadd.f32 %v530, 1.0
      %v539 = vadd.f32 %v531, 1.0
      %v540 = vadd.f32 %v532, 1.0
      %v541 = vadd.f32 %v533, 1.0
      %v542 = vadd.f32 %v534, 1.0
      %v543 = vadd.f32 %v535, 1.0
      %v544 = vadd.f32 %v536, 1.0
      %v545 = vmul.f32 %v481, %v537
      %v546 = vmul.f32 %v482, %v538
      %v547 = vmul.f32 %v483, %v539
      %v548 = vmul.f32 %v484, %v540
      %v549 = vmul.f32 %v485, %v541
      %v550 = vmul.f32 %v486, %v542
      %v551 = vmul.f32 %v487, %v543
      %v552 = vmul.f32 %v488, %v544
      %vm553 = vcmask 258048
      %554 = vst.msk [vmem:[%s143] sm:$0x1f] %vm553, %v545
      %555 = vst.msk [vmem:[%s143 + $0x8] sm:$0x1f] %vm553, %v546
      %556 = vst.msk [vmem:[%s143 + $0x10] sm:$0x1f] %vm553, %v547
      %557 = vst.msk [vmem:[%s143 + $0x18] sm:$0x1f] %vm553, %v548
      %558 = vst.msk [vmem:[%s143 + $0x20] sm:$0x1f] %vm553, %v549
      %559 = vst.msk [vmem:[%s143 + $0x28] sm:$0x1f] %vm553, %v550
      %560 = vst.msk [vmem:[%s143 + $0x30] sm:$0x1f] %vm553, %v551
      %561 = vst.msk [vmem:[%s143 + $0x38] sm:$0x1f] %vm553, %v552
      %p562 = scmp.lt.s32.totalorder %s13, 1
      %s563 = scalar_select %p562, %s13, 1
      %s564 = smul.addr %s563, 8
      %s565 = smul.addr %s564, 8
      %s566 = scalar_lea.vmem %s2, %s565
      // Predicated region
      $region29: #{fwd.38} parent=27 // pred_check
        %p567 = pneg %p78
      $region30: #{fwd.38} parent=27 // pred_check_branch
        %569 = sbr.rel (%p567) target = $region32
      $region31: #{fwd.38} parent=27 // pred_region
        _
      $region32: #{fwd.38} parent=27 // pred_fallthru
        _
    $region28: #{fwd.38} parent=5 // pred_fallthru
      _
    %p570 = scmp.le.s32.totalorder 2, %s8
    // Predicated region
    $region33: #{fwd.38} parent=5 // pred_check
      %p571 = pneg %p570
    $region34: #{fwd.38} parent=5 // pred_check_branch
      %573 = sbr.rel (%p571) target = $region36
    $region35: #{fwd.38} parent=5 // pred_region
      %s574 = ssub.s32 %s8, 2
      // Predicated region
      $region37: #{fwd.38} parent=35 // pred_check
        %p575 = pneg %p84
      $region38: #{fwd.38} parent=35 // pred_check_branch
        %577 = sbr.rel (%p575) target = $region40
      $region39: #{fwd.38} parent=35 // pred_region
        %p578 = scmp.lt.s32.totalorder %s14, 1
        %s579 = scalar_select %p578, %s14, 1
        %s580 = smul.addr %s579, 8
        %s581 = smul.addr %s580, 8
        %s582 = scalar_lea.vmem %s2, %s581
      $region40: #{fwd.38} parent=35 // pred_fallthru
        _
    $region36: #{fwd.38} parent=5 // pred_fallthru
      _
  $region6: #{fwd.38} parent=0 // loop_footer
    %s12 = sadd.s32 1, %s8
  $region7: #{fwd.38} parent=0 // loop_footer_branch
    %7 = sbr.rel target = $region3
  $region8: #{fwd.38} parent=0 // loop_exit
    _

// kernel: fwd.40
$region0: #{fwd.40}
  #allocation0 [shape = 'u32[]', space=smem, size = 0x4, offset = 0x4, fixed_abs, tag = 'smem constant byte address 0x4 - core index']
  #allocation1 [shape = 'u32[144,128]{1,0:T(1,128)}', space=vmem, size = 0x12000, scoped, tag = 'internal scratch']
  %s0 = inlined_call_operand.vmem [shape: f32[16,40], index: 0, kind: input, shape index: {}]
  %s1 = inlined_call_operand.vmem [shape: f32[16,40], index: 1, kind: input, shape index: {}]
  %s2 = inlined_call_operand.vmem [shape: f32[16,40], index: 2, kind: input, shape index: {}]
  %s3 = inlined_call_operand.vmem [shape: f32[16,40], index: 3, kind: input, shape index: {}]
  %s4 = inlined_call_operand.vmem [shape: f32[16,40], index: 4, kind: output, shape index: {0}]
  %s5 = inlined_call_operand.vmem [shape: f32[16,40], index: 5, kind: output, shape index: {1}]
  %6 = xla_tuple %s4, %s5
  %s7 = sld [smem:[#allocation0]]
  $region57: #{fwd.40} parent=0
    _
  %s9 = ssub.s32 1, %s7
  %s10 = scalar_select 0, %s9, %s7
  loop: start=0, step=1, limit=4
  $region2: #{fwd.40} parent=0 // loop_pre_header
    _
  $region3: #{fwd.40} parent=0 // loop_header
    %s12 = sphi 0, %s16
    %p13 = scmp.ge.s32.totalorder %s12, 4
    %s22 = sphi 0, %s24
    %s25 = sphi 0, %s22
    %s26 = sphi 0, %s25
    %s42 = sphi 0, %s26
    %s48 = sphi 0, %s50
    %s51 = sphi 0, %s48
    %s52 = sphi 0, %s51
    %s68 = sphi 0, %s52
    %s74 = sphi 0, %s76
    %s77 = sphi 0, %s74
    %s78 = sphi 0, %s77
    %s94 = sphi 0, %s78
    %s100 = sphi 0, %s102
    %s103 = sphi 0, %s100
    %s104 = sphi 0, %s103
    %s120 = sphi 0, %s104
    %s126 = sphi 0, %s128
    %s129 = sphi 0, %s126
    %s130 = sphi 0, %s129
    %s146 = sphi 0, %s130
    %s152 = sphi 0, %s154
    %s155 = sphi 0, %s152
    %s156 = sphi 0, %s155
    %s172 = sphi 0, %s156
  $region4: #{fwd.40} parent=0 // loop_header_branch
    %15 = sbr.rel (%p13) target = $region8
  $region5: #{fwd.40} parent=0 // loop_body
    %s17 = ssub.s32 %s12, 1
    %s18 = ssub.s32 %s12, 2
    %s19 = sadd.s32 %s12, 1
    %s20 = ssub.s32 %s12, %s19
    %p21 = scmp.eq.s32.totalorder %s20, 0
    %s23 = sadd.s32 %s22, 1
    %s24 = scalar_select %p21, %s22, %s23
    %p27 = pneg %p21
    %p28 = scmp.eq.s32.totalorder %s12, 1
    %p29 = por %p27, %p28
    %p30 = scmp.ne.s32.totalorder %s22, %s25
    %p31 = scmp.eq.s32.totalorder %s12, 0
    %p32 = por %p30, %p31
    %p33 = scmp.ne.s32.totalorder %s22, %s25
    %p34 = scmp.eq.s32.totalorder %s17, 1
    %p35 = por %p33, %p34
    %p36 = scmp.ne.s32.totalorder %s25, %s26
    %p37 = scmp.eq.s32.totalorder %s17, 0
    %p38 = por %p36, %p37
    %p39 = scmp.ne.s32.totalorder %s25, %s26
    %p40 = scmp.eq.s32.totalorder %s18, 1
    %p41 = por %p39, %p40
    %p43 = scmp.ne.s32.totalorder %s26, %s42
    %p44 = scmp.eq.s32.totalorder %s18, 0
    %p45 = por %p43, %p44
    %s46 = ssub.s32 %s12, %s19
    %p47 = scmp.eq.s32.totalorder %s46, 0
    %s49 = sadd.s32 %s48, 1
    %s50 = scalar_select %p47, %s48, %s49
    %p53 = pneg %p47
    %p54 = scmp.eq.s32.totalorder %s12, 1
    %p55 = por %p53, %p54
    %p56 = scmp.ne.s32.totalorder %s48, %s51
    %p57 = scmp.eq.s32.totalorder %s12, 0
    %p58 = por %p56, %p57
    %p59 = scmp.ne.s32.totalorder %s48, %s51
    %p60 = scmp.eq.s32.totalorder %s17, 1
    %p61 = por %p59, %p60
    %p62 = scmp.ne.s32.totalorder %s51, %s52
    %p63 = scmp.eq.s32.totalorder %s17, 0
    %p64 = por %p62, %p63
    %p65 = scmp.ne.s32.totalorder %s51, %s52
    %p66 = scmp.eq.s32.totalorder %s18, 1
    %p67 = por %p65, %p66
    %p69 = scmp.ne.s32.totalorder %s52, %s68
    %p70 = scmp.eq.s32.totalorder %s18, 0
    %p71 = por %p69, %p70
    %s72 = ssub.s32 %s12, %s19
    %p73 = scmp.eq.s32.totalorder %s72, 0
    %s75 = sadd.s32 %s74, 1
    %s76 = scalar_select %p73, %s74, %s75
    %p79 = pneg %p73
    %p80 = scmp.eq.s32.totalorder %s12, 1
    %p81 = por %p79, %p80
    %p82 = scmp.ne.s32.totalorder %s74, %s77
    %p83 = scmp.eq.s32.totalorder %s12, 0
    %p84 = por %p82, %p83
    %p85 = scmp.ne.s32.totalorder %s74, %s77
    %p86 = scmp.eq.s32.totalorder %s17, 1
    %p87 = por %p85, %p86
    %p88 = scmp.ne.s32.totalorder %s77, %s78
    %p89 = scmp.eq.s32.totalorder %s17, 0
    %p90 = por %p88, %p89
    %p91 = scmp.ne.s32.totalorder %s77, %s78
    %p92 = scmp.eq.s32.totalorder %s18, 1
    %p93 = por %p91, %p92
    %p95 = scmp.ne.s32.totalorder %s78, %s94
    %p96 = scmp.eq.s32.totalorder %s18, 0
    %p97 = por %p95, %p96
    %s98 = ssub.s32 %s12, %s19
    %p99 = scmp.eq.s32.totalorder %s98, 0
    %s101 = sadd.s32 %s100, 1
    %s102 = scalar_select %p99, %s100, %s101
    %p105 = pneg %p99
    %p106 = scmp.eq.s32.totalorder %s12, 1
    %p107 = por %p105, %p106
    %p108 = scmp.ne.s32.totalorder %s100, %s103
    %p109 = scmp.eq.s32.totalorder %s12, 0
    %p110 = por %p108, %p109
    %p111 = scmp.ne.s32.totalorder %s100, %s103
    %p112 = scmp.eq.s32.totalorder %s17, 1
    %p113 = por %p111, %p112
    %p114 = scmp.ne.s32.totalorder %s103, %s104
    %p115 = scmp.eq.s32.totalorder %s17, 0
    %p116 = por %p114, %p115
    %p117 = scmp.ne.s32.totalorder %s103, %s104
    %p118 = scmp.eq.s32.totalorder %s18, 1
    %p119 = por %p117, %p118
    %p121 = scmp.ne.s32.totalorder %s104, %s120
    %p122 = scmp.eq.s32.totalorder %s18, 0
    %p123 = por %p121, %p122
    %s124 = ssub.s32 %s12, %s19
    %p125 = scmp.eq.s32.totalorder %s124, 0
    %s127 = sadd.s32 %s126, 1
    %s128 = scalar_select %p125, %s126, %s127
    %p131 = pneg %p125
    %p132 = scmp.eq.s32.totalorder %s12, 1
    %p133 = por %p131, %p132
    %p134 = scmp.ne.s32.totalorder %s126, %s129
    %p135 = scmp.eq.s32.totalorder %s12, 0
    %p136 = por %p134, %p135
    %p137 = scmp.ne.s32.totalorder %s126, %s129
    %p138 = scmp.eq.s32.totalorder %s17, 1
    %p139 = por %p137, %p138
    %p140 = scmp.ne.s32.totalorder %s129, %s130
    %p141 = scmp.eq.s32.totalorder %s17, 0
    %p142 = por %p140, %p141
    %p143 = scmp.ne.s32.totalorder %s129, %s130
    %p144 = scmp.eq.s32.totalorder %s18, 1
    %p145 = por %p143, %p144
    %p147 = scmp.ne.s32.totalorder %s130, %s146
    %p148 = scmp.eq.s32.totalorder %s18, 0
    %p149 = por %p147, %p148
    %s150 = ssub.s32 %s12, %s19
    %p151 = scmp.eq.s32.totalorder %s150, 0
    %s153 = sadd.s32 %s152, 1
    %s154 = scalar_select %p151, %s152, %s153
    %p157 = pneg %p151
    %p158 = scmp.eq.s32.totalorder %s12, 1
    %p159 = por %p157, %p158
    %p160 = scmp.ne.s32.totalorder %s152, %s155
    %p161 = scmp.eq.s32.totalorder %s12, 0
    %p162 = por %p160, %p161
    %p163 = scmp.ne.s32.totalorder %s152, %s155
    %p164 = scmp.eq.s32.totalorder %s17, 1
    %p165 = por %p163, %p164
    %p166 = scmp.ne.s32.totalorder %s155, %s156
    %p167 = scmp.eq.s32.totalorder %s17, 0
    %p168 = por %p166, %p167
    %p169 = scmp.ne.s32.totalorder %s155, %s156
    %p170 = scmp.eq.s32.totalorder %s18, 1
    %p171 = por %p169, %p170
    %p173 = scmp.ne.s32.totalorder %s156, %s172
    %p174 = scmp.eq.s32.totalorder %s18, 0
    %p175 = por %p173, %p174
    %p176 = scmp.le.s32.totalorder 1, %s12
    %p177 = scmp.lt.s32.totalorder %s12, 3
    %p178 = pnand %p176, %p177
    %p179 = pneg %p178
    // Predicated region
    $region9: #{fwd.40} parent=5 // pred_check
      _
    $region10: #{fwd.40} parent=5 // pred_check_branch
      %181 = sbr.rel (%p178) target = $region12
    $region11: #{fwd.40} parent=5 // pred_region
      %s182 = ssub.s32 %s12, 1
    $region12: #{fwd.40} parent=5 // pred_fallthru
      _
    %p183 = scmp.lt.s32.totalorder %s12, 2
    // Predicated region
    $region13: #{fwd.40} parent=5 // pred_check
      %p184 = pneg %p183
    $region14: #{fwd.40} parent=5 // pred_check_branch
      %186 = sbr.rel (%p184) target = $region16
    $region15: #{fwd.40} parent=5 // pred_region
      // Predicated region
      $region17: #{fwd.40} parent=15 // pred_check
        %p187 = pneg %p32
      $region18: #{fwd.40} parent=15 // pred_check_branch
        %189 = sbr.rel (%p187) target = $region20
      $region19: #{fwd.40} parent=15 // pred_region
        %p190 = scmp.lt.s32.totalorder %s12, 1
        %s191 = scalar_select %p190, %s12, 1
        %s192 = smul.addr %s191, 8
        %s193 = scalar_lea.vmem %s0, %s192
      $region20: #{fwd.40} parent=15 // pred_fallthru
        _
      // Predicated region
      $region21: #{fwd.40} parent=15 // pred_check
        %p194 = pneg %p58
      $region22: #{fwd.40} parent=15 // pred_check_branch
        %196 = sbr.rel (%p194) target = $region24
      $region23: #{fwd.40} parent=15 // pred_region
        %p197 = scmp.lt.s32.totalorder %s12, 1
        %s198 = scalar_select %p197, %s12, 1
        %s199 = smul.addr %s198, 8
        %s200 = scalar_lea.vmem %s1, %s199
      $region24: #{fwd.40} parent=15 // pred_fallthru
        _
      // Predicated region
      $region25: #{fwd.40} parent=15 // pred_check
        %p201 = pneg %p84
      $region26: #{fwd.40} parent=15 // pred_check_branch
        %203 = sbr.rel (%p201) target = $region28
      $region27: #{fwd.40} parent=15 // pred_region
        %p204 = scmp.lt.s32.totalorder %s12, 1
        %s205 = scalar_select %p204, %s12, 1
        %s206 = smul.addr %s205, 8
        %s207 = scalar_lea.vmem %s2, %s206
      $region28: #{fwd.40} parent=15 // pred_fallthru
        _
      // Predicated region
      $region29: #{fwd.40} parent=15 // pred_check
        %p208 = pneg %p110
      $region30: #{fwd.40} parent=15 // pred_check_branch
        %210 = sbr.rel (%p208) target = $region32
      $region31: #{fwd.40} parent=15 // pred_region
        %p211 = scmp.lt.s32.totalorder %s12, 1
        %s212 = scalar_select %p211, %s12, 1
        %s213 = smul.addr %s212, 8
        %s214 = scalar_lea.vmem %s3, %s213
      $region32: #{fwd.40} parent=15 // pred_fallthru
        _
    $region16: #{fwd.40} parent=5 // pred_fallthru
      _
    %p215 = scmp.le.s32.totalorder 1, %s12
    %p216 = scmp.lt.s32.totalorder %s12, 3
    %p217 = pnand %p215, %p216
    %p218 = pneg %p217
    // Predicated region
    $region33: #{fwd.40} parent=5 // pred_check
      _
    $region34: #{fwd.40} parent=5 // pred_check_branch
      %220 = sbr.rel (%p217) target = $region36
    $region35: #{fwd.40} parent=5 // pred_region
      %s221 = ssub.s32 %s12, 1
      %p222 = scmp.lt.s32.totalorder %s17, 1
      %s223 = scalar_select %p222, %s17, 1
      %s224 = smul.addr %s223, 8
      %s225 = scalar_lea.vmem %s0, %s224
      %p226 = pneg %p38
      %p227 = pneg %p35
      %p228 = scmp.lt.s32.totalorder %s17, 1
      %s229 = scalar_select %p228, %s17, 1
      %s230 = smul.addr %s229, 8
      %s231 = scalar_lea.vmem %s1, %s230
      %p232 = pneg %p64
      %p233 = pneg %p61
      %p234 = scmp.lt.s32.totalorder %s17, 1
      %s235 = scalar_select %p234, %s17, 1
      %s236 = smul.addr %s235, 8
      %s237 = scalar_lea.vmem %s2, %s236
      %p238 = pneg %p90
      %p239 = pneg %p87
      %p240 = scmp.lt.s32.totalorder %s17, 1
      %s241 = scalar_select %p240, %s17, 1
      %s242 = smul.addr %s241, 8
      %s243 = scalar_lea.vmem %s3, %s242
      %p244 = pneg %p116
      %p245 = pneg %p113
      %p246 = pneg %p142
      %p247 = pneg %p139
      %p248 = scmp.lt.s32.totalorder %s17, 1
      %s249 = scalar_select %p248, %s17, 1
      %s250 = smul.addr %s249, 8
      %s251 = scalar_lea.vmem %s4, %s250
      %p252 = pneg %p168
      %p253 = pneg %p165
      %p254 = scmp.lt.s32.totalorder %s17, 1
      %s255 = scalar_select %p254, %s17, 1
      %s256 = smul.addr %s255, 8
      %s257 = scalar_lea.vmem %s5, %s256
      %p258 = scmp.lt.s32.totalorder %s17, 1
      %s259 = scalar_select %p258, %s17, 1
      %s260 = smul.addr %s259, 8
      %s261 = scalar_lea.vmem %s0, %s260
      %p262 = scmp.lt.s32.totalorder %s17, 1
      %s263 = scalar_select %p262, %s17, 1
      %s264 = smul.addr %s263, 8
      %s265 = scalar_lea.vmem %s1, %s264
      %p266 = scmp.lt.s32.totalorder %s17, 1
      %s267 = scalar_select %p266, %s17, 1
      %s268 = smul.addr %s267, 8
      %s269 = scalar_lea.vmem %s2, %s268
      %p270 = scmp.lt.s32.totalorder %s17, 1
      %s271 = scalar_select %p270, %s17, 1
      %s272 = smul.addr %s271, 8
      %s273 = scalar_lea.vmem %s3, %s272
      %p274 = scmp.lt.s32.totalorder %s17, 1
      %s275 = scalar_select %p274, %s17, 1
      %s276 = smul.addr %s275, 8
      %s277 = scalar_lea.vmem %s4, %s276
      %p278 = scmp.lt.s32.totalorder %s17, 1
      %s279 = scalar_select %p278, %s17, 1
      %s280 = smul.addr %s279, 8
      %s281 = scalar_lea.vmem %s5, %s280
      %v282 = vld [vmem:[%s261] sm:$0xff]
      %v283 = vld [vmem:[%s265] sm:$0xff]
      %v284 = vadd.f32 %v282, %v283
      %v285 = vld [vmem:[%s269] sm:$0xff]
      %v286 = vld [vmem:[%s273] sm:$0xff]
      %v287 = vadd.f32 %v285, %v286
      %v288 = vand.u32 2147483647, %v287
      %vm289 = vcmp.le.f32.partialorder %v288, 0.7853982
      %vm290 = vcmp.lt.s32.totalorder %v287, 0
      %v291 = vand.u32 %v287, 2139095040
      %v292 = vshrl.u32 %v291, 23
      %v293 = vsub.s32 %v292, 127
      %v294 = vand.u32 2147483647, %v287
      %v295 = vand.u32 %v294, 8388607
      %v296 = vor.u32 %v295, 8388608
      %v297 = vsub.s32 0, %v296
      %v298 = vadd.s32 %v293, 1
      %vm299 = vcmp.gt.s32.totalorder %v298, 0
      %v300 = vsel %vm299, %v298, 0
      %v301 = vshrl.u32 %v300, 5
      %v302 = vand.u32 %v300, 31
      %v303 = vsub.s32 32, %v302
      %v304 = vshrl.u32 683565275, %v303
      %v305 = vshll.u32 683565275, %v302
      %v306 = vshrl.u32 2475754826, %v303
      %v307 = vor.u32 %v305, %v306
      %v308 = vshll.u32 2475754826, %v302
      %v309 = vshrl.u32 2131351028, %v303
      %v310 = vor.u32 %v308, %v309
      %v311 = vshll.u32 2131351028, %v302
      %v312 = vshrl.u32 2102212464, %v303
      %v313 = vor.u32 %v311, %v312
      %v314 = vshll.u32 2102212464, %v302
      %v315 = vshrl.u32 920167782, %v303
      %v316 = vor.u32 %v314, %v315
      %v317 = vshll.u32 920167782, %v302
      %v318 = vshrl.u32 1326507024, %v303
      %v319 = vor.u32 %v317, %v318
      %vm320 = vcmp.lt.s32.totalorder %v301, 1
      %vm321 = vcmp.lt.s32.totalorder %v301, 2
      %vm322 = vcmp.lt.s32.totalorder %v301, 3
      %vm323 = vcmp.lt.s32.totalorder %v301, 4
      %v324 = vsel %vm320, %v304, %v307
      %v325 = vsel %vm323, %v313, 2102212464
      %v326 = vsel %vm322, %v310, %v325
      %v327 = vsel %vm321, %v324, %v326
      %v328 = vsel %vm320, %v307, %v310
      %v329 = vsel %vm323, %v316, 920167782
      %v330 = vsel %vm322, %v313, %v329
      %v331 = vsel %vm321, %v328, %v330
      %v332 = vsel %vm320, %v310, %v313
      %v333 = vsel %vm323, %v319, 1326507024
      %v334 = vsel %vm322, %v316, %v333
      %v335 = vsel %vm321, %v332, %v334
      %v336 = vshll.u32 %v296, 8
      %v337 = vmul.u32.u64.compose %v336, %v335
      %v338 = vextract.low.u32 %v337
      %v339 = vextract.high.u32 %v337
      %v340 = vmul.u32.u64.compose %v336, %v331
      %v341 = vextract.low.u32 %v340
      %v342 = vextract.high.u32 %v340
      %v343 = vmul.u32 %v336, %v327
      %v344 = vadd.s32 %v339, %v341
      %vm345 = vc.u32 %v339, %v341
      %v346 = vadd.s32 %v342, 1
      %v347 = vsel %vm345, %v346, %v342
      %v348 = vadd.s32 %v343, %v347
      %v349 = vadd.s32 %v348, 536870912
      %v350 = vshrl.u32 %v349, 30
      %v351 = vshll.u32 %v350, 30
      %v352 = vsub.s32 %v348, %v351
      %vm353 = vcmp.lt.s32.totalorder %v352, 0
      %v354 = vsub.s32 0, %v352
      %v355 = vsel %vm353, %v354, %v352
      %v356 = vclz %v355
      %v357 = vsub.s32 %v356, 2
      %vm358 = vcmp.gt.s32.totalorder 0, %v357
      %v359 = vsel %vm358, 0, %v357
      %v360 = vsub.s32 32, %v359
      %v361 = vshll.u32 %v352, %v359
      %v362 = vshrl.u32 %v344, %v360
      %v363 = vor.u32 %v361, %v362
      %v364 = vsub.s32 4294967266, %v359
      %v365 = vadd.s32 %v364, 127
      %v366 = vshll.u32 %v365, 23
      %v367 = vor.u32 4788187, %v366
      %v368 = vand.u32 2147483647, %v367
      %v370 = vcvt.s32.f32 %v363
      %v371 = vmul.f32 %v370, %v368
      %v372 = vxor.u32 %v371, 2147483648
      %v373 = vsel %vm290, %v372, %v371
      %v374 = vsub.s32 4, %v350
      %v375 = vsel %vm290, %v374, %v350
      %v376 = vsel %vm289, %v287, %v373
      %v377 = vsel %vm289, 0, %v375
      %v378 = vcosq.f32.pop %v376
      %v379 = vsinq.f32.pop %v376
      %vm380 = vweird.f32 %v287
      %v381 = vand.u32 %v377, 3
      %vm382 = vcmp.lt.s32.totalorder %v381, 2
      %vm383 = vcmp.eq.s32.totalorder %v381, 0
      %v384 = vxor.u32 %v379, 2147483648
      %v385 = vsel %vm383, %v378, %v384
      %vm386 = vcmp.eq.s32.totalorder %v381, 2
      %v387 = vxor.u32 %v378, 2147483648
      %v388 = vsel %vm386, %v387, %v379
      %v389 = vsel %vm382, %v385, %v388
      %v390 = vsel %vm380, nan, %v389
      %v391 = vmul.f32 %v284, %v390
      %v392 = vadd.f32 %v391, 1e-08
      %vm393 = vcmask 326656
      %394 = vst.msk [vmem:[%s277] sm:$0xff] %vm393, %v392
      %v395 = vand.u32 2147483647, %v287
      %vm396 = vcmp.le.f32.partialorder %v395, 0.7853982
      %vm397 = vcmp.lt.s32.totalorder %v287, 0
      %v398 = vand.u32 %v287, 2139095040
      %v399 = vshrl.u32 %v398, 23
      %v400 = vsub.s32 %v399, 127
      %v401 = vand.u32 2147483647, %v287
      %v402 = vand.u32 %v401, 8388607
      %v403 = vor.u32 %v402, 8388608
      %v404 = vsub.s32 0, %v403
      %v405 = vadd.s32 %v400, 1
      %vm406 = vcmp.gt.s32.totalorder %v405, 0
      %v407 = vsel %vm406, %v405, 0
      %v408 = vshrl.u32 %v407, 5
      %v409 = vand.u32 %v407, 31
      %v410 = vsub.s32 32, %v409
      %v411 = vshrl.u32 683565275, %v410
      %v412 = vshll.u32 683565275, %v409
      %v413 = vshrl.u32 2475754826, %v410
      %v414 = vor.u32 %v412, %v413
      %v415 = vshll.u32 2475754826, %v409
      %v416 = vshrl.u32 2131351028, %v410
      %v417 = vor.u32 %v415, %v416
      %v418 = vshll.u32 2131351028, %v409
      %v419 = vshrl.u32 2102212464, %v410
      %v420 = vor.u32 %v418, %v419
      %v421 = vshll.u32 2102212464, %v409
      %v422 = vshrl.u32 920167782, %v410
      %v423 = vor.u32 %v421, %v422
      %v424 = vshll.u32 920167782, %v409
      %v425 = vshrl.u32 1326507024, %v410
      %v426 = vor.u32 %v424, %v425
      %vm427 = vcmp.lt.s32.totalorder %v408, 1
      %vm428 = vcmp.lt.s32.totalorder %v408, 2
      %vm429 = vcmp.lt.s32.totalorder %v408, 3
      %vm430 = vcmp.lt.s32.totalorder %v408, 4
      %v431 = vsel %vm427, %v411, %v414
      %v432 = vsel %vm430, %v420, 2102212464
      %v433 = vsel %vm429, %v417, %v432
      %v434 = vsel %vm428, %v431, %v433
      %v435 = vsel %vm427, %v414, %v417
      %v436 = vsel %vm430, %v423, 920167782
      %v437 = vsel %vm429, %v420, %v436
      %v438 = vsel %vm428, %v435, %v437
      %v439 = vsel %vm427, %v417, %v420
      %v440 = vsel %vm430, %v426, 1326507024
      %v441 = vsel %vm429, %v423, %v440
      %v442 = vsel %vm428, %v439, %v441
      %v443 = vshll.u32 %v403, 8
      %v444 = vmul.u32.u64.compose %v443, %v442
      %v445 = vextract.low.u32 %v444
      %v446 = vextract.high.u32 %v444
      %v447 = vmul.u32.u64.compose %v443, %v438
      %v448 = vextract.low.u32 %v447
      %v449 = vextract.high.u32 %v447
      %v450 = vmul.u32 %v443, %v434
      %v451 = vadd.s32 %v446, %v448
      %vm452 = vc.u32 %v446, %v448
      %v453 = vadd.s32 %v449, 1
      %v454 = vsel %vm452, %v453, %v449
      %v455 = vadd.s32 %v450, %v454
      %v456 = vadd.s32 %v455, 536870912
      %v457 = vshrl.u32 %v456, 30
      %v458 = vshll.u32 %v457, 30
      %v459 = vsub.s32 %v455, %v458
      %vm460 = vcmp.lt.s32.totalorder %v459, 0
      %v461 = vsub.s32 0, %v459
      %v462 = vsel %vm460, %v461, %v459
      %v463 = vclz %v462
      %v464 = vsub.s32 %v463, 2
      %vm465 = vcmp.gt.s32.totalorder 0, %v464
      %v466 = vsel %vm465, 0, %v464
      %v467 = vsub.s32 32, %v466
      %v468 = vshll.u32 %v459, %v466
      %v469 = vshrl.u32 %v451, %v467
      %v470 = vor.u32 %v468, %v469
      %v471 = vsub.s32 4294967266, %v466
      %v472 = vadd.s32 %v471, 127
      %v473 = vshll.u32 %v472, 23
      %v474 = vor.u32 4788187, %v473
      %v475 = vand.u32 2147483647, %v474
      %v477 = vcvt.s32.f32 %v470
      %v478 = vmul.f32 %v477, %v475
      %v479 = vxor.u32 %v478, 2147483648
      %v480 = vsel %vm397, %v479, %v478
      %v481 = vsub.s32 4, %v457
      %v482 = vsel %vm397, %v481, %v457
      %v483 = vsel %vm396, %v287, %v480
      %v484 = vsel %vm396, 0, %v482
      %v485 = vcosq.f32.pop %v483
      %v486 = vsinq.f32.pop %v483
      %vm487 = vweird.f32 %v287
      %v488 = vadd.s32 %v484, 3
      %v489 = vand.u32 %v488, 3
      %vm490 = vcmp.lt.s32.totalorder %v489, 2
      %vm491 = vcmp.eq.s32.totalorder %v489, 0
      %v492 = vxor.u32 %v486, 2147483648
      %v493 = vsel %vm491, %v485, %v492
      %vm494 = vcmp.eq.s32.totalorder %v489, 2
      %v495 = vxor.u32 %v485, 2147483648
      %v496 = vsel %vm494, %v495, %v486
      %v497 = vsel %vm490, %v493, %v496
      %v498 = vsel %vm487, nan, %v497
      %v499 = vmul.f32 %v284, %v498
      %v500 = vadd.f32 %v499, 1e-08
      %501 = vst.msk [vmem:[%s281] sm:$0xff] %vm393, %v500
      %p502 = scmp.lt.s32.totalorder %s17, 1
      %s503 = scalar_select %p502, %s17, 1
      %s504 = smul.addr %s503, 8
      %s505 = scalar_lea.vmem %s4, %s504
      %p506 = scmp.lt.s32.totalorder %s17, 1
      %s507 = scalar_select %p506, %s17, 1
      %s508 = smul.addr %s507, 8
      %s509 = scalar_lea.vmem %s5, %s508
      // Predicated region
      $region37: #{fwd.40} parent=35 // pred_check
        %p510 = pneg %p139
      $region38: #{fwd.40} parent=35 // pred_check_branch
        %512 = sbr.rel (%p510) target = $region40
      $region39: #{fwd.40} parent=35 // pred_region
        _
      $region40: #{fwd.40} parent=35 // pred_fallthru
        _
      // Predicated region
      $region41: #{fwd.40} parent=35 // pred_check
        %p513 = pneg %p165
      $region42: #{fwd.40} parent=35 // pred_check_branch
        %515 = sbr.rel (%p513) target = $region44
      $region43: #{fwd.40} parent=35 // pred_region
        _
      $region44: #{fwd.40} parent=35 // pred_fallthru
        _
    $region36: #{fwd.40} parent=5 // pred_fallthru
      _
    %p516 = scmp.le.s32.totalorder 2, %s12
    // Predicated region
    $region45: #{fwd.40} parent=5 // pred_check
      %p517 = pneg %p516
    $region46: #{fwd.40} parent=5 // pred_check_branch
      %519 = sbr.rel (%p517) target = $region48
    $region47: #{fwd.40} parent=5 // pred_region
      %s520 = ssub.s32 %s12, 2
      // Predicated region
      $region49: #{fwd.40} parent=47 // pred_check
        %p521 = pneg %p145
      $region50: #{fwd.40} parent=47 // pred_check_branch
        %523 = sbr.rel (%p521) target = $region52
      $region51: #{fwd.40} parent=47 // pred_region
        %p524 = scmp.lt.s32.totalorder %s18, 1
        %s525 = scalar_select %p524, %s18, 1
        %s526 = smul.addr %s525, 8
        %s527 = scalar_lea.vmem %s4, %s526
      $region52: #{fwd.40} parent=47 // pred_fallthru
        _
      // Predicated region
      $region53: #{fwd.40} parent=47 // pred_check
        %p528 = pneg %p171
      $region54: #{fwd.40} parent=47 // pred_check_branch
        %530 = sbr.rel (%p528) target = $region56
      $region55: #{fwd.40} parent=47 // pred_region
        %p531 = scmp.lt.s32.totalorder %s18, 1
        %s532 = scalar_select %p531, %s18, 1
        %s533 = smul.addr %s532, 8
        %s534 = scalar_lea.vmem %s5, %s533
      $region56: #{fwd.40} parent=47 // pred_fallthru
        _
    $region48: #{fwd.40} parent=5 // pred_fallthru
      _
  $region6: #{fwd.40} parent=0 // loop_footer
    %s16 = sadd.s32 1, %s12
  $region7: #{fwd.40} parent=0 // loop_footer_branch
    %11 = sbr.rel target = $region3
  $region8: #{fwd.40} parent=0 // loop_exit
    _

// kernel: reverse.1
$region0: #{reverse.1}
  #allocation0 [shape = 's32[1]{0}', space=sflag, size = 0x4, scoped, tag = 'scoped memory for reverse.1']
  %s0 = inlined_call_operand.vmem [shape: f32[2,8,8,3], index: 0, kind: input, shape index: {}]
  %s1 = inlined_call_operand.vmem [shape: f32[2,8,8,3], index: 1, kind: output, shape index: {}]
  %s2 = scalar_lea.vmem %s0, 16
  %v3 = vld [vmem:[%s2] sm:$0xff]
  %4 = vst [vmem:[%s1] sm:$0xff] %v3
  %s5 = scalar_lea.vmem %s0, 40
  %v6 = vld [vmem:[%s5] sm:$0xff]
  %s7 = scalar_lea.vmem %s1, 24
  %8 = vst [vmem:[%s7] sm:$0xff] %v6
  %s9 = scalar_lea.vmem %s0, 8
  %v10 = vld [vmem:[%s9] sm:$0xff]
  %s11 = scalar_lea.vmem %s1, 8
  %12 = vst [vmem:[%s11] sm:$0xff] %v10
  %s13 = scalar_lea.vmem %s0, 32
  %v14 = vld [vmem:[%s13] sm:$0xff]
  %s15 = scalar_lea.vmem %s1, 32
  %16 = vst [vmem:[%s15] sm:$0xff] %v14
  %v17 = vld [vmem:[%s0] sm:$0xff]
  %s18 = scalar_lea.vmem %s1, 16
  %19 = vst [vmem:[%s18] sm:$0xff] %v17
  %s20 = scalar_lea.vmem %s0, 24
  %v21 = vld [vmem:[%s20] sm:$0xff]
  %s22 = scalar_lea.vmem %s1, 40
  %23 = vst [vmem:[%s22] sm:$0xff] %v21

</llo_original>
